<compile_context>
chip_gen: v6e
topology: v6e:2x2x1
jax: 0.10.0
libtpu: 0.0.40
codegen_flags: <defaults>
</compile_context>

<pallas_src>
import numpy as np

import jax
import jax.numpy as jnp
from jax.experimental import pallas as pl
from jax.experimental.pallas import tpu as pltpu


# Layer geometry implied by the module (fc = Linear(16*1*1, 10) forces a
# 1x16x16 input: four 2x2 pools take 16 -> 8 -> 4 -> 2 -> 1).
_LAYERS = (
    # (Cin, Cout, K, pad, Hin)  (square spatial)
    (1, 16, 3, 1, 16),
    (16, 8, 3, 1, 8),
    (8, 16, 5, 2, 4),
    (16, 16, 5, 2, 2),
)


# --------------------------------------------------------------------------
# Fused Pallas kernel: whole CNN4 forward for one batch tile, VMEM resident.
# --------------------------------------------------------------------------
def _cnn4_kernel(x_ref,
                 w1_ref, b1_ref, w2_ref, b2_ref, w3_ref, b3_ref, w4_ref, b4_ref,
                 fcw_ref, fcb_ref, out_ref):

    def pool_bias_relu(y, b_ref):
        # y: [TB, 4*Q] f32.  The 4 members of each 2x2 pool window live in 4
        # contiguous column quarters (ordering fixed at weight-construction
        # time), so MaxPool2d(2) is a max over quarters.  Pool FIRST, then add
        # bias and ReLU — valid because the bias is identical across the 4
        # quarters, and it cuts the VPU add/ReLU width by 4x.
        q = y.shape[1] // 4
        m = jnp.maximum(jnp.maximum(y[:, :q], y[:, q:2 * q]),
                        jnp.maximum(y[:, 2 * q:3 * q], y[:, 3 * q:]))
        return jnp.maximum(m + b_ref[...], 0.0)       # [TB, Q] f32, (h, w, c) order

    x = x_ref[...]                                     # [TB, 256] bf16

    # ---- Layer 1: four GEMMs (one per pool quarter) with a running max, so
    # the largest f32 live intermediate is [TB, 1024] instead of [TB, 4096].
    q1 = w1_ref.shape[1] // 4                          # 1024 (lane-aligned slices)
    m = jnp.dot(x, w1_ref[:, :q1], preferred_element_type=jnp.float32)
    for k in range(1, 4):
        m = jnp.maximum(
            m, jnp.dot(x, w1_ref[:, k * q1:(k + 1) * q1],
                       preferred_element_type=jnp.float32))
    a = jnp.maximum(m + b1_ref[...], 0.0).astype(jnp.bfloat16)       # [TB, 1024]

    # ---- Layers 2-4: single GEMM, pool as max over contiguous column quarters.
    y = jnp.dot(a, w2_ref[...], preferred_element_type=jnp.float32)
    a = pool_bias_relu(y, b2_ref).astype(jnp.bfloat16)                # [TB, 128]
    y = jnp.dot(a, w3_ref[...], preferred_element_type=jnp.float32)
    a = pool_bias_relu(y, b3_ref).astype(jnp.bfloat16)                # [TB, 64]
    y = jnp.dot(a, w4_ref[...], preferred_element_type=jnp.float32)
    a = pool_bias_relu(y, b4_ref).astype(jnp.bfloat16)                # [TB, 16]

    # ---- FC, zero-padded to 128 output lanes so the store is lane-dense.
    logits = jnp.dot(a, fcw_ref[...],
                     preferred_element_type=jnp.float32) + fcb_ref[...]
    out_ref[...] = logits.astype(out_ref.dtype)                       # [TB, 128]


# --------------------------------------------------------------------------
# One-time (init) weight preparation: fold im2col + zero padding into dense
# GEMM matrices whose output column order makes the 2x2 maxpool contiguous.
# --------------------------------------------------------------------------
def prepare_kernel_params(params):
    kp = {}
    names = ("conv1", "conv2", "conv3", "conv4")
    for name, (cin, cout, k, pad, hin) in zip(names, _LAYERS):
        w = np.asarray(params[f"{name}_w"], np.float32)    # [Cout, Cin, K, K] (OIHW)
        b = np.asarray(params[f"{name}_b"], np.float32)
        ho = hin // 2                                      # pooled spatial size
        # rows: input flat index (h*W + w)*Cin + ci
        # cols: ((di*2+dj)*Ho*Wo + i*Wo + j)*Cout + co   with output pixel (2i+di, 2j+dj)
        mat = np.zeros((hin * hin * cin, 4 * ho * ho * cout), np.float32)
        for di in range(2):
            for dj in range(2):
                for i in range(ho):
                    for j in range(ho):
                        oh, ow = 2 * i + di, 2 * j + dj
                        col0 = ((di * 2 + dj) * ho * ho + i * ho + j) * cout
                        for kh in range(k):
                            ih = oh + kh - pad
                            if ih < 0 or ih >= hin:
                                continue
                            for kw in range(k):
                                iw = ow + kw - pad
                                if iw < 0 or iw >= hin:
                                    continue
                                row0 = (ih * hin + iw) * cin
                                # block[ci, co] = w[co, ci, kh, kw]
                                mat[row0:row0 + cin, col0:col0 + cout] = w[:, :, kh, kw].T
        kp[f"{name}_w"] = jnp.asarray(mat, jnp.bfloat16)
        # bias per POOLED output pixel (not tiled x4): pool-first epilogue.
        kp[f"{name}_b"] = jnp.asarray(np.tile(b, ho * ho)[None, :], jnp.float32)

    # fc zero-padded to 128 output lanes (lane-dense output store).
    fcw = np.zeros((16, 128), np.float32)
    fcw[:, :10] = np.asarray(params["fc_w"], np.float32).T             # [16, 10]
    fcb = np.zeros((1, 128), np.float32)
    fcb[0, :10] = np.asarray(params["fc_b"], np.float32)
    kp["fc_w"] = jnp.asarray(fcw, jnp.bfloat16)
    kp["fc_b"] = jnp.asarray(fcb, jnp.float32)
    return kp


def _round_up(n, m):
    return ((n + m - 1) // m) * m


# --------------------------------------------------------------------------
# Wrapper: one pallas_call, grid over batch tiles (parallel for v7x megacore).
# --------------------------------------------------------------------------
def cnn4_forward(kparams, x_nchw, *, batch_tile=256):
    assert batch_tile % 8 == 0
    B = x_nchw.shape[0]
    assert x_nchw.shape[1:] == (1, 16, 16), x_nchw.shape
    # Cin == 1, so the NCHW flatten is already (h, w) row-major.
    x_flat = x_nchw.reshape(B, 16 * 16).astype(jnp.bfloat16)

    # Batch-tile selection:
    #  * large B: big tiles (default 256) amortize MXU weight reloads + per-step
    #    overhead;
    #  * medium B: guarantee >= 2 grid steps so v7x's second TensorCore gets
    #    work (no-op on v5e/v6e);
    #  * small B: single full-batch block.
    if B > batch_tile:
        tb = batch_tile
    elif B >= 16:
        tb = _round_up(pl.cdiv(B, 2), 8)
    else:
        tb = B
    Bp = _round_up(B, tb)
    if Bp != B:
        x_flat = jnp.pad(x_flat, ((0, Bp - B), (0, 0)))
    grid = (Bp // tb,)

    def batch_map(i):
        return (i, 0)

    def const_map(i):            # same block every step -> weights DMA'd once
        return (0, 0)

    weights = (kparams["conv1_w"], kparams["conv1_b"],
               kparams["conv2_w"], kparams["conv2_b"],
               kparams["conv3_w"], kparams["conv3_b"],
               kparams["conv4_w"], kparams["conv4_b"],
               kparams["fc_w"], kparams["fc_b"])

    in_specs = [pl.BlockSpec((tb, 256), batch_map)]
    in_specs += [pl.BlockSpec(w.shape, const_map) for w in weights]

    out = pl.pallas_call(
        _cnn4_kernel,
        out_shape=jax.ShapeDtypeStruct((Bp, 128), jnp.float32),
        grid_spec=pltpu.PrefetchScalarGridSpec(
            num_scalar_prefetch=0,
            grid=grid,
            in_specs=in_specs,
            out_specs=pl.BlockSpec((tb, 128), batch_map),
        ),
        compiler_params=pltpu.CompilerParams(
            dimension_semantics=("parallel",),      # split batch tiles across v7x's 2 TCs
            vmem_limit_bytes=48 * 1024 * 1024,      # headroom; footprint ~14 MB at tb=512
        ),
    )(x_flat, *weights)
    return out[:B, :10]


# --------------------------------------------------------------------------
# Deterministic synthetic parameters (PyTorch layout) and a pure-JAX reference.
# --------------------------------------------------------------------------
def init_params(key):
    def make(k, shape, fan_in):
        scale = 1.0 / jnp.sqrt(jnp.float32(fan_in))
        return jax.random.uniform(k, shape, jnp.float32, -scale, scale)

    keys = jax.random.split(key, 10)
    return {
        "conv1_w": make(keys[0], (16, 1, 3, 3), 1 * 3 * 3),
        "conv1_b": make(keys[1], (16,), 1 * 3 * 3),
        "conv2_w": make(keys[2], (8, 16, 3, 3), 16 * 3 * 3),
        "conv2_b": make(keys[3], (8,), 16 * 3 * 3),
        "conv3_w": make(keys[4], (16, 8, 5, 5), 8 * 5 * 5),
        "conv3_b": make(keys[5], (16,), 8 * 5 * 5),
        "conv4_w": make(keys[6], (16, 16, 5, 5), 16 * 5 * 5),
        "conv4_b": make(keys[7], (16,), 16 * 5 * 5),
        "fc_w": make(keys[8], (10, 16), 16),     # PyTorch Linear: [out, in]
        "fc_b": make(keys[9], (10,), 16),
    }


def _reference_forward(params, x):
    def conv(x, w, b, pad):
        y = jax.lax.conv_general_dilated(
            x, w, window_strides=(1, 1), padding=[(pad, pad), (pad, pad)],
            dimension_numbers=("NCHW", "OIHW", "NCHW"))
        return jax.nn.relu(y + b[None, :, None, None])

    def pool(x):
        return jax.lax.reduce_window(x, -jnp.inf, jax.lax.max,
                                     (1, 1, 2, 2), (1, 1, 2, 2), "VALID")

    x = pool(conv(x, params["conv1_w"], params["conv1_b"], 1))
    x = pool(conv(x, params["conv2_w"], params["conv2_b"], 1))
    x = pool(conv(x, params["conv3_w"], params["conv3_b"], 2))
    x = pool(conv(x, params["conv4_w"], params["conv4_b"], 2))
    x = x.reshape(x.shape[0], 16)
    return x @ params["fc_w"].T + params["fc_b"]


if __name__ == "__main__":
    key = jax.random.PRNGKey(0)
    pkey, xkey, xkey2 = jax.random.split(key, 3)
    params = init_params(pkey)
    kparams = prepare_kernel_params(params)     # hoisted constant prep (once)

    fwd = jax.jit(cnn4_forward)

    # Small primary check (batch=2, 1 channel, 16x16 as implied by the module).
    x = jax.random.normal(xkey, (2, 1, 16, 16), dtype=jnp.float32)
    out = jax.block_until_ready(fwd(kparams, x))
    assert out.shape == (2, 10), out.shape
    ref = jax.block_until_ready(_reference_forward(params, x))
    err = float(jnp.max(jnp.abs(out - ref)))
    assert err < 5e-2, f"max abs error vs reference (B=2): {err}"

    # Also exercise the multi-grid-step + batch-padding path (B=24 -> 2 steps).
    x2 = jax.random.normal(xkey2, (24, 1, 16, 16), dtype=jnp.float32)
    out2 = jax.block_until_ready(fwd(kparams, x2))
    assert out2.shape == (24, 10), out2.shape
    ref2 = jax.block_until_ready(_reference_forward(params, x2))
    err2 = float(jnp.max(jnp.abs(out2 - ref2)))
    assert err2 < 5e-2, f"max abs error vs reference (B=24): {err2}"

    print("KERNEL_OK")
</pallas_src>

<mosaic_0001>
module attributes {stable_mosaic.version = 11 : i64} {
  func.func @_cnn4_kernel(%arg0: i32, %arg1: memref<2x256xbf16, #tpu.memory_space<vmem>>, %arg2: memref<256x4096xbf16, #tpu.memory_space<vmem>>, %arg3: memref<1x1024xf32, #tpu.memory_space<vmem>>, %arg4: memref<1024x512xbf16, #tpu.memory_space<vmem>>, %arg5: memref<1x128xf32, #tpu.memory_space<vmem>>, %arg6: memref<128x256xbf16, #tpu.memory_space<vmem>>, %arg7: memref<1x64xf32, #tpu.memory_space<vmem>>, %arg8: memref<64x64xbf16, #tpu.memory_space<vmem>>, %arg9: memref<1x16xf32, #tpu.memory_space<vmem>>, %arg10: memref<16x128xbf16, #tpu.memory_space<vmem>>, %arg11: memref<1x128xf32, #tpu.memory_space<vmem>>, %arg12: memref<2x128xf32, #tpu.memory_space<vmem>>) attributes {dimension_semantics = [#tpu.dimension_semantics<parallel>], iteration_bounds = array<i64: 1>, scalar_prefetch = 0 : i64, scratch_operands = 0 : i64, tpu.core_type = #tpu.core_type<tc>, window_params = [{transform_indices = @transform_0, window_bounds = array<i64: 2, 256>}, {pipeline_mode = #tpu.pipeline_mode<synchronous>, transform_indices = @transform_1, window_bounds = array<i64: 256, 4096>}, {pipeline_mode = #tpu.pipeline_mode<synchronous>, transform_indices = @transform_2, window_bounds = array<i64: 1, 1024>}, {pipeline_mode = #tpu.pipeline_mode<synchronous>, transform_indices = @transform_3, window_bounds = array<i64: 1024, 512>}, {pipeline_mode = #tpu.pipeline_mode<synchronous>, transform_indices = @transform_4, window_bounds = array<i64: 1, 128>}, {pipeline_mode = #tpu.pipeline_mode<synchronous>, transform_indices = @transform_5, window_bounds = array<i64: 128, 256>}, {pipeline_mode = #tpu.pipeline_mode<synchronous>, transform_indices = @transform_6, window_bounds = array<i64: 1, 64>}, {pipeline_mode = #tpu.pipeline_mode<synchronous>, transform_indices = @transform_7, window_bounds = array<i64: 64, 64>}, {pipeline_mode = #tpu.pipeline_mode<synchronous>, transform_indices = @transform_8, window_bounds = array<i64: 1, 16>}, {pipeline_mode = #tpu.pipeline_mode<synchronous>, transform_indices = @transform_9, window_bounds = array<i64: 16, 128>}, {pipeline_mode = #tpu.pipeline_mode<synchronous>, transform_indices = @transform_10, window_bounds = array<i64: 1, 128>}, {transform_indices = @transform_11, window_bounds = array<i64: 2, 128>}]} {
    %c0 = arith.constant 0 : index
    %c0_0 = arith.constant 0 : index
    %0 = vector.load %arg1[%c0, %c0_0] : memref<2x256xbf16, #tpu.memory_space<vmem>>, vector<2x256xbf16>
    %c0_1 = arith.constant 0 : index
    %c0_2 = arith.constant 0 : index
    %1 = vector.load %arg2[%c0_1, %c0_2] : memref<256x4096xbf16, #tpu.memory_space<vmem>>, vector<256x1024xbf16>
    %cst = arith.constant dense<0.000000e+00> : vector<2x1024xf32>
    %2 = tpu.matmul %0, %1, %cst {dimension_numbers = #tpu.dot_dimension_numbers<[1], [0], [0], [1], [0, 0, 1, 1], [], []>} : vector<2x256xbf16>, vector<256x1024xbf16>, vector<2x1024xf32> -> vector<2x1024xf32>
    %c0_3 = arith.constant 0 : index
    %c1024 = arith.constant 1024 : index
    %3 = vector.load %arg2[%c0_3, %c1024] : memref<256x4096xbf16, #tpu.memory_space<vmem>>, vector<256x1024xbf16>
    %cst_4 = arith.constant dense<0.000000e+00> : vector<2x1024xf32>
    %4 = tpu.matmul %0, %3, %cst_4 {dimension_numbers = #tpu.dot_dimension_numbers<[1], [0], [0], [1], [0, 0, 1, 1], [], []>} : vector<2x256xbf16>, vector<256x1024xbf16>, vector<2x1024xf32> -> vector<2x1024xf32>
    %5 = arith.maximumf %2, %4 : vector<2x1024xf32>
    %c0_5 = arith.constant 0 : index
    %c2048 = arith.constant 2048 : index
    %6 = vector.load %arg2[%c0_5, %c2048] : memref<256x4096xbf16, #tpu.memory_space<vmem>>, vector<256x1024xbf16>
    %cst_6 = arith.constant dense<0.000000e+00> : vector<2x1024xf32>
    %7 = tpu.matmul %0, %6, %cst_6 {dimension_numbers = #tpu.dot_dimension_numbers<[1], [0], [0], [1], [0, 0, 1, 1], [], []>} : vector<2x256xbf16>, vector<256x1024xbf16>, vector<2x1024xf32> -> vector<2x1024xf32>
    %8 = arith.maximumf %5, %7 : vector<2x1024xf32>
    %c0_7 = arith.constant 0 : index
    %c3072 = arith.constant 3072 : index
    %9 = vector.load %arg2[%c0_7, %c3072] : memref<256x4096xbf16, #tpu.memory_space<vmem>>, vector<256x1024xbf16>
    %cst_8 = arith.constant dense<0.000000e+00> : vector<2x1024xf32>
    %10 = tpu.matmul %0, %9, %cst_8 {dimension_numbers = #tpu.dot_dimension_numbers<[1], [0], [0], [1], [0, 0, 1, 1], [], []>} : vector<2x256xbf16>, vector<256x1024xbf16>, vector<2x1024xf32> -> vector<2x1024xf32>
    %11 = arith.maximumf %8, %10 : vector<2x1024xf32>
    %c0_9 = arith.constant 0 : index
    %c0_10 = arith.constant 0 : index
    %12 = vector.load %arg3[%c0_9, %c0_10] : memref<1x1024xf32, #tpu.memory_space<vmem>>, vector<1x1024xf32>
    %13 = vector.broadcast %12 : vector<1x1024xf32> to vector<2x1024xf32>
    %14 = arith.addf %11, %13 : vector<2x1024xf32>
    %cst_11 = arith.constant 0.000000e+00 : f32
    %15 = vector.broadcast %cst_11 : f32 to vector<2x1024xf32>
    %16 = arith.maximumf %14, %15 : vector<2x1024xf32>
    %17 = arith.truncf %16 : vector<2x1024xf32> to vector<2x1024xbf16>
    %c0_12 = arith.constant 0 : index
    %c0_13 = arith.constant 0 : index
    %18 = vector.load %arg4[%c0_12, %c0_13] : memref<1024x512xbf16, #tpu.memory_space<vmem>>, vector<1024x512xbf16>
    %cst_14 = arith.constant dense<0.000000e+00> : vector<2x512xf32>
    %19 = tpu.matmul %17, %18, %cst_14 {dimension_numbers = #tpu.dot_dimension_numbers<[1], [0], [0], [1], [0, 0, 1, 1], [], []>} : vector<2x1024xbf16>, vector<1024x512xbf16>, vector<2x512xf32> -> vector<2x512xf32>
    %20 = vector.extract_strided_slice %19 {offsets = [0, 0], sizes = [2, 128], strides = [1, 1]} : vector<2x512xf32> to vector<2x128xf32>
    %21 = vector.extract_strided_slice %19 {offsets = [0, 128], sizes = [2, 128], strides = [1, 1]} : vector<2x512xf32> to vector<2x128xf32>
    %22 = arith.maximumf %20, %21 : vector<2x128xf32>
    %23 = vector.extract_strided_slice %19 {offsets = [0, 256], sizes = [2, 128], strides = [1, 1]} : vector<2x512xf32> to vector<2x128xf32>
    %24 = vector.extract_strided_slice %19 {offsets = [0, 384], sizes = [2, 128], strides = [1, 1]} : vector<2x512xf32> to vector<2x128xf32>
    %25 = arith.maximumf %23, %24 : vector<2x128xf32>
    %26 = arith.maximumf %22, %25 : vector<2x128xf32>
    %c0_15 = arith.constant 0 : index
    %c0_16 = arith.constant 0 : index
    %27 = vector.load %arg5[%c0_15, %c0_16] : memref<1x128xf32, #tpu.memory_space<vmem>>, vector<1x128xf32>
    %28 = vector.broadcast %27 : vector<1x128xf32> to vector<2x128xf32>
    %29 = arith.addf %26, %28 : vector<2x128xf32>
    %cst_17 = arith.constant 0.000000e+00 : f32
    %30 = vector.broadcast %cst_17 : f32 to vector<2x128xf32>
    %31 = arith.maximumf %29, %30 : vector<2x128xf32>
    %32 = arith.truncf %31 : vector<2x128xf32> to vector<2x128xbf16>
    %c0_18 = arith.constant 0 : index
    %c0_19 = arith.constant 0 : index
    %33 = vector.load %arg6[%c0_18, %c0_19] : memref<128x256xbf16, #tpu.memory_space<vmem>>, vector<128x256xbf16>
    %cst_20 = arith.constant dense<0.000000e+00> : vector<2x256xf32>
    %34 = tpu.matmul %32, %33, %cst_20 {dimension_numbers = #tpu.dot_dimension_numbers<[1], [0], [0], [1], [0, 0, 1, 1], [], []>} : vector<2x128xbf16>, vector<128x256xbf16>, vector<2x256xf32> -> vector<2x256xf32>
    %35 = vector.extract_strided_slice %34 {offsets = [0, 0], sizes = [2, 64], strides = [1, 1]} : vector<2x256xf32> to vector<2x64xf32>
    %36 = vector.extract_strided_slice %34 {offsets = [0, 64], sizes = [2, 64], strides = [1, 1]} : vector<2x256xf32> to vector<2x64xf32>
    %37 = arith.maximumf %35, %36 : vector<2x64xf32>
    %38 = vector.extract_strided_slice %34 {offsets = [0, 128], sizes = [2, 64], strides = [1, 1]} : vector<2x256xf32> to vector<2x64xf32>
    %39 = vector.extract_strided_slice %34 {offsets = [0, 192], sizes = [2, 64], strides = [1, 1]} : vector<2x256xf32> to vector<2x64xf32>
    %40 = arith.maximumf %38, %39 : vector<2x64xf32>
    %41 = arith.maximumf %37, %40 : vector<2x64xf32>
    %c0_21 = arith.constant 0 : index
    %c0_22 = arith.constant 0 : index
    %42 = vector.load %arg7[%c0_21, %c0_22] : memref<1x64xf32, #tpu.memory_space<vmem>>, vector<1x64xf32>
    %43 = vector.broadcast %42 : vector<1x64xf32> to vector<2x64xf32>
    %44 = arith.addf %41, %43 : vector<2x64xf32>
    %cst_23 = arith.constant 0.000000e+00 : f32
    %45 = vector.broadcast %cst_23 : f32 to vector<2x64xf32>
    %46 = arith.maximumf %44, %45 : vector<2x64xf32>
    %47 = arith.truncf %46 : vector<2x64xf32> to vector<2x64xbf16>
    %c0_24 = arith.constant 0 : index
    %c0_25 = arith.constant 0 : index
    %48 = vector.load %arg8[%c0_24, %c0_25] : memref<64x64xbf16, #tpu.memory_space<vmem>>, vector<64x64xbf16>
    %cst_26 = arith.constant dense<0.000000e+00> : vector<2x64xf32>
    %49 = tpu.matmul %47, %48, %cst_26 {dimension_numbers = #tpu.dot_dimension_numbers<[1], [0], [0], [1], [0, 0, 1, 1], [], []>} : vector<2x64xbf16>, vector<64x64xbf16>, vector<2x64xf32> -> vector<2x64xf32>
    %50 = vector.extract_strided_slice %49 {offsets = [0, 0], sizes = [2, 16], strides = [1, 1]} : vector<2x64xf32> to vector<2x16xf32>
    %51 = vector.extract_strided_slice %49 {offsets = [0, 16], sizes = [2, 16], strides = [1, 1]} : vector<2x64xf32> to vector<2x16xf32>
    %52 = arith.maximumf %50, %51 : vector<2x16xf32>
    %53 = vector.extract_strided_slice %49 {offsets = [0, 32], sizes = [2, 16], strides = [1, 1]} : vector<2x64xf32> to vector<2x16xf32>
    %54 = vector.extract_strided_slice %49 {offsets = [0, 48], sizes = [2, 16], strides = [1, 1]} : vector<2x64xf32> to vector<2x16xf32>
    %55 = arith.maximumf %53, %54 : vector<2x16xf32>
    %56 = arith.maximumf %52, %55 : vector<2x16xf32>
    %c0_27 = arith.constant 0 : index
    %c0_28 = arith.constant 0 : index
    %57 = vector.load %arg9[%c0_27, %c0_28] : memref<1x16xf32, #tpu.memory_space<vmem>>, vector<1x16xf32>
    %58 = vector.broadcast %57 : vector<1x16xf32> to vector<2x16xf32>
    %59 = arith.addf %56, %58 : vector<2x16xf32>
    %cst_29 = arith.constant 0.000000e+00 : f32
    %60 = vector.broadcast %cst_29 : f32 to vector<2x16xf32>
    %61 = arith.maximumf %59, %60 : vector<2x16xf32>
    %62 = arith.truncf %61 : vector<2x16xf32> to vector<2x16xbf16>
    %c0_30 = arith.constant 0 : index
    %c0_31 = arith.constant 0 : index
    %63 = vector.load %arg10[%c0_30, %c0_31] : memref<16x128xbf16, #tpu.memory_space<vmem>>, vector<16x128xbf16>
    %cst_32 = arith.constant dense<0.000000e+00> : vector<2x128xf32>
    %64 = tpu.matmul %62, %63, %cst_32 {dimension_numbers = #tpu.dot_dimension_numbers<[1], [0], [0], [1], [0, 0, 1, 1], [], []>} : vector<2x16xbf16>, vector<16x128xbf16>, vector<2x128xf32> -> vector<2x128xf32>
    %c0_33 = arith.constant 0 : index
    %c0_34 = arith.constant 0 : index
    %65 = vector.load %arg11[%c0_33, %c0_34] : memref<1x128xf32, #tpu.memory_space<vmem>>, vector<1x128xf32>
    %66 = vector.broadcast %65 : vector<1x128xf32> to vector<2x128xf32>
    %67 = arith.addf %64, %66 : vector<2x128xf32>
    %c0_35 = arith.constant 0 : index
    %c0_36 = arith.constant 0 : index
    %68 = vector.load %arg12[%c0_35, %c0_36] : memref<2x128xf32, #tpu.memory_space<vmem>>, vector<2x128xf32>
    tpu.vector_store %arg12[%c0_35, %c0_36], %67 {strides = array<i32>} : memref<2x128xf32, #tpu.memory_space<vmem>>, vector<2x128xf32>,
    return
  }
  func.func @transform_0(%arg0: i32) -> (i32, i32) {
    %c0_i32 = arith.constant 0 : i32
    %c0_i32_0 = arith.constant 0 : i32
    return %arg0, %c0_i32 : i32, i32
  }
  func.func @transform_1(%arg0: i32) -> (i32, i32) {
    %c0_i32 = arith.constant 0 : i32
    %c0_i32_0 = arith.constant 0 : i32
    %c0_i32_1 = arith.constant 0 : i32
    return %c0_i32, %c0_i32_0 : i32, i32
  }
  func.func @transform_2(%arg0: i32) -> (i32, i32) {
    %c0_i32 = arith.constant 0 : i32
    %c0_i32_0 = arith.constant 0 : i32
    %c0_i32_1 = arith.constant 0 : i32
    return %c0_i32, %c0_i32_0 : i32, i32
  }
  func.func @transform_3(%arg0: i32) -> (i32, i32) {
    %c0_i32 = arith.constant 0 : i32
    %c0_i32_0 = arith.constant 0 : i32
    %c0_i32_1 = arith.constant 0 : i32
    return %c0_i32, %c0_i32_0 : i32, i32
  }
  func.func @transform_4(%arg0: i32) -> (i32, i32) {
    %c0_i32 = arith.constant 0 : i32
    %c0_i32_0 = arith.constant 0 : i32
    %c0_i32_1 = arith.constant 0 : i32
    return %c0_i32, %c0_i32_0 : i32, i32
  }
  func.func @transform_5(%arg0: i32) -> (i32, i32) {
    %c0_i32 = arith.constant 0 : i32
    %c0_i32_0 = arith.constant 0 : i32
    %c0_i32_1 = arith.constant 0 : i32
    return %c0_i32, %c0_i32_0 : i32, i32
  }
  func.func @transform_6(%arg0: i32) -> (i32, i32) {
    %c0_i32 = arith.constant 0 : i32
    %c0_i32_0 = arith.constant 0 : i32
    %c0_i32_1 = arith.constant 0 : i32
    return %c0_i32, %c0_i32_0 : i32, i32
  }
  func.func @transform_7(%arg0: i32) -> (i32, i32) {
    %c0_i32 = arith.constant 0 : i32
    %c0_i32_0 = arith.constant 0 : i32
    %c0_i32_1 = arith.constant 0 : i32
    return %c0_i32, %c0_i32_0 : i32, i32
  }
  func.func @transform_8(%arg0: i32) -> (i32, i32) {
    %c0_i32 = arith.constant 0 : i32
    %c0_i32_0 = arith.constant 0 : i32
    %c0_i32_1 = arith.constant 0 : i32
    return %c0_i32, %c0_i32_0 : i32, i32
  }
  func.func @transform_9(%arg0: i32) -> (i32, i32) {
    %c0_i32 = arith.constant 0 : i32
    %c0_i32_0 = arith.constant 0 : i32
    %c0_i32_1 = arith.constant 0 : i32
    return %c0_i32, %c0_i32_0 : i32, i32
  }
  func.func @transform_10(%arg0: i32) -> (i32, i32) {
    %c0_i32 = arith.constant 0 : i32
    %c0_i32_0 = arith.constant 0 : i32
    %c0_i32_1 = arith.constant 0 : i32
    return %c0_i32, %c0_i32_0 : i32, i32
  }
  func.func @transform_11(%arg0: i32) -> (i32, i32) {
    %c0_i32 = arith.constant 0 : i32
    %c0_i32_0 = arith.constant 0 : i32
    return %arg0, %c0_i32 : i32, i32
  }
}

</mosaic_0001>

<llo_original>
// kernel: cnn4_forward.1
$region0: #{cnn4_forward.1}
  #allocation0 [shape = 'u32[]', space=smem, size = 0x4, offset = 0x4, fixed_abs, tag = 'smem constant byte address 0x4 - core index']
  #allocation1 [shape = 'u32[144,128]{1,0:T(1,128)}', space=vmem, size = 0x12000, scoped, tag = 'internal scratch']
  %s0 = inlined_call_operand.vmem [shape: bf16[2,256], index: 0, kind: input, shape index: {}]
  %s1 = inlined_call_operand.hbm [shape: bf16[256,4096], index: 1, kind: input, shape index: {}]
  %s2 = inlined_call_operand.hbm [shape: f32[1,1024], index: 2, kind: input, shape index: {}]
  %s3 = inlined_call_operand.hbm [shape: bf16[1024,512], index: 3, kind: input, shape index: {}]
  %s4 = inlined_call_operand.hbm [shape: f32[1,128], index: 4, kind: input, shape index: {}]
  %s5 = inlined_call_operand.hbm [shape: bf16[128,256], index: 5, kind: input, shape index: {}]
  %s6 = inlined_call_operand.hbm [shape: f32[1,64], index: 6, kind: input, shape index: {}]
  %s7 = inlined_call_operand.hbm [shape: bf16[64,64], index: 7, kind: input, shape index: {}]
  %s8 = inlined_call_operand.hbm [shape: f32[1,16], index: 8, kind: input, shape index: {}]
  %s9 = inlined_call_operand.hbm [shape: bf16[16,128], index: 9, kind: input, shape index: {}]
  %s10 = inlined_call_operand.hbm [shape: f32[1,128], index: 10, kind: input, shape index: {}]
  %s11 = inlined_call_operand.hbm [shape: f32[2,128], index: 11, kind: output, shape index: {}]
  %s12 = sld [smem:[#allocation0]]
  $region94: #{cnn4_forward.1} parent=0
    _
  %s14 = ssub.s32 1, %s12
  %s15 = scalar_select 0, %s14, %s12
  $region1: #{cnn4_forward.1} parent=0
    #allocation2 [shape = 'u8[2097152]{0}', space=vmem, size = 0x200000, scoped, tag = 'input window, operand 1, single buffered']
    #allocation3 [shape = 's32[1]{0}', space=sflag, size = 0x4, scoped, tag = 'scoped memory for cnn4_forward.1']
    #allocation4 [shape = 's32[1]{0}', space=sflag, size = 0x4, scoped, tag = 'scoped memory for cnn4_forward.1']
    #allocation5 [shape = 'u8[4096]{0}', space=vmem, size = 0x1000, scoped, tag = 'input window, operand 2, single buffered']
    #allocation6 [shape = 's32[1]{0}', space=sflag, size = 0x4, scoped, tag = 'scoped memory for cnn4_forward.1']
    #allocation7 [shape = 'u8[1048576]{0}', space=vmem, size = 0x100000, scoped, tag = 'input window, operand 3, single buffered']
    #allocation8 [shape = 'u8[512]{0}', space=vmem, size = 0x400, scoped, tag = 'input window, operand 4, single buffered']
    #allocation9 [shape = 's32[1]{0}', space=sflag, size = 0x4, scoped, tag = 'scoped memory for cnn4_forward.1']
    #allocation10 [shape = 'u8[65536]{0}', space=vmem, size = 0x10000, scoped, tag = 'input window, operand 5, single buffered']
    #allocation11 [shape = 'u8[512]{0}', space=vmem, size = 0x400, scoped, tag = 'input window, operand 6, single buffered']
    #allocation12 [shape = 's32[1]{0}', space=sflag, size = 0x4, scoped, tag = 'scoped memory for cnn4_forward.1']
    #allocation13 [shape = 'u8[16384]{0}', space=vmem, size = 0x4000, scoped, tag = 'input window, operand 7, single buffered']
    #allocation14 [shape = 'u8[512]{0}', space=vmem, size = 0x400, scoped, tag = 'input window, operand 8, single buffered']
    #allocation15 [shape = 's32[1]{0}', space=sflag, size = 0x4, scoped, tag = 'scoped memory for cnn4_forward.1']
    #allocation16 [shape = 'u8[4096]{0}', space=vmem, size = 0x1000, scoped, tag = 'input window, operand 9, single buffered']
    #allocation17 [shape = 'u8[512]{0}', space=vmem, size = 0x400, scoped, tag = 'input window, operand 10, single buffered']
    #allocation18 [shape = 's32[1]{0}', space=sflag, size = 0x4, scoped, tag = 'scoped memory for cnn4_forward.1']
    #allocation19 [shape = 'u8[1024]{0}', space=vmem, size = 0x400, scoped, tag = 'output window, operand 0, single buffered']
    %16 = vsyncpa [#allocation3], 0
    %17 = vsyncpa [#allocation6], 0
    %18 = vsyncpa [#allocation9], 0
    %19 = vsyncpa [#allocation12], 0
    %20 = vsyncpa [#allocation15], 0
    %21 = vsyncpa [#allocation18], 0
    %22 = vsyncpa [#allocation4], 0
    // Predicated region
    $region2: #{cnn4_forward.1} parent=1 // pred_check
      _
    $region3: #{cnn4_forward.1} parent=1 // pred_check_branch
      %24 = sbr.rel (0) target = $region5
    $region4: #{cnn4_forward.1} parent=1 // pred_region
      _
    $region5: #{cnn4_forward.1} parent=1 // pred_fallthru
      _
    // Predicated region
    $region6: #{cnn4_forward.1} parent=1 // pred_check
      _
    $region7: #{cnn4_forward.1} parent=1 // pred_check_branch
      %26 = sbr.rel (0) target = $region9
    $region8: #{cnn4_forward.1} parent=1 // pred_region
      %s28 = ssub.s32 65536, 65536
      %29 = vsyncadd [#allocation3], %s28
      %s30 = sshll.u32 [#allocation2], 4
      %s31 = int_to_ptr.vmem [resolvable:$true] %s30
      %36 = dma.hbm_to_vmem [thread:$0]  %s1, 65536, %s31, [#allocation3], 2048, 2048, 128
    $region9: #{cnn4_forward.1} parent=1 // pred_fallthru
      _
    // Predicated region
    $region10: #{cnn4_forward.1} parent=1 // pred_check
      _
    $region11: #{cnn4_forward.1} parent=1 // pred_check_branch
      %38 = sbr.rel (0) target = $region13
    $region12: #{cnn4_forward.1} parent=1 // pred_region
      %s40 = ssub.s32 128, 128
      %41 = vsyncadd [#allocation6], %s40
      %s43 = sshll.u32 [#allocation5], 4
      %s44 = int_to_ptr.vmem [resolvable:$true] %s43
      %46 = dma.hbm_to_vmem [thread:$0]  %s2, 128, %s44, [#allocation6]
    $region13: #{cnn4_forward.1} parent=1 // pred_fallthru
      _
    // Predicated region
    $region14: #{cnn4_forward.1} parent=1 // pred_check
      _
    $region15: #{cnn4_forward.1} parent=1 // pred_check_branch
      %48 = sbr.rel (0) target = $region17
    $region16: #{cnn4_forward.1} parent=1 // pred_region
      %s50 = ssub.s32 32768, 32768
      %51 = vsyncadd [#allocation6], %s50
      %s52 = sshll.u32 [#allocation7], 4
      %s53 = int_to_ptr.vmem [resolvable:$true] %s52
      %58 = dma.hbm_to_vmem [thread:$0]  %s3, 32768, %s53, [#allocation6], 256, 256, 16
    $region17: #{cnn4_forward.1} parent=1 // pred_fallthru
      _
    // Predicated region
    $region18: #{cnn4_forward.1} parent=1 // pred_check
      _
    $region19: #{cnn4_forward.1} parent=1 // pred_check_branch
      %60 = sbr.rel (0) target = $region21
    $region20: #{cnn4_forward.1} parent=1 // pred_region
      %s62 = ssub.s32 16, 16
      %63 = vsyncadd [#allocation9], %s62
      %s65 = sshll.u32 [#allocation8], 4
      %s66 = int_to_ptr.vmem [resolvable:$true] %s65
      %68 = dma.hbm_to_vmem [thread:$0]  %s4, 16, %s66, [#allocation9]
    $region21: #{cnn4_forward.1} parent=1 // pred_fallthru
      _
    // Predicated region
    $region22: #{cnn4_forward.1} parent=1 // pred_check
      _
    $region23: #{cnn4_forward.1} parent=1 // pred_check_branch
      %70 = sbr.rel (0) target = $region25
    $region24: #{cnn4_forward.1} parent=1 // pred_region
      %s72 = ssub.s32 2048, 2048
      %73 = vsyncadd [#allocation9], %s72
      %s74 = sshll.u32 [#allocation10], 4
      %s75 = int_to_ptr.vmem [resolvable:$true] %s74
      %80 = dma.hbm_to_vmem [thread:$0]  %s5, 2048, %s75, [#allocation9], 128, 128, 8
    $region25: #{cnn4_forward.1} parent=1 // pred_fallthru
      _
    // Predicated region
    $region26: #{cnn4_forward.1} parent=1 // pred_check
      _
    $region27: #{cnn4_forward.1} parent=1 // pred_check_branch
      %82 = sbr.rel (0) target = $region29
    $region28: #{cnn4_forward.1} parent=1 // pred_region
      %s84 = ssub.s32 16, 16
      %85 = vsyncadd [#allocation12], %s84
      %s87 = sshll.u32 [#allocation11], 4
      %s88 = int_to_ptr.vmem [resolvable:$true] %s87
      %90 = dma.hbm_to_vmem [thread:$0]  %s6, 16, %s88, [#allocation12]
    $region29: #{cnn4_forward.1} parent=1 // pred_fallthru
      _
    // Predicated region
    $region30: #{cnn4_forward.1} parent=1 // pred_check
      _
    $region31: #{cnn4_forward.1} parent=1 // pred_check_branch
      %92 = sbr.rel (0) target = $region33
    $region32: #{cnn4_forward.1} parent=1 // pred_region
      %s94 = ssub.s32 512, 512
      %95 = vsyncadd [#allocation12], %s94
      %s96 = sshll.u32 [#allocation13], 4
      %s97 = int_to_ptr.vmem [resolvable:$true] %s96
      %102 = dma.hbm_to_vmem [thread:$0]  %s7, 512, %s97, [#allocation12], 64, 64, 4
    $region33: #{cnn4_forward.1} parent=1 // pred_fallthru
      _
    // Predicated region
    $region34: #{cnn4_forward.1} parent=1 // pred_check
      _
    $region35: #{cnn4_forward.1} parent=1 // pred_check_branch
      %104 = sbr.rel (0) target = $region37
    $region36: #{cnn4_forward.1} parent=1 // pred_region
      %s106 = ssub.s32 16, 16
      %107 = vsyncadd [#allocation15], %s106
      %s109 = sshll.u32 [#allocation14], 4
      %s110 = int_to_ptr.vmem [resolvable:$true] %s109
      %112 = dma.hbm_to_vmem [thread:$0]  %s8, 16, %s110, [#allocation15]
    $region37: #{cnn4_forward.1} parent=1 // pred_fallthru
      _
    // Predicated region
    $region38: #{cnn4_forward.1} parent=1 // pred_check
      _
    $region39: #{cnn4_forward.1} parent=1 // pred_check_branch
      %114 = sbr.rel (0) target = $region41
    $region40: #{cnn4_forward.1} parent=1 // pred_region
      %s116 = ssub.s32 128, 128
      %117 = vsyncadd [#allocation15], %s116
      %s118 = sshll.u32 [#allocation16], 4
      %s119 = int_to_ptr.vmem [resolvable:$true] %s118
      %124 = dma.hbm_to_vmem [thread:$0]  %s9, 128, %s119, [#allocation15], 64, 64, 4
    $region41: #{cnn4_forward.1} parent=1 // pred_fallthru
      _
    // Predicated region
    $region42: #{cnn4_forward.1} parent=1 // pred_check
      _
    $region43: #{cnn4_forward.1} parent=1 // pred_check_branch
      %126 = sbr.rel (0) target = $region45
    $region44: #{cnn4_forward.1} parent=1 // pred_region
      %s128 = ssub.s32 16, 16
      %129 = vsyncadd [#allocation18], %s128
      %s131 = sshll.u32 [#allocation17], 4
      %s132 = int_to_ptr.vmem [resolvable:$true] %s131
      %134 = dma.hbm_to_vmem [thread:$0]  %s10, 16, %s132, [#allocation18]
    $region45: #{cnn4_forward.1} parent=1 // pred_fallthru
      _
    // Predicated region
    $region46: #{cnn4_forward.1} parent=1 // pred_check
      _
    $region47: #{cnn4_forward.1} parent=1 // pred_check_branch
      %136 = sbr.rel (0) target = $region49
    $region48: #{cnn4_forward.1} parent=1 // pred_region
      %137 = dma.done [#allocation3], 65536
    $region49: #{cnn4_forward.1} parent=1 // pred_fallthru
      _
    // Predicated region
    $region50: #{cnn4_forward.1} parent=1 // pred_check
      _
    $region51: #{cnn4_forward.1} parent=1 // pred_check_branch
      %139 = sbr.rel (0) target = $region53
    $region52: #{cnn4_forward.1} parent=1 // pred_region
      %140 = dma.done [#allocation6], 128
    $region53: #{cnn4_forward.1} parent=1 // pred_fallthru
      _
    // Predicated region
    $region54: #{cnn4_forward.1} parent=1 // pred_check
      _
    $region55: #{cnn4_forward.1} parent=1 // pred_check_branch
      %142 = sbr.rel (0) target = $region57
    $region56: #{cnn4_forward.1} parent=1 // pred_region
      %143 = dma.done [#allocation6], 32768
    $region57: #{cnn4_forward.1} parent=1 // pred_fallthru
      _
    // Predicated region
    $region58: #{cnn4_forward.1} parent=1 // pred_check
      _
    $region59: #{cnn4_forward.1} parent=1 // pred_check_branch
      %145 = sbr.rel (0) target = $region61
    $region60: #{cnn4_forward.1} parent=1 // pred_region
      %146 = dma.done [#allocation9], 16
    $region61: #{cnn4_forward.1} parent=1 // pred_fallthru
      _
    // Predicated region
    $region62: #{cnn4_forward.1} parent=1 // pred_check
      _
    $region63: #{cnn4_forward.1} parent=1 // pred_check_branch
      %148 = sbr.rel (0) target = $region65
    $region64: #{cnn4_forward.1} parent=1 // pred_region
      %149 = dma.done [#allocation9], 2048
    $region65: #{cnn4_forward.1} parent=1 // pred_fallthru
      _
    // Predicated region
    $region66: #{cnn4_forward.1} parent=1 // pred_check
      _
    $region67: #{cnn4_forward.1} parent=1 // pred_check_branch
      %151 = sbr.rel (0) target = $region69
    $region68: #{cnn4_forward.1} parent=1 // pred_region
      %152 = dma.done [#allocation12], 16
    $region69: #{cnn4_forward.1} parent=1 // pred_fallthru
      _
    // Predicated region
    $region70: #{cnn4_forward.1} parent=1 // pred_check
      _
    $region71: #{cnn4_forward.1} parent=1 // pred_check_branch
      %154 = sbr.rel (0) target = $region73
    $region72: #{cnn4_forward.1} parent=1 // pred_region
      %155 = dma.done [#allocation12], 512
    $region73: #{cnn4_forward.1} parent=1 // pred_fallthru
      _
    // Predicated region
    $region74: #{cnn4_forward.1} parent=1 // pred_check
      _
    $region75: #{cnn4_forward.1} parent=1 // pred_check_branch
      %157 = sbr.rel (0) target = $region77
    $region76: #{cnn4_forward.1} parent=1 // pred_region
      %158 = dma.done [#allocation15], 16
    $region77: #{cnn4_forward.1} parent=1 // pred_fallthru
      _
    // Predicated region
    $region78: #{cnn4_forward.1} parent=1 // pred_check
      _
    $region79: #{cnn4_forward.1} parent=1 // pred_check_branch
      %160 = sbr.rel (0) target = $region81
    $region80: #{cnn4_forward.1} parent=1 // pred_region
      %161 = dma.done [#allocation15], 128
    $region81: #{cnn4_forward.1} parent=1 // pred_fallthru
      _
    // Predicated region
    $region82: #{cnn4_forward.1} parent=1 // pred_check
      _
    $region83: #{cnn4_forward.1} parent=1 // pred_check_branch
      %163 = sbr.rel (0) target = $region85
    $region84: #{cnn4_forward.1} parent=1 // pred_region
      %164 = dma.done [#allocation18], 16
    $region85: #{cnn4_forward.1} parent=1 // pred_fallthru
      _
    %v166 = vld [vmem:[%s0] sm:$0x3]
    %v167 = vld [vmem:[#allocation2] sm:$0xff]
    %v168 = vld [vmem:[#allocation2 + $0x8] sm:$0xff]
    %v169 = vld [vmem:[#allocation2 + $0x10] sm:$0xff]
    %v170 = vld [vmem:[#allocation2 + $0x18] sm:$0xff]
    %v171 = vld [vmem:[#allocation2 + $0x80] sm:$0xff]
    %v172 = vld [vmem:[#allocation2 + $0x88] sm:$0xff]
    %v173 = vld [vmem:[#allocation2 + $0x90] sm:$0xff]
    %v174 = vld [vmem:[#allocation2 + $0x98] sm:$0xff]
    %v175 = vld [vmem:[#allocation2 + $0x100] sm:$0xff]
    %v176 = vld [vmem:[#allocation2 + $0x108] sm:$0xff]
    %v177 = vld [vmem:[#allocation2 + $0x110] sm:$0xff]
    %v178 = vld [vmem:[#allocation2 + $0x118] sm:$0xff]
    %v179 = vld [vmem:[#allocation2 + $0x180] sm:$0xff]
    %v180 = vld [vmem:[#allocation2 + $0x188] sm:$0xff]
    %v181 = vld [vmem:[#allocation2 + $0x190] sm:$0xff]
    %v182 = vld [vmem:[#allocation2 + $0x198] sm:$0xff]
    %v183 = vld [vmem:[#allocation2 + $0x200] sm:$0xff]
    %v184 = vld [vmem:[#allocation2 + $0x208] sm:$0xff]
    %v185 = vld [vmem:[#allocation2 + $0x210] sm:$0xff]
    %v186 = vld [vmem:[#allocation2 + $0x218] sm:$0xff]
    %v187 = vld [vmem:[#allocation2 + $0x280] sm:$0xff]
    %v188 = vld [vmem:[#allocation2 + $0x288] sm:$0xff]
    %v189 = vld [vmem:[#allocation2 + $0x290] sm:$0xff]
    %v190 = vld [vmem:[#allocation2 + $0x298] sm:$0xff]
    %v191 = vld [vmem:[#allocation2 + $0x300] sm:$0xff]
    %v192 = vld [vmem:[#allocation2 + $0x308] sm:$0xff]
    %v193 = vld [vmem:[#allocation2 + $0x310] sm:$0xff]
    %v194 = vld [vmem:[#allocation2 + $0x318] sm:$0xff]
    %v195 = vld [vmem:[#allocation2 + $0x380] sm:$0xff]
    %v196 = vld [vmem:[#allocation2 + $0x388] sm:$0xff]
    %v197 = vld [vmem:[#allocation2 + $0x390] sm:$0xff]
    %v198 = vld [vmem:[#allocation2 + $0x398] sm:$0xff]
    %v199 = vld [vmem:[#allocation2 + $0x400] sm:$0xff]
    %v200 = vld [vmem:[#allocation2 + $0x408] sm:$0xff]
    %v201 = vld [vmem:[#allocation2 + $0x410] sm:$0xff]
    %v202 = vld [vmem:[#allocation2 + $0x418] sm:$0xff]
    %v203 = vld [vmem:[#allocation2 + $0x480] sm:$0xff]
    %v204 = vld [vmem:[#allocation2 + $0x488] sm:$0xff]
    %v205 = vld [vmem:[#allocation2 + $0x490] sm:$0xff]
    %v206 = vld [vmem:[#allocation2 + $0x498] sm:$0xff]
    %v207 = vld [vmem:[#allocation2 + $0x500] sm:$0xff]
    %v208 = vld [vmem:[#allocation2 + $0x508] sm:$0xff]
    %v209 = vld [vmem:[#allocation2 + $0x510] sm:$0xff]
    %v210 = vld [vmem:[#allocation2 + $0x518] sm:$0xff]
    %v211 = vld [vmem:[#allocation2 + $0x580] sm:$0xff]
    %v212 = vld [vmem:[#allocation2 + $0x588] sm:$0xff]
    %v213 = vld [vmem:[#allocation2 + $0x590] sm:$0xff]
    %v214 = vld [vmem:[#allocation2 + $0x598] sm:$0xff]
    %v215 = vld [vmem:[#allocation2 + $0x600] sm:$0xff]
    %v216 = vld [vmem:[#allocation2 + $0x608] sm:$0xff]
    %v217 = vld [vmem:[#allocation2 + $0x610] sm:$0xff]
    %v218 = vld [vmem:[#allocation2 + $0x618] sm:$0xff]
    %v219 = vld [vmem:[#allocation2 + $0x680] sm:$0xff]
    %v220 = vld [vmem:[#allocation2 + $0x688] sm:$0xff]
    %v221 = vld [vmem:[#allocation2 + $0x690] sm:$0xff]
    %v222 = vld [vmem:[#allocation2 + $0x698] sm:$0xff]
    %v223 = vld [vmem:[#allocation2 + $0x700] sm:$0xff]
    %v224 = vld [vmem:[#allocation2 + $0x708] sm:$0xff]
    %v225 = vld [vmem:[#allocation2 + $0x710] sm:$0xff]
    %v226 = vld [vmem:[#allocation2 + $0x718] sm:$0xff]
    %v227 = vld [vmem:[#allocation2 + $0x780] sm:$0xff]
    %v228 = vld [vmem:[#allocation2 + $0x788] sm:$0xff]
    %v229 = vld [vmem:[#allocation2 + $0x790] sm:$0xff]
    %v230 = vld [vmem:[#allocation2 + $0x798] sm:$0xff]
    %v231 = vld [vmem:[#allocation2 + $0x800] sm:$0xff]
    %v232 = vld [vmem:[#allocation2 + $0x808] sm:$0xff]
    %v233 = vld [vmem:[#allocation2 + $0x810] sm:$0xff]
    %v234 = vld [vmem:[#allocation2 + $0x818] sm:$0xff]
    %v235 = vld [vmem:[#allocation2 + $0x880] sm:$0xff]
    %v236 = vld [vmem:[#allocation2 + $0x888] sm:$0xff]
    %v237 = vld [vmem:[#allocation2 + $0x890] sm:$0xff]
    %v238 = vld [vmem:[#allocation2 + $0x898] sm:$0xff]
    %v239 = vld [vmem:[#allocation2 + $0x900] sm:$0xff]
    %v240 = vld [vmem:[#allocation2 + $0x908] sm:$0xff]
    %v241 = vld [vmem:[#allocation2 + $0x910] sm:$0xff]
    %v242 = vld [vmem:[#allocation2 + $0x918] sm:$0xff]
    %v243 = vld [vmem:[#allocation2 + $0x980] sm:$0xff]
    %v244 = vld [vmem:[#allocation2 + $0x988] sm:$0xff]
    %v245 = vld [vmem:[#allocation2 + $0x990] sm:$0xff]
    %v246 = vld [vmem:[#allocation2 + $0x998] sm:$0xff]
    %v247 = vld [vmem:[#allocation2 + $0xa00] sm:$0xff]
    %v248 = vld [vmem:[#allocation2 + $0xa08] sm:$0xff]
    %v249 = vld [vmem:[#allocation2 + $0xa10] sm:$0xff]
    %v250 = vld [vmem:[#allocation2 + $0xa18] sm:$0xff]
    %v251 = vld [vmem:[#allocation2 + $0xa80] sm:$0xff]
    %v252 = vld [vmem:[#allocation2 + $0xa88] sm:$0xff]
    %v253 = vld [vmem:[#allocation2 + $0xa90] sm:$0xff]
    %v254 = vld [vmem:[#allocation2 + $0xa98] sm:$0xff]
    %v255 = vld [vmem:[#allocation2 + $0xb00] sm:$0xff]
    %v256 = vld [vmem:[#allocation2 + $0xb08] sm:$0xff]
    %v257 = vld [vmem:[#allocation2 + $0xb10] sm:$0xff]
    %v258 = vld [vmem:[#allocation2 + $0xb18] sm:$0xff]
    %v259 = vld [vmem:[#allocation2 + $0xb80] sm:$0xff]
    %v260 = vld [vmem:[#allocation2 + $0xb88] sm:$0xff]
    %v261 = vld [vmem:[#allocation2 + $0xb90] sm:$0xff]
    %v262 = vld [vmem:[#allocation2 + $0xb98] sm:$0xff]
    %v263 = vld [vmem:[#allocation2 + $0xc00] sm:$0xff]
    %v264 = vld [vmem:[#allocation2 + $0xc08] sm:$0xff]
    %v265 = vld [vmem:[#allocation2 + $0xc10] sm:$0xff]
    %v266 = vld [vmem:[#allocation2 + $0xc18] sm:$0xff]
    %v267 = vld [vmem:[#allocation2 + $0xc80] sm:$0xff]
    %v268 = vld [vmem:[#allocation2 + $0xc88] sm:$0xff]
    %v269 = vld [vmem:[#allocation2 + $0xc90] sm:$0xff]
    %v270 = vld [vmem:[#allocation2 + $0xc98] sm:$0xff]
    %v271 = vld [vmem:[#allocation2 + $0xd00] sm:$0xff]
    %v272 = vld [vmem:[#allocation2 + $0xd08] sm:$0xff]
    %v273 = vld [vmem:[#allocation2 + $0xd10] sm:$0xff]
    %v274 = vld [vmem:[#allocation2 + $0xd18] sm:$0xff]
    %v275 = vld [vmem:[#allocation2 + $0xd80] sm:$0xff]
    %v276 = vld [vmem:[#allocation2 + $0xd88] sm:$0xff]
    %v277 = vld [vmem:[#allocation2 + $0xd90] sm:$0xff]
    %v278 = vld [vmem:[#allocation2 + $0xd98] sm:$0xff]
    %v279 = vld [vmem:[#allocation2 + $0xe00] sm:$0xff]
    %v280 = vld [vmem:[#allocation2 + $0xe08] sm:$0xff]
    %v281 = vld [vmem:[#allocation2 + $0xe10] sm:$0xff]
    %v282 = vld [vmem:[#allocation2 + $0xe18] sm:$0xff]
    %v283 = vld [vmem:[#allocation2 + $0xe80] sm:$0xff]
    %v284 = vld [vmem:[#allocation2 + $0xe88] sm:$0xff]
    %v285 = vld [vmem:[#allocation2 + $0xe90] sm:$0xff]
    %v286 = vld [vmem:[#allocation2 + $0xe98] sm:$0xff]
    %v287 = vld [vmem:[#allocation2 + $0xf00] sm:$0xff]
    %v288 = vld [vmem:[#allocation2 + $0xf08] sm:$0xff]
    %v289 = vld [vmem:[#allocation2 + $0xf10] sm:$0xff]
    %v290 = vld [vmem:[#allocation2 + $0xf18] sm:$0xff]
    %v291 = vld [vmem:[#allocation2 + $0xf80] sm:$0xff]
    %v292 = vld [vmem:[#allocation2 + $0xf88] sm:$0xff]
    %v293 = vld [vmem:[#allocation2 + $0xf90] sm:$0xff]
    %v294 = vld [vmem:[#allocation2 + $0xf98] sm:$0xff]
    %v297 = vunpack.c.l.s4 1966171168
    %v298 = vunpack.c.0.s8 %v297
    %v299 = vlaneseq
    %v300 = vshrl.u32 %v299, 7
    %v301 = vsub.s32 %v298, %v300
    %v302 = vrot.slane %v166, %v301
    %v303 = vcombine.high %v302, %v302
    %v305 = vunpack.c.l.s4 1966171168
    %v306 = vunpack.c.0.s8 %v305
    %v307 = vlaneseq
    %v308 = vshrl.u32 %v307, 7
    %v309 = vsub.s32 %v306, %v308
    %v310 = vrot.slane %v302, %v309
    %v312 = vunpack.c.l.s4 1966171168
    %v313 = vunpack.c.0.s8 %v312
    %v314 = vlaneseq
    %v315 = vshrl.u32 %v314, 7
    %v316 = vsub.s32 %v313, %v315
    %v317 = vrot.slane %v303, %v316
    %v448 = vunpack.c.l.b16 %v167
    %v449 = vunpack.c.h.b16 %v167
    %v450 = vunpack.c.l.b16 %v168
    %v451 = vunpack.c.h.b16 %v168
    %v452 = vunpack.c.l.b16 %v169
    %v453 = vunpack.c.h.b16 %v169
    %v454 = vunpack.c.l.b16 %v170
    %v455 = vunpack.c.h.b16 %v170
    %v456 = vunpack.c.l.b16 %v171
    %v457 = vunpack.c.h.b16 %v171
    %v458 = vunpack.c.l.b16 %v172
    %v459 = vunpack.c.h.b16 %v172
    %v460 = vunpack.c.l.b16 %v173
    %v461 = vunpack.c.h.b16 %v173
    %v462 = vunpack.c.l.b16 %v174
    %v463 = vunpack.c.h.b16 %v174
    %v464 = vunpack.c.l.b16 %v175
    %v465 = vunpack.c.h.b16 %v175
    %v466 = vunpack.c.l.b16 %v176
    %v467 = vunpack.c.h.b16 %v176
    %v468 = vunpack.c.l.b16 %v177
    %v469 = vunpack.c.h.b16 %v177
    %v470 = vunpack.c.l.b16 %v178
    %v471 = vunpack.c.h.b16 %v178
    %v472 = vunpack.c.l.b16 %v179
    %v473 = vunpack.c.h.b16 %v179
    %v474 = vunpack.c.l.b16 %v180
    %v475 = vunpack.c.h.b16 %v180
    %v476 = vunpack.c.l.b16 %v181
    %v477 = vunpack.c.h.b16 %v181
    %v478 = vunpack.c.l.b16 %v182
    %v479 = vunpack.c.h.b16 %v182
    %v480 = vunpack.c.l.b16 %v183
    %v481 = vunpack.c.h.b16 %v183
    %v482 = vunpack.c.l.b16 %v184
    %v483 = vunpack.c.h.b16 %v184
    %v484 = vunpack.c.l.b16 %v185
    %v485 = vunpack.c.h.b16 %v185
    %v486 = vunpack.c.l.b16 %v186
    %v487 = vunpack.c.h.b16 %v186
    %v488 = vunpack.c.l.b16 %v187
    %v489 = vunpack.c.h.b16 %v187
    %v490 = vunpack.c.l.b16 %v188
    %v491 = vunpack.c.h.b16 %v188
    %v492 = vunpack.c.l.b16 %v189
    %v493 = vunpack.c.h.b16 %v189
    %v494 = vunpack.c.l.b16 %v190
    %v495 = vunpack.c.h.b16 %v190
    %v496 = vunpack.c.l.b16 %v191
    %v497 = vunpack.c.h.b16 %v191
    %v498 = vunpack.c.l.b16 %v192
    %v499 = vunpack.c.h.b16 %v192
    %v500 = vunpack.c.l.b16 %v193
    %v501 = vunpack.c.h.b16 %v193
    %v502 = vunpack.c.l.b16 %v194
    %v503 = vunpack.c.h.b16 %v194
    %v504 = vunpack.c.l.b16 %v195
    %v505 = vunpack.c.h.b16 %v195
    %v506 = vunpack.c.l.b16 %v196
    %v507 = vunpack.c.h.b16 %v196
    %v508 = vunpack.c.l.b16 %v197
    %v509 = vunpack.c.h.b16 %v197
    %v510 = vunpack.c.l.b16 %v198
    %v511 = vunpack.c.h.b16 %v198
    %v512 = vunpack.c.l.b16 %v199
    %v513 = vunpack.c.h.b16 %v199
    %v514 = vunpack.c.l.b16 %v200
    %v515 = vunpack.c.h.b16 %v200
    %v516 = vunpack.c.l.b16 %v201
    %v517 = vunpack.c.h.b16 %v201
    %v518 = vunpack.c.l.b16 %v202
    %v519 = vunpack.c.h.b16 %v202
    %v520 = vunpack.c.l.b16 %v203
    %v521 = vunpack.c.h.b16 %v203
    %v522 = vunpack.c.l.b16 %v204
    %v523 = vunpack.c.h.b16 %v204
    %v524 = vunpack.c.l.b16 %v205
    %v525 = vunpack.c.h.b16 %v205
    %v526 = vunpack.c.l.b16 %v206
    %v527 = vunpack.c.h.b16 %v206
    %v528 = vunpack.c.l.b16 %v207
    %v529 = vunpack.c.h.b16 %v207
    %v530 = vunpack.c.l.b16 %v208
    %v531 = vunpack.c.h.b16 %v208
    %v532 = vunpack.c.l.b16 %v209
    %v533 = vunpack.c.h.b16 %v209
    %v534 = vunpack.c.l.b16 %v210
    %v535 = vunpack.c.h.b16 %v210
    %v536 = vunpack.c.l.b16 %v211
    %v537 = vunpack.c.h.b16 %v211
    %v538 = vunpack.c.l.b16 %v212
    %v539 = vunpack.c.h.b16 %v212
    %v540 = vunpack.c.l.b16 %v213
    %v541 = vunpack.c.h.b16 %v213
    %v542 = vunpack.c.l.b16 %v214
    %v543 = vunpack.c.h.b16 %v214
    %v544 = vunpack.c.l.b16 %v215
    %v545 = vunpack.c.h.b16 %v215
    %v546 = vunpack.c.l.b16 %v216
    %v547 = vunpack.c.h.b16 %v216
    %v548 = vunpack.c.l.b16 %v217
    %v549 = vunpack.c.h.b16 %v217
    %v550 = vunpack.c.l.b16 %v218
    %v551 = vunpack.c.h.b16 %v218
    %v552 = vunpack.c.l.b16 %v219
    %v553 = vunpack.c.h.b16 %v219
    %v554 = vunpack.c.l.b16 %v220
    %v555 = vunpack.c.h.b16 %v220
    %v556 = vunpack.c.l.b16 %v221
    %v557 = vunpack.c.h.b16 %v221
    %v558 = vunpack.c.l.b16 %v222
    %v559 = vunpack.c.h.b16 %v222
    %v560 = vunpack.c.l.b16 %v223
    %v561 = vunpack.c.h.b16 %v223
    %v562 = vunpack.c.l.b16 %v224
    %v563 = vunpack.c.h.b16 %v224
    %v564 = vunpack.c.l.b16 %v225
    %v565 = vunpack.c.h.b16 %v225
    %v566 = vunpack.c.l.b16 %v226
    %v567 = vunpack.c.h.b16 %v226
    %v568 = vunpack.c.l.b16 %v227
    %v569 = vunpack.c.h.b16 %v227
    %v570 = vunpack.c.l.b16 %v228
    %v571 = vunpack.c.h.b16 %v228
    %v572 = vunpack.c.l.b16 %v229
    %v573 = vunpack.c.h.b16 %v229
    %v574 = vunpack.c.l.b16 %v230
    %v575 = vunpack.c.h.b16 %v230
    %v576 = vunpack.c.l.b16 %v231
    %v577 = vunpack.c.h.b16 %v231
    %v578 = vunpack.c.l.b16 %v232
    %v579 = vunpack.c.h.b16 %v232
    %v580 = vunpack.c.l.b16 %v233
    %v581 = vunpack.c.h.b16 %v233
    %v582 = vunpack.c.l.b16 %v234
    %v583 = vunpack.c.h.b16 %v234
    %v584 = vunpack.c.l.b16 %v235
    %v585 = vunpack.c.h.b16 %v235
    %v586 = vunpack.c.l.b16 %v236
    %v587 = vunpack.c.h.b16 %v236
    %v588 = vunpack.c.l.b16 %v237
    %v589 = vunpack.c.h.b16 %v237
    %v590 = vunpack.c.l.b16 %v238
    %v591 = vunpack.c.h.b16 %v238
    %v592 = vunpack.c.l.b16 %v239
    %v593 = vunpack.c.h.b16 %v239
    %v594 = vunpack.c.l.b16 %v240
    %v595 = vunpack.c.h.b16 %v240
    %v596 = vunpack.c.l.b16 %v241
    %v597 = vunpack.c.h.b16 %v241
    %v598 = vunpack.c.l.b16 %v242
    %v599 = vunpack.c.h.b16 %v242
    %v600 = vunpack.c.l.b16 %v243
    %v601 = vunpack.c.h.b16 %v243
    %v602 = vunpack.c.l.b16 %v244
    %v603 = vunpack.c.h.b16 %v244
    %v604 = vunpack.c.l.b16 %v245
    %v605 = vunpack.c.h.b16 %v245
    %v606 = vunpack.c.l.b16 %v246
    %v607 = vunpack.c.h.b16 %v246
    %v608 = vunpack.c.l.b16 %v247
    %v609 = vunpack.c.h.b16 %v247
    %v610 = vunpack.c.l.b16 %v248
    %v611 = vunpack.c.h.b16 %v248
    %v612 = vunpack.c.l.b16 %v249
    %v613 = vunpack.c.h.b16 %v249
    %v614 = vunpack.c.l.b16 %v250
    %v615 = vunpack.c.h.b16 %v250
    %v616 = vunpack.c.l.b16 %v251
    %v617 = vunpack.c.h.b16 %v251
    %v618 = vunpack.c.l.b16 %v252
    %v619 = vunpack.c.h.b16 %v252
    %v620 = vunpack.c.l.b16 %v253
    %v621 = vunpack.c.h.b16 %v253
    %v622 = vunpack.c.l.b16 %v254
    %v623 = vunpack.c.h.b16 %v254
    %v624 = vunpack.c.l.b16 %v255
    %v625 = vunpack.c.h.b16 %v255
    %v626 = vunpack.c.l.b16 %v256
    %v627 = vunpack.c.h.b16 %v256
    %v628 = vunpack.c.l.b16 %v257
    %v629 = vunpack.c.h.b16 %v257
    %v630 = vunpack.c.l.b16 %v258
    %v631 = vunpack.c.h.b16 %v258
    %v632 = vunpack.c.l.b16 %v259
    %v633 = vunpack.c.h.b16 %v259
    %v634 = vunpack.c.l.b16 %v260
    %v635 = vunpack.c.h.b16 %v260
    %v636 = vunpack.c.l.b16 %v261
    %v637 = vunpack.c.h.b16 %v261
    %v638 = vunpack.c.l.b16 %v262
    %v639 = vunpack.c.h.b16 %v262
    %v640 = vunpack.c.l.b16 %v263
    %v641 = vunpack.c.h.b16 %v263
    %v642 = vunpack.c.l.b16 %v264
    %v643 = vunpack.c.h.b16 %v264
    %v644 = vunpack.c.l.b16 %v265
    %v645 = vunpack.c.h.b16 %v265
    %v646 = vunpack.c.l.b16 %v266
    %v647 = vunpack.c.h.b16 %v266
    %v648 = vunpack.c.l.b16 %v267
    %v649 = vunpack.c.h.b16 %v267
    %v650 = vunpack.c.l.b16 %v268
    %v651 = vunpack.c.h.b16 %v268
    %v652 = vunpack.c.l.b16 %v269
    %v653 = vunpack.c.h.b16 %v269
    %v654 = vunpack.c.l.b16 %v270
    %v655 = vunpack.c.h.b16 %v270
    %v656 = vunpack.c.l.b16 %v271
    %v657 = vunpack.c.h.b16 %v271
    %v658 = vunpack.c.l.b16 %v272
    %v659 = vunpack.c.h.b16 %v272
    %v660 = vunpack.c.l.b16 %v273
    %v661 = vunpack.c.h.b16 %v273
    %v662 = vunpack.c.l.b16 %v274
    %v663 = vunpack.c.h.b16 %v274
    %v664 = vunpack.c.l.b16 %v275
    %v665 = vunpack.c.h.b16 %v275
    %v666 = vunpack.c.l.b16 %v276
    %v667 = vunpack.c.h.b16 %v276
    %v668 = vunpack.c.l.b16 %v277
    %v669 = vunpack.c.h.b16 %v277
    %v670 = vunpack.c.l.b16 %v278
    %v671 = vunpack.c.h.b16 %v278
    %v672 = vunpack.c.l.b16 %v279
    %v673 = vunpack.c.h.b16 %v279
    %v674 = vunpack.c.l.b16 %v280
    %v675 = vunpack.c.h.b16 %v280
    %v676 = vunpack.c.l.b16 %v281
    %v677 = vunpack.c.h.b16 %v281
    %v678 = vunpack.c.l.b16 %v282
    %v679 = vunpack.c.h.b16 %v282
    %v680 = vunpack.c.l.b16 %v283
    %v681 = vunpack.c.h.b16 %v283
    %v682 = vunpack.c.l.b16 %v284
    %v683 = vunpack.c.h.b16 %v284
    %v684 = vunpack.c.l.b16 %v285
    %v685 = vunpack.c.h.b16 %v285
    %v686 = vunpack.c.l.b16 %v286
    %v687 = vunpack.c.h.b16 %v286
    %v688 = vunpack.c.l.b16 %v287
    %v689 = vunpack.c.h.b16 %v287
    %v690 = vunpack.c.l.b16 %v288
    %v691 = vunpack.c.h.b16 %v288
    %v692 = vunpack.c.l.b16 %v289
    %v693 = vunpack.c.h.b16 %v289
    %v694 = vunpack.c.l.b16 %v290
    %v695 = vunpack.c.h.b16 %v290
    %v696 = vunpack.c.l.b16 %v291
    %v697 = vunpack.c.h.b16 %v291
    %v698 = vunpack.c.l.b16 %v292
    %v699 = vunpack.c.h.b16 %v292
    %v700 = vunpack.c.l.b16 %v293
    %v701 = vunpack.c.h.b16 %v293
    %v702 = vunpack.c.l.b16 %v294
    %v703 = vunpack.c.h.b16 %v294
    %v704 = vpack.c.b16 %v456, %v448
    %v705 = vpack.c.b16 %v457, %v449
    %v706 = vpack.c.b16 %v458, %v450
    %v707 = vpack.c.b16 %v459, %v451
    %v708 = vpack.c.b16 %v460, %v452
    %v709 = vpack.c.b16 %v461, %v453
    %v710 = vpack.c.b16 %v462, %v454
    %v711 = vpack.c.b16 %v463, %v455
    %v712 = vpack.c.b16 %v472, %v464
    %v713 = vpack.c.b16 %v473, %v465
    %v714 = vpack.c.b16 %v474, %v466
    %v715 = vpack.c.b16 %v475, %v467
    %v716 = vpack.c.b16 %v476, %v468
    %v717 = vpack.c.b16 %v477, %v469
    %v718 = vpack.c.b16 %v478, %v470
    %v719 = vpack.c.b16 %v479, %v471
    %v720 = vpack.c.b16 %v488, %v480
    %v721 = vpack.c.b16 %v489, %v481
    %v722 = vpack.c.b16 %v490, %v482
    %v723 = vpack.c.b16 %v491, %v483
    %v724 = vpack.c.b16 %v492, %v484
    %v725 = vpack.c.b16 %v493, %v485
    %v726 = vpack.c.b16 %v494, %v486
    %v727 = vpack.c.b16 %v495, %v487
    %v728 = vpack.c.b16 %v504, %v496
    %v729 = vpack.c.b16 %v505, %v497
    %v730 = vpack.c.b16 %v506, %v498
    %v731 = vpack.c.b16 %v507, %v499
    %v732 = vpack.c.b16 %v508, %v500
    %v733 = vpack.c.b16 %v509, %v501
    %v734 = vpack.c.b16 %v510, %v502
    %v735 = vpack.c.b16 %v511, %v503
    %v736 = vpack.c.b16 %v520, %v512
    %v737 = vpack.c.b16 %v521, %v513
    %v738 = vpack.c.b16 %v522, %v514
    %v739 = vpack.c.b16 %v523, %v515
    %v740 = vpack.c.b16 %v524, %v516
    %v741 = vpack.c.b16 %v525, %v517
    %v742 = vpack.c.b16 %v526, %v518
    %v743 = vpack.c.b16 %v527, %v519
    %v744 = vpack.c.b16 %v536, %v528
    %v745 = vpack.c.b16 %v537, %v529
    %v746 = vpack.c.b16 %v538, %v530
    %v747 = vpack.c.b16 %v539, %v531
    %v748 = vpack.c.b16 %v540, %v532
    %v749 = vpack.c.b16 %v541, %v533
    %v750 = vpack.c.b16 %v542, %v534
    %v751 = vpack.c.b16 %v543, %v535
    %v752 = vpack.c.b16 %v552, %v544
    %v753 = vpack.c.b16 %v553, %v545
    %v754 = vpack.c.b16 %v554, %v546
    %v755 = vpack.c.b16 %v555, %v547
    %v756 = vpack.c.b16 %v556, %v548
    %v757 = vpack.c.b16 %v557, %v549
    %v758 = vpack.c.b16 %v558, %v550
    %v759 = vpack.c.b16 %v559, %v551
    %v760 = vpack.c.b16 %v568, %v560
    %v761 = vpack.c.b16 %v569, %v561
    %v762 = vpack.c.b16 %v570, %v562
    %v763 = vpack.c.b16 %v571, %v563
    %v764 = vpack.c.b16 %v572, %v564
    %v765 = vpack.c.b16 %v573, %v565
    %v766 = vpack.c.b16 %v574, %v566
    %v767 = vpack.c.b16 %v575, %v567
    %v768 = vpack.c.b16 %v584, %v576
    %v769 = vpack.c.b16 %v585, %v577
    %v770 = vpack.c.b16 %v586, %v578
    %v771 = vpack.c.b16 %v587, %v579
    %v772 = vpack.c.b16 %v588, %v580
    %v773 = vpack.c.b16 %v589, %v581
    %v774 = vpack.c.b16 %v590, %v582
    %v775 = vpack.c.b16 %v591, %v583
    %v776 = vpack.c.b16 %v600, %v592
    %v777 = vpack.c.b16 %v601, %v593
    %v778 = vpack.c.b16 %v602, %v594
    %v779 = vpack.c.b16 %v603, %v595
    %v780 = vpack.c.b16 %v604, %v596
    %v781 = vpack.c.b16 %v605, %v597
    %v782 = vpack.c.b16 %v606, %v598
    %v783 = vpack.c.b16 %v607, %v599
    %v784 = vpack.c.b16 %v616, %v608
    %v785 = vpack.c.b16 %v617, %v609
    %v786 = vpack.c.b16 %v618, %v610
    %v787 = vpack.c.b16 %v619, %v611
    %v788 = vpack.c.b16 %v620, %v612
    %v789 = vpack.c.b16 %v621, %v613
    %v790 = vpack.c.b16 %v622, %v614
    %v791 = vpack.c.b16 %v623, %v615
    %v792 = vpack.c.b16 %v632, %v624
    %v793 = vpack.c.b16 %v633, %v625
    %v794 = vpack.c.b16 %v634, %v626
    %v795 = vpack.c.b16 %v635, %v627
    %v796 = vpack.c.b16 %v636, %v628
    %v797 = vpack.c.b16 %v637, %v629
    %v798 = vpack.c.b16 %v638, %v630
    %v799 = vpack.c.b16 %v639, %v631
    %v800 = vpack.c.b16 %v648, %v640
    %v801 = vpack.c.b16 %v649, %v641
    %v802 = vpack.c.b16 %v650, %v642
    %v803 = vpack.c.b16 %v651, %v643
    %v804 = vpack.c.b16 %v652, %v644
    %v805 = vpack.c.b16 %v653, %v645
    %v806 = vpack.c.b16 %v654, %v646
    %v807 = vpack.c.b16 %v655, %v647
    %v808 = vpack.c.b16 %v664, %v656
    %v809 = vpack.c.b16 %v665, %v657
    %v810 = vpack.c.b16 %v666, %v658
    %v811 = vpack.c.b16 %v667, %v659
    %v812 = vpack.c.b16 %v668, %v660
    %v813 = vpack.c.b16 %v669, %v661
    %v814 = vpack.c.b16 %v670, %v662
    %v815 = vpack.c.b16 %v671, %v663
    %v816 = vpack.c.b16 %v680, %v672
    %v817 = vpack.c.b16 %v681, %v673
    %v818 = vpack.c.b16 %v682, %v674
    %v819 = vpack.c.b16 %v683, %v675
    %v820 = vpack.c.b16 %v684, %v676
    %v821 = vpack.c.b16 %v685, %v677
    %v822 = vpack.c.b16 %v686, %v678
    %v823 = vpack.c.b16 %v687, %v679
    %v824 = vpack.c.b16 %v696, %v688
    %v825 = vpack.c.b16 %v697, %v689
    %v826 = vpack.c.b16 %v698, %v690
    %v827 = vpack.c.b16 %v699, %v691
    %v828 = vpack.c.b16 %v700, %v692
    %v829 = vpack.c.b16 %v701, %v693
    %v830 = vpack.c.b16 %v702, %v694
    %v831 = vpack.c.b16 %v703, %v695
    %960 = vmatprep.subr.bf16.mxu0 %v761
    %961 = vmatpush1.bf16.msra.mxu0 %v760
    %962 = vmatprep.subr.bf16.mxu0 %v753
    %963 = vmatpush1.bf16.msra.mxu0 %v752
    %964 = vmatprep.subr.bf16.mxu0 %v745
    %965 = vmatpush1.bf16.msra.mxu0 %v744
    %966 = vmatprep.subr.bf16.mxu0 %v737
    %967 = vmatpush1.bf16.msra.mxu0 %v736
    %968 = vmatprep.subr.bf16.mxu0 %v729
    %969 = vmatpush1.bf16.msra.mxu0 %v728
    %970 = vmatprep.subr.bf16.mxu0 %v721
    %971 = vmatpush1.bf16.msra.mxu0 %v720
    %972 = vmatprep.subr.bf16.mxu0 %v713
    %973 = vmatpush1.bf16.msra.mxu0 %v712
    %974 = vmatprep.subr.bf16.mxu0 %v705
    %975 = vmatpush1.bf16.msra.mxu0 %v704
    %976 = vmatprep.subr.bf16.mxu0 %v825
    %977 = vmatpush2.bf16.msra.mxu0 %v824
    %978 = vmatprep.subr.bf16.mxu0 %v817
    %979 = vmatpush2.bf16.msra.mxu0 %v816
    %980 = vmatprep.subr.bf16.mxu0 %v809
    %981 = vmatpush2.bf16.msra.mxu0 %v808
    %982 = vmatprep.subr.bf16.mxu0 %v801
    %983 = vmatpush2.bf16.msra.mxu0 %v800
    %984 = vmatprep.subr.bf16.mxu0 %v793
    %985 = vmatpush2.bf16.msra.mxu0 %v792
    %986 = vmatprep.subr.bf16.mxu0 %v785
    %987 = vmatpush2.bf16.msra.mxu0 %v784
    %988 = vmatprep.subr.bf16.mxu0 %v777
    %989 = vmatpush2.bf16.msra.mxu0 %v776
    %990 = vmatprep.subr.bf16.mxu0 %v769
    %991 = vmatpush2.bf16.msra.mxu0 %v768
    %992 = vmatprep.mubr.bf16.mxu0 %v317
    %993 = vmatmul.mubr.bf16.gmra.mxu0 %v310
    %v994 = vpop.f32.mrf.mxu0
    %v995 = vadd.f32 0.0, %v994
    %v996 = vpop.f32.mrf.mxu0
    %v997 = vadd.f32 0.0, %v996
    %v998 = vpop.f32.mrf.mxu0
    %v999 = vpop.f32.mrf.mxu0
    %1000 = vdwg.mxu0
    %1001 = vmatprep.subr.bf16.mxu0 %v763
    %1002 = vmatpush1.bf16.msra.mxu0 %v762
    %1003 = vmatprep.subr.bf16.mxu0 %v755
    %1004 = vmatpush1.bf16.msra.mxu0 %v754
    %1005 = vmatprep.subr.bf16.mxu0 %v747
    %1006 = vmatpush1.bf16.msra.mxu0 %v746
    %1007 = vmatprep.subr.bf16.mxu0 %v739
    %1008 = vmatpush1.bf16.msra.mxu0 %v738
    %1009 = vmatprep.subr.bf16.mxu0 %v731
    %1010 = vmatpush1.bf16.msra.mxu0 %v730
    %1011 = vmatprep.subr.bf16.mxu0 %v723
    %1012 = vmatpush1.bf16.msra.mxu0 %v722
    %1013 = vmatprep.subr.bf16.mxu0 %v715
    %1014 = vmatpush1.bf16.msra.mxu0 %v714
    %1015 = vmatprep.subr.bf16.mxu0 %v707
    %1016 = vmatpush1.bf16.msra.mxu0 %v706
    %1017 = vmatprep.subr.bf16.mxu0 %v827
    %1018 = vmatpush2.bf16.msra.mxu0 %v826
    %1019 = vmatprep.subr.bf16.mxu0 %v819
    %1020 = vmatpush2.bf16.msra.mxu0 %v818
    %1021 = vmatprep.subr.bf16.mxu0 %v811
    %1022 = vmatpush2.bf16.msra.mxu0 %v810
    %1023 = vmatprep.subr.bf16.mxu0 %v803
    %1024 = vmatpush2.bf16.msra.mxu0 %v802
    %1025 = vmatprep.subr.bf16.mxu0 %v795
    %1026 = vmatpush2.bf16.msra.mxu0 %v794
    %1027 = vmatprep.subr.bf16.mxu0 %v787
    %1028 = vmatpush2.bf16.msra.mxu0 %v786
    %1029 = vmatprep.subr.bf16.mxu0 %v779
    %1030 = vmatpush2.bf16.msra.mxu0 %v778
    %1031 = vmatprep.subr.bf16.mxu0 %v771
    %1032 = vmatpush2.bf16.msra.mxu0 %v770
    %1033 = vmatprep.mubr.bf16.mxu0 %v317
    %1034 = vmatmul.mubr.bf16.gmra.mxu0 %v310
    %v1035 = vpop.f32.mrf.mxu0
    %v1036 = vadd.f32 0.0, %v1035
    %v1037 = vpop.f32.mrf.mxu0
    %v1038 = vadd.f32 0.0, %v1037
    %v1039 = vpop.f32.mrf.mxu0
    %v1040 = vpop.f32.mrf.mxu0
    %1041 = vdwg.mxu0
    %1042 = vmatprep.subr.bf16.mxu0 %v765
    %1043 = vmatpush1.bf16.msra.mxu0 %v764
    %1044 = vmatprep.subr.bf16.mxu0 %v757
    %1045 = vmatpush1.bf16.msra.mxu0 %v756
    %1046 = vmatprep.subr.bf16.mxu0 %v749
    %1047 = vmatpush1.bf16.msra.mxu0 %v748
    %1048 = vmatprep.subr.bf16.mxu0 %v741
    %1049 = vmatpush1.bf16.msra.mxu0 %v740
    %1050 = vmatprep.subr.bf16.mxu0 %v733
    %1051 = vmatpush1.bf16.msra.mxu0 %v732
    %1052 = vmatprep.subr.bf16.mxu0 %v725
    %1053 = vmatpush1.bf16.msra.mxu0 %v724
    %1054 = vmatprep.subr.bf16.mxu0 %v717
    %1055 = vmatpush1.bf16.msra.mxu0 %v716
    %1056 = vmatprep.subr.bf16.mxu0 %v709
    %1057 = vmatpush1.bf16.msra.mxu0 %v708
    %1058 = vmatprep.subr.bf16.mxu0 %v829
    %1059 = vmatpush2.bf16.msra.mxu0 %v828
    %1060 = vmatprep.subr.bf16.mxu0 %v821
    %1061 = vmatpush2.bf16.msra.mxu0 %v820
    %1062 = vmatprep.subr.bf16.mxu0 %v813
    %1063 = vmatpush2.bf16.msra.mxu0 %v812
    %1064 = vmatprep.subr.bf16.mxu0 %v805
    %1065 = vmatpush2.bf16.msra.mxu0 %v804
    %1066 = vmatprep.subr.bf16.mxu0 %v797
    %1067 = vmatpush2.bf16.msra.mxu0 %v796
    %1068 = vmatprep.subr.bf16.mxu0 %v789
    %1069 = vmatpush2.bf16.msra.mxu0 %v788
    %1070 = vmatprep.subr.bf16.mxu0 %v781
    %1071 = vmatpush2.bf16.msra.mxu0 %v780
    %1072 = vmatprep.subr.bf16.mxu0 %v773
    %1073 = vmatpush2.bf16.msra.mxu0 %v772
    %1074 = vmatprep.mubr.bf16.mxu0 %v317
    %1075 = vmatmul.mubr.bf16.gmra.mxu0 %v310
    %v1076 = vpop.f32.mrf.mxu0
    %v1077 = vadd.f32 0.0, %v1076
    %v1078 = vpop.f32.mrf.mxu0
    %v1079 = vadd.f32 0.0, %v1078
    %v1080 = vpop.f32.mrf.mxu0
    %v1081 = vpop.f32.mrf.mxu0
    %1082 = vdwg.mxu0
    %1083 = vmatprep.subr.bf16.mxu0 %v767
    %1084 = vmatpush1.bf16.msra.mxu0 %v766
    %1085 = vmatprep.subr.bf16.mxu0 %v759
    %1086 = vmatpush1.bf16.msra.mxu0 %v758
    %1087 = vmatprep.subr.bf16.mxu0 %v751
    %1088 = vmatpush1.bf16.msra.mxu0 %v750
    %1089 = vmatprep.subr.bf16.mxu0 %v743
    %1090 = vmatpush1.bf16.msra.mxu0 %v742
    %1091 = vmatprep.subr.bf16.mxu0 %v735
    %1092 = vmatpush1.bf16.msra.mxu0 %v734
    %1093 = vmatprep.subr.bf16.mxu0 %v727
    %1094 = vmatpush1.bf16.msra.mxu0 %v726
    %1095 = vmatprep.subr.bf16.mxu0 %v719
    %1096 = vmatpush1.bf16.msra.mxu0 %v718
    %1097 = vmatprep.subr.bf16.mxu0 %v711
    %1098 = vmatpush1.bf16.msra.mxu0 %v710
    %1099 = vmatprep.subr.bf16.mxu0 %v831
    %1100 = vmatpush2.bf16.msra.mxu0 %v830
    %1101 = vmatprep.subr.bf16.mxu0 %v823
    %1102 = vmatpush2.bf16.msra.mxu0 %v822
    %1103 = vmatprep.subr.bf16.mxu0 %v815
    %1104 = vmatpush2.bf16.msra.mxu0 %v814
    %1105 = vmatprep.subr.bf16.mxu0 %v807
    %1106 = vmatpush2.bf16.msra.mxu0 %v806
    %1107 = vmatprep.subr.bf16.mxu0 %v799
    %1108 = vmatpush2.bf16.msra.mxu0 %v798
    %1109 = vmatprep.subr.bf16.mxu0 %v791
    %1110 = vmatpush2.bf16.msra.mxu0 %v790
    %1111 = vmatprep.subr.bf16.mxu0 %v783
    %1112 = vmatpush2.bf16.msra.mxu0 %v782
    %1113 = vmatprep.subr.bf16.mxu0 %v775
    %1114 = vmatpush2.bf16.msra.mxu0 %v774
    %1115 = vmatprep.mubr.bf16.mxu0 %v317
    %1116 = vmatmul.mubr.bf16.gmra.mxu0 %v310
    %v1117 = vpop.f32.mrf.mxu0
    %v1118 = vadd.f32 0.0, %v1117
    %v1119 = vpop.f32.mrf.mxu0
    %v1120 = vadd.f32 0.0, %v1119
    %v1121 = vpop.f32.mrf.mxu0
    %v1122 = vpop.f32.mrf.mxu0
    %1123 = vdwg.mxu0
    %v1124 = vld [vmem:[#allocation2 + $0x20] sm:$0xff]
    %v1125 = vld [vmem:[#allocation2 + $0x28] sm:$0xff]
    %v1126 = vld [vmem:[#allocation2 + $0x30] sm:$0xff]
    %v1127 = vld [vmem:[#allocation2 + $0x38] sm:$0xff]
    %v1128 = vld [vmem:[#allocation2 + $0xa0] sm:$0xff]
    %v1129 = vld [vmem:[#allocation2 + $0xa8] sm:$0xff]
    %v1130 = vld [vmem:[#allocation2 + $0xb0] sm:$0xff]
    %v1131 = vld [vmem:[#allocation2 + $0xb8] sm:$0xff]
    %v1132 = vld [vmem:[#allocation2 + $0x120] sm:$0xff]
    %v1133 = vld [vmem:[#allocation2 + $0x128] sm:$0xff]
    %v1134 = vld [vmem:[#allocation2 + $0x130] sm:$0xff]
    %v1135 = vld [vmem:[#allocation2 + $0x138] sm:$0xff]
    %v1136 = vld [vmem:[#allocation2 + $0x1a0] sm:$0xff]
    %v1137 = vld [vmem:[#allocation2 + $0x1a8] sm:$0xff]
    %v1138 = vld [vmem:[#allocation2 + $0x1b0] sm:$0xff]
    %v1139 = vld [vmem:[#allocation2 + $0x1b8] sm:$0xff]
    %v1140 = vld [vmem:[#allocation2 + $0x220] sm:$0xff]
    %v1141 = vld [vmem:[#allocation2 + $0x228] sm:$0xff]
    %v1142 = vld [vmem:[#allocation2 + $0x230] sm:$0xff]
    %v1143 = vld [vmem:[#allocation2 + $0x238] sm:$0xff]
    %v1144 = vld [vmem:[#allocation2 + $0x2a0] sm:$0xff]
    %v1145 = vld [vmem:[#allocation2 + $0x2a8] sm:$0xff]
    %v1146 = vld [vmem:[#allocation2 + $0x2b0] sm:$0xff]
    %v1147 = vld [vmem:[#allocation2 + $0x2b8] sm:$0xff]
    %v1148 = vld [vmem:[#allocation2 + $0x320] sm:$0xff]
    %v1149 = vld [vmem:[#allocation2 + $0x328] sm:$0xff]
    %v1150 = vld [vmem:[#allocation2 + $0x330] sm:$0xff]
    %v1151 = vld [vmem:[#allocation2 + $0x338] sm:$0xff]
    %v1152 = vld [vmem:[#allocation2 + $0x3a0] sm:$0xff]
    %v1153 = vld [vmem:[#allocation2 + $0x3a8] sm:$0xff]
    %v1154 = vld [vmem:[#allocation2 + $0x3b0] sm:$0xff]
    %v1155 = vld [vmem:[#allocation2 + $0x3b8] sm:$0xff]
    %v1156 = vld [vmem:[#allocation2 + $0x420] sm:$0xff]
    %v1157 = vld [vmem:[#allocation2 + $0x428] sm:$0xff]
    %v1158 = vld [vmem:[#allocation2 + $0x430] sm:$0xff]
    %v1159 = vld [vmem:[#allocation2 + $0x438] sm:$0xff]
    %v1160 = vld [vmem:[#allocation2 + $0x4a0] sm:$0xff]
    %v1161 = vld [vmem:[#allocation2 + $0x4a8] sm:$0xff]
    %v1162 = vld [vmem:[#allocation2 + $0x4b0] sm:$0xff]
    %v1163 = vld [vmem:[#allocation2 + $0x4b8] sm:$0xff]
    %v1164 = vld [vmem:[#allocation2 + $0x520] sm:$0xff]
    %v1165 = vld [vmem:[#allocation2 + $0x528] sm:$0xff]
    %v1166 = vld [vmem:[#allocation2 + $0x530] sm:$0xff]
    %v1167 = vld [vmem:[#allocation2 + $0x538] sm:$0xff]
    %v1168 = vld [vmem:[#allocation2 + $0x5a0] sm:$0xff]
    %v1169 = vld [vmem:[#allocation2 + $0x5a8] sm:$0xff]
    %v1170 = vld [vmem:[#allocation2 + $0x5b0] sm:$0xff]
    %v1171 = vld [vmem:[#allocation2 + $0x5b8] sm:$0xff]
    %v1172 = vld [vmem:[#allocation2 + $0x620] sm:$0xff]
    %v1173 = vld [vmem:[#allocation2 + $0x628] sm:$0xff]
    %v1174 = vld [vmem:[#allocation2 + $0x630] sm:$0xff]
    %v1175 = vld [vmem:[#allocation2 + $0x638] sm:$0xff]
    %v1176 = vld [vmem:[#allocation2 + $0x6a0] sm:$0xff]
    %v1177 = vld [vmem:[#allocation2 + $0x6a8] sm:$0xff]
    %v1178 = vld [vmem:[#allocation2 + $0x6b0] sm:$0xff]
    %v1179 = vld [vmem:[#allocation2 + $0x6b8] sm:$0xff]
    %v1180 = vld [vmem:[#allocation2 + $0x720] sm:$0xff]
    %v1181 = vld [vmem:[#allocation2 + $0x728] sm:$0xff]
    %v1182 = vld [vmem:[#allocation2 + $0x730] sm:$0xff]
    %v1183 = vld [vmem:[#allocation2 + $0x738] sm:$0xff]
    %v1184 = vld [vmem:[#allocation2 + $0x7a0] sm:$0xff]
    %v1185 = vld [vmem:[#allocation2 + $0x7a8] sm:$0xff]
    %v1186 = vld [vmem:[#allocation2 + $0x7b0] sm:$0xff]
    %v1187 = vld [vmem:[#allocation2 + $0x7b8] sm:$0xff]
    %v1188 = vld [vmem:[#allocation2 + $0x820] sm:$0xff]
    %v1189 = vld [vmem:[#allocation2 + $0x828] sm:$0xff]
    %v1190 = vld [vmem:[#allocation2 + $0x830] sm:$0xff]
    %v1191 = vld [vmem:[#allocation2 + $0x838] sm:$0xff]
    %v1192 = vld [vmem:[#allocation2 + $0x8a0] sm:$0xff]
    %v1193 = vld [vmem:[#allocation2 + $0x8a8] sm:$0xff]
    %v1194 = vld [vmem:[#allocation2 + $0x8b0] sm:$0xff]
    %v1195 = vld [vmem:[#allocation2 + $0x8b8] sm:$0xff]
    %v1196 = vld [vmem:[#allocation2 + $0x920] sm:$0xff]
    %v1197 = vld [vmem:[#allocation2 + $0x928] sm:$0xff]
    %v1198 = vld [vmem:[#allocation2 + $0x930] sm:$0xff]
    %v1199 = vld [vmem:[#allocation2 + $0x938] sm:$0xff]
    %v1200 = vld [vmem:[#allocation2 + $0x9a0] sm:$0xff]
    %v1201 = vld [vmem:[#allocation2 + $0x9a8] sm:$0xff]
    %v1202 = vld [vmem:[#allocation2 + $0x9b0] sm:$0xff]
    %v1203 = vld [vmem:[#allocation2 + $0x9b8] sm:$0xff]
    %v1204 = vld [vmem:[#allocation2 + $0xa20] sm:$0xff]
    %v1205 = vld [vmem:[#allocation2 + $0xa28] sm:$0xff]
    %v1206 = vld [vmem:[#allocation2 + $0xa30] sm:$0xff]
    %v1207 = vld [vmem:[#allocation2 + $0xa38] sm:$0xff]
    %v1208 = vld [vmem:[#allocation2 + $0xaa0] sm:$0xff]
    %v1209 = vld [vmem:[#allocation2 + $0xaa8] sm:$0xff]
    %v1210 = vld [vmem:[#allocation2 + $0xab0] sm:$0xff]
    %v1211 = vld [vmem:[#allocation2 + $0xab8] sm:$0xff]
    %v1212 = vld [vmem:[#allocation2 + $0xb20] sm:$0xff]
    %v1213 = vld [vmem:[#allocation2 + $0xb28] sm:$0xff]
    %v1214 = vld [vmem:[#allocation2 + $0xb30] sm:$0xff]
    %v1215 = vld [vmem:[#allocation2 + $0xb38] sm:$0xff]
    %v1216 = vld [vmem:[#allocation2 + $0xba0] sm:$0xff]
    %v1217 = vld [vmem:[#allocation2 + $0xba8] sm:$0xff]
    %v1218 = vld [vmem:[#allocation2 + $0xbb0] sm:$0xff]
    %v1219 = vld [vmem:[#allocation2 + $0xbb8] sm:$0xff]
    %v1220 = vld [vmem:[#allocation2 + $0xc20] sm:$0xff]
    %v1221 = vld [vmem:[#allocation2 + $0xc28] sm:$0xff]
    %v1222 = vld [vmem:[#allocation2 + $0xc30] sm:$0xff]
    %v1223 = vld [vmem:[#allocation2 + $0xc38] sm:$0xff]
    %v1224 = vld [vmem:[#allocation2 + $0xca0] sm:$0xff]
    %v1225 = vld [vmem:[#allocation2 + $0xca8] sm:$0xff]
    %v1226 = vld [vmem:[#allocation2 + $0xcb0] sm:$0xff]
    %v1227 = vld [vmem:[#allocation2 + $0xcb8] sm:$0xff]
    %v1228 = vld [vmem:[#allocation2 + $0xd20] sm:$0xff]
    %v1229 = vld [vmem:[#allocation2 + $0xd28] sm:$0xff]
    %v1230 = vld [vmem:[#allocation2 + $0xd30] sm:$0xff]
    %v1231 = vld [vmem:[#allocation2 + $0xd38] sm:$0xff]
    %v1232 = vld [vmem:[#allocation2 + $0xda0] sm:$0xff]
    %v1233 = vld [vmem:[#allocation2 + $0xda8] sm:$0xff]
    %v1234 = vld [vmem:[#allocation2 + $0xdb0] sm:$0xff]
    %v1235 = vld [vmem:[#allocation2 + $0xdb8] sm:$0xff]
    %v1236 = vld [vmem:[#allocation2 + $0xe20] sm:$0xff]
    %v1237 = vld [vmem:[#allocation2 + $0xe28] sm:$0xff]
    %v1238 = vld [vmem:[#allocation2 + $0xe30] sm:$0xff]
    %v1239 = vld [vmem:[#allocation2 + $0xe38] sm:$0xff]
    %v1240 = vld [vmem:[#allocation2 + $0xea0] sm:$0xff]
    %v1241 = vld [vmem:[#allocation2 + $0xea8] sm:$0xff]
    %v1242 = vld [vmem:[#allocation2 + $0xeb0] sm:$0xff]
    %v1243 = vld [vmem:[#allocation2 + $0xeb8] sm:$0xff]
    %v1244 = vld [vmem:[#allocation2 + $0xf20] sm:$0xff]
    %v1245 = vld [vmem:[#allocation2 + $0xf28] sm:$0xff]
    %v1246 = vld [vmem:[#allocation2 + $0xf30] sm:$0xff]
    %v1247 = vld [vmem:[#allocation2 + $0xf38] sm:$0xff]
    %v1248 = vld [vmem:[#allocation2 + $0xfa0] sm:$0xff]
    %v1249 = vld [vmem:[#allocation2 + $0xfa8] sm:$0xff]
    %v1250 = vld [vmem:[#allocation2 + $0xfb0] sm:$0xff]
    %v1251 = vld [vmem:[#allocation2 + $0xfb8] sm:$0xff]
    %v1380 = vunpack.c.l.b16 %v1124
    %v1381 = vunpack.c.h.b16 %v1124
    %v1382 = vunpack.c.l.b16 %v1125
    %v1383 = vunpack.c.h.b16 %v1125
    %v1384 = vunpack.c.l.b16 %v1126
    %v1385 = vunpack.c.h.b16 %v1126
    %v1386 = vunpack.c.l.b16 %v1127
    %v1387 = vunpack.c.h.b16 %v1127
    %v1388 = vunpack.c.l.b16 %v1128
    %v1389 = vunpack.c.h.b16 %v1128
    %v1390 = vunpack.c.l.b16 %v1129
    %v1391 = vunpack.c.h.b16 %v1129
    %v1392 = vunpack.c.l.b16 %v1130
    %v1393 = vunpack.c.h.b16 %v1130
    %v1394 = vunpack.c.l.b16 %v1131
    %v1395 = vunpack.c.h.b16 %v1131
    %v1396 = vunpack.c.l.b16 %v1132
    %v1397 = vunpack.c.h.b16 %v1132
    %v1398 = vunpack.c.l.b16 %v1133
    %v1399 = vunpack.c.h.b16 %v1133
    %v1400 = vunpack.c.l.b16 %v1134
    %v1401 = vunpack.c.h.b16 %v1134
    %v1402 = vunpack.c.l.b16 %v1135
    %v1403 = vunpack.c.h.b16 %v1135
    %v1404 = vunpack.c.l.b16 %v1136
    %v1405 = vunpack.c.h.b16 %v1136
    %v1406 = vunpack.c.l.b16 %v1137
    %v1407 = vunpack.c.h.b16 %v1137
    %v1408 = vunpack.c.l.b16 %v1138
    %v1409 = vunpack.c.h.b16 %v1138
    %v1410 = vunpack.c.l.b16 %v1139
    %v1411 = vunpack.c.h.b16 %v1139
    %v1412 = vunpack.c.l.b16 %v1140
    %v1413 = vunpack.c.h.b16 %v1140
    %v1414 = vunpack.c.l.b16 %v1141
    %v1415 = vunpack.c.h.b16 %v1141
    %v1416 = vunpack.c.l.b16 %v1142
    %v1417 = vunpack.c.h.b16 %v1142
    %v1418 = vunpack.c.l.b16 %v1143
    %v1419 = vunpack.c.h.b16 %v1143
    %v1420 = vunpack.c.l.b16 %v1144
    %v1421 = vunpack.c.h.b16 %v1144
    %v1422 = vunpack.c.l.b16 %v1145
    %v1423 = vunpack.c.h.b16 %v1145
    %v1424 = vunpack.c.l.b16 %v1146
    %v1425 = vunpack.c.h.b16 %v1146
    %v1426 = vunpack.c.l.b16 %v1147
    %v1427 = vunpack.c.h.b16 %v1147
    %v1428 = vunpack.c.l.b16 %v1148
    %v1429 = vunpack.c.h.b16 %v1148
    %v1430 = vunpack.c.l.b16 %v1149
    %v1431 = vunpack.c.h.b16 %v1149
    %v1432 = vunpack.c.l.b16 %v1150
    %v1433 = vunpack.c.h.b16 %v1150
    %v1434 = vunpack.c.l.b16 %v1151
    %v1435 = vunpack.c.h.b16 %v1151
    %v1436 = vunpack.c.l.b16 %v1152
    %v1437 = vunpack.c.h.b16 %v1152
    %v1438 = vunpack.c.l.b16 %v1153
    %v1439 = vunpack.c.h.b16 %v1153
    %v1440 = vunpack.c.l.b16 %v1154
    %v1441 = vunpack.c.h.b16 %v1154
    %v1442 = vunpack.c.l.b16 %v1155
    %v1443 = vunpack.c.h.b16 %v1155
    %v1444 = vunpack.c.l.b16 %v1156
    %v1445 = vunpack.c.h.b16 %v1156
    %v1446 = vunpack.c.l.b16 %v1157
    %v1447 = vunpack.c.h.b16 %v1157
    %v1448 = vunpack.c.l.b16 %v1158
    %v1449 = vunpack.c.h.b16 %v1158
    %v1450 = vunpack.c.l.b16 %v1159
    %v1451 = vunpack.c.h.b16 %v1159
    %v1452 = vunpack.c.l.b16 %v1160
    %v1453 = vunpack.c.h.b16 %v1160
    %v1454 = vunpack.c.l.b16 %v1161
    %v1455 = vunpack.c.h.b16 %v1161
    %v1456 = vunpack.c.l.b16 %v1162
    %v1457 = vunpack.c.h.b16 %v1162
    %v1458 = vunpack.c.l.b16 %v1163
    %v1459 = vunpack.c.h.b16 %v1163
    %v1460 = vunpack.c.l.b16 %v1164
    %v1461 = vunpack.c.h.b16 %v1164
    %v1462 = vunpack.c.l.b16 %v1165
    %v1463 = vunpack.c.h.b16 %v1165
    %v1464 = vunpack.c.l.b16 %v1166
    %v1465 = vunpack.c.h.b16 %v1166
    %v1466 = vunpack.c.l.b16 %v1167
    %v1467 = vunpack.c.h.b16 %v1167
    %v1468 = vunpack.c.l.b16 %v1168
    %v1469 = vunpack.c.h.b16 %v1168
    %v1470 = vunpack.c.l.b16 %v1169
    %v1471 = vunpack.c.h.b16 %v1169
    %v1472 = vunpack.c.l.b16 %v1170
    %v1473 = vunpack.c.h.b16 %v1170
    %v1474 = vunpack.c.l.b16 %v1171
    %v1475 = vunpack.c.h.b16 %v1171
    %v1476 = vunpack.c.l.b16 %v1172
    %v1477 = vunpack.c.h.b16 %v1172
    %v1478 = vunpack.c.l.b16 %v1173
    %v1479 = vunpack.c.h.b16 %v1173
    %v1480 = vunpack.c.l.b16 %v1174
    %v1481 = vunpack.c.h.b16 %v1174
    %v1482 = vunpack.c.l.b16 %v1175
    %v1483 = vunpack.c.h.b16 %v1175
    %v1484 = vunpack.c.l.b16 %v1176
    %v1485 = vunpack.c.h.b16 %v1176
    %v1486 = vunpack.c.l.b16 %v1177
    %v1487 = vunpack.c.h.b16 %v1177
    %v1488 = vunpack.c.l.b16 %v1178
    %v1489 = vunpack.c.h.b16 %v1178
    %v1490 = vunpack.c.l.b16 %v1179
    %v1491 = vunpack.c.h.b16 %v1179
    %v1492 = vunpack.c.l.b16 %v1180
    %v1493 = vunpack.c.h.b16 %v1180
    %v1494 = vunpack.c.l.b16 %v1181
    %v1495 = vunpack.c.h.b16 %v1181
    %v1496 = vunpack.c.l.b16 %v1182
    %v1497 = vunpack.c.h.b16 %v1182
    %v1498 = vunpack.c.l.b16 %v1183
    %v1499 = vunpack.c.h.b16 %v1183
    %v1500 = vunpack.c.l.b16 %v1184
    %v1501 = vunpack.c.h.b16 %v1184
    %v1502 = vunpack.c.l.b16 %v1185
    %v1503 = vunpack.c.h.b16 %v1185
    %v1504 = vunpack.c.l.b16 %v1186
    %v1505 = vunpack.c.h.b16 %v1186
    %v1506 = vunpack.c.l.b16 %v1187
    %v1507 = vunpack.c.h.b16 %v1187
    %v1508 = vunpack.c.l.b16 %v1188
    %v1509 = vunpack.c.h.b16 %v1188
    %v1510 = vunpack.c.l.b16 %v1189
    %v1511 = vunpack.c.h.b16 %v1189
    %v1512 = vunpack.c.l.b16 %v1190
    %v1513 = vunpack.c.h.b16 %v1190
    %v1514 = vunpack.c.l.b16 %v1191
    %v1515 = vunpack.c.h.b16 %v1191
    %v1516 = vunpack.c.l.b16 %v1192
    %v1517 = vunpack.c.h.b16 %v1192
    %v1518 = vunpack.c.l.b16 %v1193
    %v1519 = vunpack.c.h.b16 %v1193
    %v1520 = vunpack.c.l.b16 %v1194
    %v1521 = vunpack.c.h.b16 %v1194
    %v1522 = vunpack.c.l.b16 %v1195
    %v1523 = vunpack.c.h.b16 %v1195
    %v1524 = vunpack.c.l.b16 %v1196
    %v1525 = vunpack.c.h.b16 %v1196
    %v1526 = vunpack.c.l.b16 %v1197
    %v1527 = vunpack.c.h.b16 %v1197
    %v1528 = vunpack.c.l.b16 %v1198
    %v1529 = vunpack.c.h.b16 %v1198
    %v1530 = vunpack.c.l.b16 %v1199
    %v1531 = vunpack.c.h.b16 %v1199
    %v1532 = vunpack.c.l.b16 %v1200
    %v1533 = vunpack.c.h.b16 %v1200
    %v1534 = vunpack.c.l.b16 %v1201
    %v1535 = vunpack.c.h.b16 %v1201
    %v1536 = vunpack.c.l.b16 %v1202
    %v1537 = vunpack.c.h.b16 %v1202
    %v1538 = vunpack.c.l.b16 %v1203
    %v1539 = vunpack.c.h.b16 %v1203
    %v1540 = vunpack.c.l.b16 %v1204
    %v1541 = vunpack.c.h.b16 %v1204
    %v1542 = vunpack.c.l.b16 %v1205
    %v1543 = vunpack.c.h.b16 %v1205
    %v1544 = vunpack.c.l.b16 %v1206
    %v1545 = vunpack.c.h.b16 %v1206
    %v1546 = vunpack.c.l.b16 %v1207
    %v1547 = vunpack.c.h.b16 %v1207
    %v1548 = vunpack.c.l.b16 %v1208
    %v1549 = vunpack.c.h.b16 %v1208
    %v1550 = vunpack.c.l.b16 %v1209
    %v1551 = vunpack.c.h.b16 %v1209
    %v1552 = vunpack.c.l.b16 %v1210
    %v1553 = vunpack.c.h.b16 %v1210
    %v1554 = vunpack.c.l.b16 %v1211
    %v1555 = vunpack.c.h.b16 %v1211
    %v1556 = vunpack.c.l.b16 %v1212
    %v1557 = vunpack.c.h.b16 %v1212
    %v1558 = vunpack.c.l.b16 %v1213
    %v1559 = vunpack.c.h.b16 %v1213
    %v1560 = vunpack.c.l.b16 %v1214
    %v1561 = vunpack.c.h.b16 %v1214
    %v1562 = vunpack.c.l.b16 %v1215
    %v1563 = vunpack.c.h.b16 %v1215
    %v1564 = vunpack.c.l.b16 %v1216
    %v1565 = vunpack.c.h.b16 %v1216
    %v1566 = vunpack.c.l.b16 %v1217
    %v1567 = vunpack.c.h.b16 %v1217
    %v1568 = vunpack.c.l.b16 %v1218
    %v1569 = vunpack.c.h.b16 %v1218
    %v1570 = vunpack.c.l.b16 %v1219
    %v1571 = vunpack.c.h.b16 %v1219
    %v1572 = vunpack.c.l.b16 %v1220
    %v1573 = vunpack.c.h.b16 %v1220
    %v1574 = vunpack.c.l.b16 %v1221
    %v1575 = vunpack.c.h.b16 %v1221
    %v1576 = vunpack.c.l.b16 %v1222
    %v1577 = vunpack.c.h.b16 %v1222
    %v1578 = vunpack.c.l.b16 %v1223
    %v1579 = vunpack.c.h.b16 %v1223
    %v1580 = vunpack.c.l.b16 %v1224
    %v1581 = vunpack.c.h.b16 %v1224
    %v1582 = vunpack.c.l.b16 %v1225
    %v1583 = vunpack.c.h.b16 %v1225
    %v1584 = vunpack.c.l.b16 %v1226
    %v1585 = vunpack.c.h.b16 %v1226
    %v1586 = vunpack.c.l.b16 %v1227
    %v1587 = vunpack.c.h.b16 %v1227
    %v1588 = vunpack.c.l.b16 %v1228
    %v1589 = vunpack.c.h.b16 %v1228
    %v1590 = vunpack.c.l.b16 %v1229
    %v1591 = vunpack.c.h.b16 %v1229
    %v1592 = vunpack.c.l.b16 %v1230
    %v1593 = vunpack.c.h.b16 %v1230
    %v1594 = vunpack.c.l.b16 %v1231
    %v1595 = vunpack.c.h.b16 %v1231
    %v1596 = vunpack.c.l.b16 %v1232
    %v1597 = vunpack.c.h.b16 %v1232
    %v1598 = vunpack.c.l.b16 %v1233
    %v1599 = vunpack.c.h.b16 %v1233
    %v1600 = vunpack.c.l.b16 %v1234
    %v1601 = vunpack.c.h.b16 %v1234
    %v1602 = vunpack.c.l.b16 %v1235
    %v1603 = vunpack.c.h.b16 %v1235
    %v1604 = vunpack.c.l.b16 %v1236
    %v1605 = vunpack.c.h.b16 %v1236
    %v1606 = vunpack.c.l.b16 %v1237
    %v1607 = vunpack.c.h.b16 %v1237
    %v1608 = vunpack.c.l.b16 %v1238
    %v1609 = vunpack.c.h.b16 %v1238
    %v1610 = vunpack.c.l.b16 %v1239
    %v1611 = vunpack.c.h.b16 %v1239
    %v1612 = vunpack.c.l.b16 %v1240
    %v1613 = vunpack.c.h.b16 %v1240
    %v1614 = vunpack.c.l.b16 %v1241
    %v1615 = vunpack.c.h.b16 %v1241
    %v1616 = vunpack.c.l.b16 %v1242
    %v1617 = vunpack.c.h.b16 %v1242
    %v1618 = vunpack.c.l.b16 %v1243
    %v1619 = vunpack.c.h.b16 %v1243
    %v1620 = vunpack.c.l.b16 %v1244
    %v1621 = vunpack.c.h.b16 %v1244
    %v1622 = vunpack.c.l.b16 %v1245
    %v1623 = vunpack.c.h.b16 %v1245
    %v1624 = vunpack.c.l.b16 %v1246
    %v1625 = vunpack.c.h.b16 %v1246
    %v1626 = vunpack.c.l.b16 %v1247
    %v1627 = vunpack.c.h.b16 %v1247
    %v1628 = vunpack.c.l.b16 %v1248
    %v1629 = vunpack.c.h.b16 %v1248
    %v1630 = vunpack.c.l.b16 %v1249
    %v1631 = vunpack.c.h.b16 %v1249
    %v1632 = vunpack.c.l.b16 %v1250
    %v1633 = vunpack.c.h.b16 %v1250
    %v1634 = vunpack.c.l.b16 %v1251
    %v1635 = vunpack.c.h.b16 %v1251
    %v1636 = vpack.c.b16 %v1388, %v1380
    %v1637 = vpack.c.b16 %v1389, %v1381
    %v1638 = vpack.c.b16 %v1390, %v1382
    %v1639 = vpack.c.b16 %v1391, %v1383
    %v1640 = vpack.c.b16 %v1392, %v1384
    %v1641 = vpack.c.b16 %v1393, %v1385
    %v1642 = vpack.c.b16 %v1394, %v1386
    %v1643 = vpack.c.b16 %v1395, %v1387
    %v1644 = vpack.c.b16 %v1404, %v1396
    %v1645 = vpack.c.b16 %v1405, %v1397
    %v1646 = vpack.c.b16 %v1406, %v1398
    %v1647 = vpack.c.b16 %v1407, %v1399
    %v1648 = vpack.c.b16 %v1408, %v1400
    %v1649 = vpack.c.b16 %v1409, %v1401
    %v1650 = vpack.c.b16 %v1410, %v1402
    %v1651 = vpack.c.b16 %v1411, %v1403
    %v1652 = vpack.c.b16 %v1420, %v1412
    %v1653 = vpack.c.b16 %v1421, %v1413
    %v1654 = vpack.c.b16 %v1422, %v1414
    %v1655 = vpack.c.b16 %v1423, %v1415
    %v1656 = vpack.c.b16 %v1424, %v1416
    %v1657 = vpack.c.b16 %v1425, %v1417
    %v1658 = vpack.c.b16 %v1426, %v1418
    %v1659 = vpack.c.b16 %v1427, %v1419
    %v1660 = vpack.c.b16 %v1436, %v1428
    %v1661 = vpack.c.b16 %v1437, %v1429
    %v1662 = vpack.c.b16 %v1438, %v1430
    %v1663 = vpack.c.b16 %v1439, %v1431
    %v1664 = vpack.c.b16 %v1440, %v1432
    %v1665 = vpack.c.b16 %v1441, %v1433
    %v1666 = vpack.c.b16 %v1442, %v1434
    %v1667 = vpack.c.b16 %v1443, %v1435
    %v1668 = vpack.c.b16 %v1452, %v1444
    %v1669 = vpack.c.b16 %v1453, %v1445
    %v1670 = vpack.c.b16 %v1454, %v1446
    %v1671 = vpack.c.b16 %v1455, %v1447
    %v1672 = vpack.c.b16 %v1456, %v1448
    %v1673 = vpack.c.b16 %v1457, %v1449
    %v1674 = vpack.c.b16 %v1458, %v1450
    %v1675 = vpack.c.b16 %v1459, %v1451
    %v1676 = vpack.c.b16 %v1468, %v1460
    %v1677 = vpack.c.b16 %v1469, %v1461
    %v1678 = vpack.c.b16 %v1470, %v1462
    %v1679 = vpack.c.b16 %v1471, %v1463
    %v1680 = vpack.c.b16 %v1472, %v1464
    %v1681 = vpack.c.b16 %v1473, %v1465
    %v1682 = vpack.c.b16 %v1474, %v1466
    %v1683 = vpack.c.b16 %v1475, %v1467
    %v1684 = vpack.c.b16 %v1484, %v1476
    %v1685 = vpack.c.b16 %v1485, %v1477
    %v1686 = vpack.c.b16 %v1486, %v1478
    %v1687 = vpack.c.b16 %v1487, %v1479
    %v1688 = vpack.c.b16 %v1488, %v1480
    %v1689 = vpack.c.b16 %v1489, %v1481
    %v1690 = vpack.c.b16 %v1490, %v1482
    %v1691 = vpack.c.b16 %v1491, %v1483
    %v1692 = vpack.c.b16 %v1500, %v1492
    %v1693 = vpack.c.b16 %v1501, %v1493
    %v1694 = vpack.c.b16 %v1502, %v1494
    %v1695 = vpack.c.b16 %v1503, %v1495
    %v1696 = vpack.c.b16 %v1504, %v1496
    %v1697 = vpack.c.b16 %v1505, %v1497
    %v1698 = vpack.c.b16 %v1506, %v1498
    %v1699 = vpack.c.b16 %v1507, %v1499
    %v1700 = vpack.c.b16 %v1516, %v1508
    %v1701 = vpack.c.b16 %v1517, %v1509
    %v1702 = vpack.c.b16 %v1518, %v1510
    %v1703 = vpack.c.b16 %v1519, %v1511
    %v1704 = vpack.c.b16 %v1520, %v1512
    %v1705 = vpack.c.b16 %v1521, %v1513
    %v1706 = vpack.c.b16 %v1522, %v1514
    %v1707 = vpack.c.b16 %v1523, %v1515
    %v1708 = vpack.c.b16 %v1532, %v1524
    %v1709 = vpack.c.b16 %v1533, %v1525
    %v1710 = vpack.c.b16 %v1534, %v1526
    %v1711 = vpack.c.b16 %v1535, %v1527
    %v1712 = vpack.c.b16 %v1536, %v1528
    %v1713 = vpack.c.b16 %v1537, %v1529
    %v1714 = vpack.c.b16 %v1538, %v1530
    %v1715 = vpack.c.b16 %v1539, %v1531
    %v1716 = vpack.c.b16 %v1548, %v1540
    %v1717 = vpack.c.b16 %v1549, %v1541
    %v1718 = vpack.c.b16 %v1550, %v1542
    %v1719 = vpack.c.b16 %v1551, %v1543
    %v1720 = vpack.c.b16 %v1552, %v1544
    %v1721 = vpack.c.b16 %v1553, %v1545
    %v1722 = vpack.c.b16 %v1554, %v1546
    %v1723 = vpack.c.b16 %v1555, %v1547
    %v1724 = vpack.c.b16 %v1564, %v1556
    %v1725 = vpack.c.b16 %v1565, %v1557
    %v1726 = vpack.c.b16 %v1566, %v1558
    %v1727 = vpack.c.b16 %v1567, %v1559
    %v1728 = vpack.c.b16 %v1568, %v1560
    %v1729 = vpack.c.b16 %v1569, %v1561
    %v1730 = vpack.c.b16 %v1570, %v1562
    %v1731 = vpack.c.b16 %v1571, %v1563
    %v1732 = vpack.c.b16 %v1580, %v1572
    %v1733 = vpack.c.b16 %v1581, %v1573
    %v1734 = vpack.c.b16 %v1582, %v1574
    %v1735 = vpack.c.b16 %v1583, %v1575
    %v1736 = vpack.c.b16 %v1584, %v1576
    %v1737 = vpack.c.b16 %v1585, %v1577
    %v1738 = vpack.c.b16 %v1586, %v1578
    %v1739 = vpack.c.b16 %v1587, %v1579
    %v1740 = vpack.c.b16 %v1596, %v1588
    %v1741 = vpack.c.b16 %v1597, %v1589
    %v1742 = vpack.c.b16 %v1598, %v1590
    %v1743 = vpack.c.b16 %v1599, %v1591
    %v1744 = vpack.c.b16 %v1600, %v1592
    %v1745 = vpack.c.b16 %v1601, %v1593
    %v1746 = vpack.c.b16 %v1602, %v1594
    %v1747 = vpack.c.b16 %v1603, %v1595
    %v1748 = vpack.c.b16 %v1612, %v1604
    %v1749 = vpack.c.b16 %v1613, %v1605
    %v1750 = vpack.c.b16 %v1614, %v1606
    %v1751 = vpack.c.b16 %v1615, %v1607
    %v1752 = vpack.c.b16 %v1616, %v1608
    %v1753 = vpack.c.b16 %v1617, %v1609
    %v1754 = vpack.c.b16 %v1618, %v1610
    %v1755 = vpack.c.b16 %v1619, %v1611
    %v1756 = vpack.c.b16 %v1628, %v1620
    %v1757 = vpack.c.b16 %v1629, %v1621
    %v1758 = vpack.c.b16 %v1630, %v1622
    %v1759 = vpack.c.b16 %v1631, %v1623
    %v1760 = vpack.c.b16 %v1632, %v1624
    %v1761 = vpack.c.b16 %v1633, %v1625
    %v1762 = vpack.c.b16 %v1634, %v1626
    %v1763 = vpack.c.b16 %v1635, %v1627
    %1892 = vmatprep.subr.bf16.mxu0 %v1693
    %1893 = vmatpush1.bf16.msra.mxu0 %v1692
    %1894 = vmatprep.subr.bf16.mxu0 %v1685
    %1895 = vmatpush1.bf16.msra.mxu0 %v1684
    %1896 = vmatprep.subr.bf16.mxu0 %v1677
    %1897 = vmatpush1.bf16.msra.mxu0 %v1676
    %1898 = vmatprep.subr.bf16.mxu0 %v1669
    %1899 = vmatpush1.bf16.msra.mxu0 %v1668
    %1900 = vmatprep.subr.bf16.mxu0 %v1661
    %1901 = vmatpush1.bf16.msra.mxu0 %v1660
    %1902 = vmatprep.subr.bf16.mxu0 %v1653
    %1903 = vmatpush1.bf16.msra.mxu0 %v1652
    %1904 = vmatprep.subr.bf16.mxu0 %v1645
    %1905 = vmatpush1.bf16.msra.mxu0 %v1644
    %1906 = vmatprep.subr.bf16.mxu0 %v1637
    %1907 = vmatpush1.bf16.msra.mxu0 %v1636
    %1908 = vmatprep.subr.bf16.mxu0 %v1757
    %1909 = vmatpush2.bf16.msra.mxu0 %v1756
    %1910 = vmatprep.subr.bf16.mxu0 %v1749
    %1911 = vmatpush2.bf16.msra.mxu0 %v1748
    %1912 = vmatprep.subr.bf16.mxu0 %v1741
    %1913 = vmatpush2.bf16.msra.mxu0 %v1740
    %1914 = vmatprep.subr.bf16.mxu0 %v1733
    %1915 = vmatpush2.bf16.msra.mxu0 %v1732
    %1916 = vmatprep.subr.bf16.mxu0 %v1725
    %1917 = vmatpush2.bf16.msra.mxu0 %v1724
    %1918 = vmatprep.subr.bf16.mxu0 %v1717
    %1919 = vmatpush2.bf16.msra.mxu0 %v1716
    %1920 = vmatprep.subr.bf16.mxu0 %v1709
    %1921 = vmatpush2.bf16.msra.mxu0 %v1708
    %1922 = vmatprep.subr.bf16.mxu0 %v1701
    %1923 = vmatpush2.bf16.msra.mxu0 %v1700
    %1924 = vmatprep.mubr.bf16.mxu0 %v317
    %1925 = vmatmul.mubr.bf16.gmra.mxu0 %v310
    %v1926 = vpop.f32.mrf.mxu0
    %v1927 = vadd.f32 0.0, %v1926
    %v1928 = vpop.f32.mrf.mxu0
    %v1929 = vadd.f32 0.0, %v1928
    %v1930 = vpop.f32.mrf.mxu0
    %v1931 = vpop.f32.mrf.mxu0
    %1932 = vdwg.mxu0
    %1933 = vmatprep.subr.bf16.mxu0 %v1695
    %1934 = vmatpush1.bf16.msra.mxu0 %v1694
    %1935 = vmatprep.subr.bf16.mxu0 %v1687
    %1936 = vmatpush1.bf16.msra.mxu0 %v1686
    %1937 = vmatprep.subr.bf16.mxu0 %v1679
    %1938 = vmatpush1.bf16.msra.mxu0 %v1678
    %1939 = vmatprep.subr.bf16.mxu0 %v1671
    %1940 = vmatpush1.bf16.msra.mxu0 %v1670
    %1941 = vmatprep.subr.bf16.mxu0 %v1663
    %1942 = vmatpush1.bf16.msra.mxu0 %v1662
    %1943 = vmatprep.subr.bf16.mxu0 %v1655
    %1944 = vmatpush1.bf16.msra.mxu0 %v1654
    %1945 = vmatprep.subr.bf16.mxu0 %v1647
    %1946 = vmatpush1.bf16.msra.mxu0 %v1646
    %1947 = vmatprep.subr.bf16.mxu0 %v1639
    %1948 = vmatpush1.bf16.msra.mxu0 %v1638
    %1949 = vmatprep.subr.bf16.mxu0 %v1759
    %1950 = vmatpush2.bf16.msra.mxu0 %v1758
    %1951 = vmatprep.subr.bf16.mxu0 %v1751
    %1952 = vmatpush2.bf16.msra.mxu0 %v1750
    %1953 = vmatprep.subr.bf16.mxu0 %v1743
    %1954 = vmatpush2.bf16.msra.mxu0 %v1742
    %1955 = vmatprep.subr.bf16.mxu0 %v1735
    %1956 = vmatpush2.bf16.msra.mxu0 %v1734
    %1957 = vmatprep.subr.bf16.mxu0 %v1727
    %1958 = vmatpush2.bf16.msra.mxu0 %v1726
    %1959 = vmatprep.subr.bf16.mxu0 %v1719
    %1960 = vmatpush2.bf16.msra.mxu0 %v1718
    %1961 = vmatprep.subr.bf16.mxu0 %v1711
    %1962 = vmatpush2.bf16.msra.mxu0 %v1710
    %1963 = vmatprep.subr.bf16.mxu0 %v1703
    %1964 = vmatpush2.bf16.msra.mxu0 %v1702
    %1965 = vmatprep.mubr.bf16.mxu0 %v317
    %1966 = vmatmul.mubr.bf16.gmra.mxu0 %v310
    %v1967 = vpop.f32.mrf.mxu0
    %v1968 = vadd.f32 0.0, %v1967
    %v1969 = vpop.f32.mrf.mxu0
    %v1970 = vadd.f32 0.0, %v1969
    %v1971 = vpop.f32.mrf.mxu0
    %v1972 = vpop.f32.mrf.mxu0
    %1973 = vdwg.mxu0
    %1974 = vmatprep.subr.bf16.mxu0 %v1697
    %1975 = vmatpush1.bf16.msra.mxu0 %v1696
    %1976 = vmatprep.subr.bf16.mxu0 %v1689
    %1977 = vmatpush1.bf16.msra.mxu0 %v1688
    %1978 = vmatprep.subr.bf16.mxu0 %v1681
    %1979 = vmatpush1.bf16.msra.mxu0 %v1680
    %1980 = vmatprep.subr.bf16.mxu0 %v1673
    %1981 = vmatpush1.bf16.msra.mxu0 %v1672
    %1982 = vmatprep.subr.bf16.mxu0 %v1665
    %1983 = vmatpush1.bf16.msra.mxu0 %v1664
    %1984 = vmatprep.subr.bf16.mxu0 %v1657
    %1985 = vmatpush1.bf16.msra.mxu0 %v1656
    %1986 = vmatprep.subr.bf16.mxu0 %v1649
    %1987 = vmatpush1.bf16.msra.mxu0 %v1648
    %1988 = vmatprep.subr.bf16.mxu0 %v1641
    %1989 = vmatpush1.bf16.msra.mxu0 %v1640
    %1990 = vmatprep.subr.bf16.mxu0 %v1761
    %1991 = vmatpush2.bf16.msra.mxu0 %v1760
    %1992 = vmatprep.subr.bf16.mxu0 %v1753
    %1993 = vmatpush2.bf16.msra.mxu0 %v1752
    %1994 = vmatprep.subr.bf16.mxu0 %v1745
    %1995 = vmatpush2.bf16.msra.mxu0 %v1744
    %1996 = vmatprep.subr.bf16.mxu0 %v1737
    %1997 = vmatpush2.bf16.msra.mxu0 %v1736
    %1998 = vmatprep.subr.bf16.mxu0 %v1729
    %1999 = vmatpush2.bf16.msra.mxu0 %v1728
    %2000 = vmatprep.subr.bf16.mxu0 %v1721
    %2001 = vmatpush2.bf16.msra.mxu0 %v1720
    %2002 = vmatprep.subr.bf16.mxu0 %v1713
    %2003 = vmatpush2.bf16.msra.mxu0 %v1712
    %2004 = vmatprep.subr.bf16.mxu0 %v1705
    %2005 = vmatpush2.bf16.msra.mxu0 %v1704
    %2006 = vmatprep.mubr.bf16.mxu0 %v317
    %2007 = vmatmul.mubr.bf16.gmra.mxu0 %v310
    %v2008 = vpop.f32.mrf.mxu0
    %v2009 = vadd.f32 0.0, %v2008
    %v2010 = vpop.f32.mrf.mxu0
    %v2011 = vadd.f32 0.0, %v2010
    %v2012 = vpop.f32.mrf.mxu0
    %v2013 = vpop.f32.mrf.mxu0
    %2014 = vdwg.mxu0
    %2015 = vmatprep.subr.bf16.mxu0 %v1699
    %2016 = vmatpush1.bf16.msra.mxu0 %v1698
    %2017 = vmatprep.subr.bf16.mxu0 %v1691
    %2018 = vmatpush1.bf16.msra.mxu0 %v1690
    %2019 = vmatprep.subr.bf16.mxu0 %v1683
    %2020 = vmatpush1.bf16.msra.mxu0 %v1682
    %2021 = vmatprep.subr.bf16.mxu0 %v1675
    %2022 = vmatpush1.bf16.msra.mxu0 %v1674
    %2023 = vmatprep.subr.bf16.mxu0 %v1667
    %2024 = vmatpush1.bf16.msra.mxu0 %v1666
    %2025 = vmatprep.subr.bf16.mxu0 %v1659
    %2026 = vmatpush1.bf16.msra.mxu0 %v1658
    %2027 = vmatprep.subr.bf16.mxu0 %v1651
    %2028 = vmatpush1.bf16.msra.mxu0 %v1650
    %2029 = vmatprep.subr.bf16.mxu0 %v1643
    %2030 = vmatpush1.bf16.msra.mxu0 %v1642
    %2031 = vmatprep.subr.bf16.mxu0 %v1763
    %2032 = vmatpush2.bf16.msra.mxu0 %v1762
    %2033 = vmatprep.subr.bf16.mxu0 %v1755
    %2034 = vmatpush2.bf16.msra.mxu0 %v1754
    %2035 = vmatprep.subr.bf16.mxu0 %v1747
    %2036 = vmatpush2.bf16.msra.mxu0 %v1746
    %2037 = vmatprep.subr.bf16.mxu0 %v1739
    %2038 = vmatpush2.bf16.msra.mxu0 %v1738
    %2039 = vmatprep.subr.bf16.mxu0 %v1731
    %2040 = vmatpush2.bf16.msra.mxu0 %v1730
    %2041 = vmatprep.subr.bf16.mxu0 %v1723
    %2042 = vmatpush2.bf16.msra.mxu0 %v1722
    %2043 = vmatprep.subr.bf16.mxu0 %v1715
    %2044 = vmatpush2.bf16.msra.mxu0 %v1714
    %2045 = vmatprep.subr.bf16.mxu0 %v1707
    %2046 = vmatpush2.bf16.msra.mxu0 %v1706
    %2047 = vmatprep.mubr.bf16.mxu0 %v317
    %2048 = vmatmul.mubr.bf16.gmra.mxu0 %v310
    %v2049 = vpop.f32.mrf.mxu0
    %v2050 = vadd.f32 0.0, %v2049
    %v2051 = vpop.f32.mrf.mxu0
    %v2052 = vadd.f32 0.0, %v2051
    %v2053 = vpop.f32.mrf.mxu0
    %v2054 = vpop.f32.mrf.mxu0
    %2055 = vdwg.mxu0
    %v2056 = vmax.f32 %v995, %v1927
    %v2057 = vmax.f32 %v997, %v1929
    %v2058 = vmax.f32 %v1036, %v1968
    %v2059 = vmax.f32 %v1038, %v1970
    %v2060 = vmax.f32 %v1077, %v2009
    %v2061 = vmax.f32 %v1079, %v2011
    %v2062 = vmax.f32 %v1118, %v2050
    %v2063 = vmax.f32 %v1120, %v2052
    %v2064 = vld [vmem:[#allocation2 + $0x40] sm:$0xff]
    %v2065 = vld [vmem:[#allocation2 + $0x48] sm:$0xff]
    %v2066 = vld [vmem:[#allocation2 + $0x50] sm:$0xff]
    %v2067 = vld [vmem:[#allocation2 + $0x58] sm:$0xff]
    %v2068 = vld [vmem:[#allocation2 + $0xc0] sm:$0xff]
    %v2069 = vld [vmem:[#allocation2 + $0xc8] sm:$0xff]
    %v2070 = vld [vmem:[#allocation2 + $0xd0] sm:$0xff]
    %v2071 = vld [vmem:[#allocation2 + $0xd8] sm:$0xff]
    %v2072 = vld [vmem:[#allocation2 + $0x140] sm:$0xff]
    %v2073 = vld [vmem:[#allocation2 + $0x148] sm:$0xff]
    %v2074 = vld [vmem:[#allocation2 + $0x150] sm:$0xff]
    %v2075 = vld [vmem:[#allocation2 + $0x158] sm:$0xff]
    %v2076 = vld [vmem:[#allocation2 + $0x1c0] sm:$0xff]
    %v2077 = vld [vmem:[#allocation2 + $0x1c8] sm:$0xff]
    %v2078 = vld [vmem:[#allocation2 + $0x1d0] sm:$0xff]
    %v2079 = vld [vmem:[#allocation2 + $0x1d8] sm:$0xff]
    %v2080 = vld [vmem:[#allocation2 + $0x240] sm:$0xff]
    %v2081 = vld [vmem:[#allocation2 + $0x248] sm:$0xff]
    %v2082 = vld [vmem:[#allocation2 + $0x250] sm:$0xff]
    %v2083 = vld [vmem:[#allocation2 + $0x258] sm:$0xff]
    %v2084 = vld [vmem:[#allocation2 + $0x2c0] sm:$0xff]
    %v2085 = vld [vmem:[#allocation2 + $0x2c8] sm:$0xff]
    %v2086 = vld [vmem:[#allocation2 + $0x2d0] sm:$0xff]
    %v2087 = vld [vmem:[#allocation2 + $0x2d8] sm:$0xff]
    %v2088 = vld [vmem:[#allocation2 + $0x340] sm:$0xff]
    %v2089 = vld [vmem:[#allocation2 + $0x348] sm:$0xff]
    %v2090 = vld [vmem:[#allocation2 + $0x350] sm:$0xff]
    %v2091 = vld [vmem:[#allocation2 + $0x358] sm:$0xff]
    %v2092 = vld [vmem:[#allocation2 + $0x3c0] sm:$0xff]
    %v2093 = vld [vmem:[#allocation2 + $0x3c8] sm:$0xff]
    %v2094 = vld [vmem:[#allocation2 + $0x3d0] sm:$0xff]
    %v2095 = vld [vmem:[#allocation2 + $0x3d8] sm:$0xff]
    %v2096 = vld [vmem:[#allocation2 + $0x440] sm:$0xff]
    %v2097 = vld [vmem:[#allocation2 + $0x448] sm:$0xff]
    %v2098 = vld [vmem:[#allocation2 + $0x450] sm:$0xff]
    %v2099 = vld [vmem:[#allocation2 + $0x458] sm:$0xff]
    %v2100 = vld [vmem:[#allocation2 + $0x4c0] sm:$0xff]
    %v2101 = vld [vmem:[#allocation2 + $0x4c8] sm:$0xff]
    %v2102 = vld [vmem:[#allocation2 + $0x4d0] sm:$0xff]
    %v2103 = vld [vmem:[#allocation2 + $0x4d8] sm:$0xff]
    %v2104 = vld [vmem:[#allocation2 + $0x540] sm:$0xff]
    %v2105 = vld [vmem:[#allocation2 + $0x548] sm:$0xff]
    %v2106 = vld [vmem:[#allocation2 + $0x550] sm:$0xff]
    %v2107 = vld [vmem:[#allocation2 + $0x558] sm:$0xff]
    %v2108 = vld [vmem:[#allocation2 + $0x5c0] sm:$0xff]
    %v2109 = vld [vmem:[#allocation2 + $0x5c8] sm:$0xff]
    %v2110 = vld [vmem:[#allocation2 + $0x5d0] sm:$0xff]
    %v2111 = vld [vmem:[#allocation2 + $0x5d8] sm:$0xff]
    %v2112 = vld [vmem:[#allocation2 + $0x640] sm:$0xff]
    %v2113 = vld [vmem:[#allocation2 + $0x648] sm:$0xff]
    %v2114 = vld [vmem:[#allocation2 + $0x650] sm:$0xff]
    %v2115 = vld [vmem:[#allocation2 + $0x658] sm:$0xff]
    %v2116 = vld [vmem:[#allocation2 + $0x6c0] sm:$0xff]
    %v2117 = vld [vmem:[#allocation2 + $0x6c8] sm:$0xff]
    %v2118 = vld [vmem:[#allocation2 + $0x6d0] sm:$0xff]
    %v2119 = vld [vmem:[#allocation2 + $0x6d8] sm:$0xff]
    %v2120 = vld [vmem:[#allocation2 + $0x740] sm:$0xff]
    %v2121 = vld [vmem:[#allocation2 + $0x748] sm:$0xff]
    %v2122 = vld [vmem:[#allocation2 + $0x750] sm:$0xff]
    %v2123 = vld [vmem:[#allocation2 + $0x758] sm:$0xff]
    %v2124 = vld [vmem:[#allocation2 + $0x7c0] sm:$0xff]
    %v2125 = vld [vmem:[#allocation2 + $0x7c8] sm:$0xff]
    %v2126 = vld [vmem:[#allocation2 + $0x7d0] sm:$0xff]
    %v2127 = vld [vmem:[#allocation2 + $0x7d8] sm:$0xff]
    %v2128 = vld [vmem:[#allocation2 + $0x840] sm:$0xff]
    %v2129 = vld [vmem:[#allocation2 + $0x848] sm:$0xff]
    %v2130 = vld [vmem:[#allocation2 + $0x850] sm:$0xff]
    %v2131 = vld [vmem:[#allocation2 + $0x858] sm:$0xff]
    %v2132 = vld [vmem:[#allocation2 + $0x8c0] sm:$0xff]
    %v2133 = vld [vmem:[#allocation2 + $0x8c8] sm:$0xff]
    %v2134 = vld [vmem:[#allocation2 + $0x8d0] sm:$0xff]
    %v2135 = vld [vmem:[#allocation2 + $0x8d8] sm:$0xff]
    %v2136 = vld [vmem:[#allocation2 + $0x940] sm:$0xff]
    %v2137 = vld [vmem:[#allocation2 + $0x948] sm:$0xff]
    %v2138 = vld [vmem:[#allocation2 + $0x950] sm:$0xff]
    %v2139 = vld [vmem:[#allocation2 + $0x958] sm:$0xff]
    %v2140 = vld [vmem:[#allocation2 + $0x9c0] sm:$0xff]
    %v2141 = vld [vmem:[#allocation2 + $0x9c8] sm:$0xff]
    %v2142 = vld [vmem:[#allocation2 + $0x9d0] sm:$0xff]
    %v2143 = vld [vmem:[#allocation2 + $0x9d8] sm:$0xff]
    %v2144 = vld [vmem:[#allocation2 + $0xa40] sm:$0xff]
    %v2145 = vld [vmem:[#allocation2 + $0xa48] sm:$0xff]
    %v2146 = vld [vmem:[#allocation2 + $0xa50] sm:$0xff]
    %v2147 = vld [vmem:[#allocation2 + $0xa58] sm:$0xff]
    %v2148 = vld [vmem:[#allocation2 + $0xac0] sm:$0xff]
    %v2149 = vld [vmem:[#allocation2 + $0xac8] sm:$0xff]
    %v2150 = vld [vmem:[#allocation2 + $0xad0] sm:$0xff]
    %v2151 = vld [vmem:[#allocation2 + $0xad8] sm:$0xff]
    %v2152 = vld [vmem:[#allocation2 + $0xb40] sm:$0xff]
    %v2153 = vld [vmem:[#allocation2 + $0xb48] sm:$0xff]
    %v2154 = vld [vmem:[#allocation2 + $0xb50] sm:$0xff]
    %v2155 = vld [vmem:[#allocation2 + $0xb58] sm:$0xff]
    %v2156 = vld [vmem:[#allocation2 + $0xbc0] sm:$0xff]
    %v2157 = vld [vmem:[#allocation2 + $0xbc8] sm:$0xff]
    %v2158 = vld [vmem:[#allocation2 + $0xbd0] sm:$0xff]
    %v2159 = vld [vmem:[#allocation2 + $0xbd8] sm:$0xff]
    %v2160 = vld [vmem:[#allocation2 + $0xc40] sm:$0xff]
    %v2161 = vld [vmem:[#allocation2 + $0xc48] sm:$0xff]
    %v2162 = vld [vmem:[#allocation2 + $0xc50] sm:$0xff]
    %v2163 = vld [vmem:[#allocation2 + $0xc58] sm:$0xff]
    %v2164 = vld [vmem:[#allocation2 + $0xcc0] sm:$0xff]
    %v2165 = vld [vmem:[#allocation2 + $0xcc8] sm:$0xff]
    %v2166 = vld [vmem:[#allocation2 + $0xcd0] sm:$0xff]
    %v2167 = vld [vmem:[#allocation2 + $0xcd8] sm:$0xff]
    %v2168 = vld [vmem:[#allocation2 + $0xd40] sm:$0xff]
    %v2169 = vld [vmem:[#allocation2 + $0xd48] sm:$0xff]
    %v2170 = vld [vmem:[#allocation2 + $0xd50] sm:$0xff]
    %v2171 = vld [vmem:[#allocation2 + $0xd58] sm:$0xff]
    %v2172 = vld [vmem:[#allocation2 + $0xdc0] sm:$0xff]
    %v2173 = vld [vmem:[#allocation2 + $0xdc8] sm:$0xff]
    %v2174 = vld [vmem:[#allocation2 + $0xdd0] sm:$0xff]
    %v2175 = vld [vmem:[#allocation2 + $0xdd8] sm:$0xff]
    %v2176 = vld [vmem:[#allocation2 + $0xe40] sm:$0xff]
    %v2177 = vld [vmem:[#allocation2 + $0xe48] sm:$0xff]
    %v2178 = vld [vmem:[#allocation2 + $0xe50] sm:$0xff]
    %v2179 = vld [vmem:[#allocation2 + $0xe58] sm:$0xff]
    %v2180 = vld [vmem:[#allocation2 + $0xec0] sm:$0xff]
    %v2181 = vld [vmem:[#allocation2 + $0xec8] sm:$0xff]
    %v2182 = vld [vmem:[#allocation2 + $0xed0] sm:$0xff]
    %v2183 = vld [vmem:[#allocation2 + $0xed8] sm:$0xff]
    %v2184 = vld [vmem:[#allocation2 + $0xf40] sm:$0xff]
    %v2185 = vld [vmem:[#allocation2 + $0xf48] sm:$0xff]
    %v2186 = vld [vmem:[#allocation2 + $0xf50] sm:$0xff]
    %v2187 = vld [vmem:[#allocation2 + $0xf58] sm:$0xff]
    %v2188 = vld [vmem:[#allocation2 + $0xfc0] sm:$0xff]
    %v2189 = vld [vmem:[#allocation2 + $0xfc8] sm:$0xff]
    %v2190 = vld [vmem:[#allocation2 + $0xfd0] sm:$0xff]
    %v2191 = vld [vmem:[#allocation2 + $0xfd8] sm:$0xff]
    %v2320 = vunpack.c.l.b16 %v2064
    %v2321 = vunpack.c.h.b16 %v2064
    %v2322 = vunpack.c.l.b16 %v2065
    %v2323 = vunpack.c.h.b16 %v2065
    %v2324 = vunpack.c.l.b16 %v2066
    %v2325 = vunpack.c.h.b16 %v2066
    %v2326 = vunpack.c.l.b16 %v2067
    %v2327 = vunpack.c.h.b16 %v2067
    %v2328 = vunpack.c.l.b16 %v2068
    %v2329 = vunpack.c.h.b16 %v2068
    %v2330 = vunpack.c.l.b16 %v2069
    %v2331 = vunpack.c.h.b16 %v2069
    %v2332 = vunpack.c.l.b16 %v2070
    %v2333 = vunpack.c.h.b16 %v2070
    %v2334 = vunpack.c.l.b16 %v2071
    %v2335 = vunpack.c.h.b16 %v2071
    %v2336 = vunpack.c.l.b16 %v2072
    %v2337 = vunpack.c.h.b16 %v2072
    %v2338 = vunpack.c.l.b16 %v2073
    %v2339 = vunpack.c.h.b16 %v2073
    %v2340 = vunpack.c.l.b16 %v2074
    %v2341 = vunpack.c.h.b16 %v2074
    %v2342 = vunpack.c.l.b16 %v2075
    %v2343 = vunpack.c.h.b16 %v2075
    %v2344 = vunpack.c.l.b16 %v2076
    %v2345 = vunpack.c.h.b16 %v2076
    %v2346 = vunpack.c.l.b16 %v2077
    %v2347 = vunpack.c.h.b16 %v2077
    %v2348 = vunpack.c.l.b16 %v2078
    %v2349 = vunpack.c.h.b16 %v2078
    %v2350 = vunpack.c.l.b16 %v2079
    %v2351 = vunpack.c.h.b16 %v2079
    %v2352 = vunpack.c.l.b16 %v2080
    %v2353 = vunpack.c.h.b16 %v2080
    %v2354 = vunpack.c.l.b16 %v2081
    %v2355 = vunpack.c.h.b16 %v2081
    %v2356 = vunpack.c.l.b16 %v2082
    %v2357 = vunpack.c.h.b16 %v2082
    %v2358 = vunpack.c.l.b16 %v2083
    %v2359 = vunpack.c.h.b16 %v2083
    %v2360 = vunpack.c.l.b16 %v2084
    %v2361 = vunpack.c.h.b16 %v2084
    %v2362 = vunpack.c.l.b16 %v2085
    %v2363 = vunpack.c.h.b16 %v2085
    %v2364 = vunpack.c.l.b16 %v2086
    %v2365 = vunpack.c.h.b16 %v2086
    %v2366 = vunpack.c.l.b16 %v2087
    %v2367 = vunpack.c.h.b16 %v2087
    %v2368 = vunpack.c.l.b16 %v2088
    %v2369 = vunpack.c.h.b16 %v2088
    %v2370 = vunpack.c.l.b16 %v2089
    %v2371 = vunpack.c.h.b16 %v2089
    %v2372 = vunpack.c.l.b16 %v2090
    %v2373 = vunpack.c.h.b16 %v2090
    %v2374 = vunpack.c.l.b16 %v2091
    %v2375 = vunpack.c.h.b16 %v2091
    %v2376 = vunpack.c.l.b16 %v2092
    %v2377 = vunpack.c.h.b16 %v2092
    %v2378 = vunpack.c.l.b16 %v2093
    %v2379 = vunpack.c.h.b16 %v2093
    %v2380 = vunpack.c.l.b16 %v2094
    %v2381 = vunpack.c.h.b16 %v2094
    %v2382 = vunpack.c.l.b16 %v2095
    %v2383 = vunpack.c.h.b16 %v2095
    %v2384 = vunpack.c.l.b16 %v2096
    %v2385 = vunpack.c.h.b16 %v2096
    %v2386 = vunpack.c.l.b16 %v2097
    %v2387 = vunpack.c.h.b16 %v2097
    %v2388 = vunpack.c.l.b16 %v2098
    %v2389 = vunpack.c.h.b16 %v2098
    %v2390 = vunpack.c.l.b16 %v2099
    %v2391 = vunpack.c.h.b16 %v2099
    %v2392 = vunpack.c.l.b16 %v2100
    %v2393 = vunpack.c.h.b16 %v2100
    %v2394 = vunpack.c.l.b16 %v2101
    %v2395 = vunpack.c.h.b16 %v2101
    %v2396 = vunpack.c.l.b16 %v2102
    %v2397 = vunpack.c.h.b16 %v2102
    %v2398 = vunpack.c.l.b16 %v2103
    %v2399 = vunpack.c.h.b16 %v2103
    %v2400 = vunpack.c.l.b16 %v2104
    %v2401 = vunpack.c.h.b16 %v2104
    %v2402 = vunpack.c.l.b16 %v2105
    %v2403 = vunpack.c.h.b16 %v2105
    %v2404 = vunpack.c.l.b16 %v2106
    %v2405 = vunpack.c.h.b16 %v2106
    %v2406 = vunpack.c.l.b16 %v2107
    %v2407 = vunpack.c.h.b16 %v2107
    %v2408 = vunpack.c.l.b16 %v2108
    %v2409 = vunpack.c.h.b16 %v2108
    %v2410 = vunpack.c.l.b16 %v2109
    %v2411 = vunpack.c.h.b16 %v2109
    %v2412 = vunpack.c.l.b16 %v2110
    %v2413 = vunpack.c.h.b16 %v2110
    %v2414 = vunpack.c.l.b16 %v2111
    %v2415 = vunpack.c.h.b16 %v2111
    %v2416 = vunpack.c.l.b16 %v2112
    %v2417 = vunpack.c.h.b16 %v2112
    %v2418 = vunpack.c.l.b16 %v2113
    %v2419 = vunpack.c.h.b16 %v2113
    %v2420 = vunpack.c.l.b16 %v2114
    %v2421 = vunpack.c.h.b16 %v2114
    %v2422 = vunpack.c.l.b16 %v2115
    %v2423 = vunpack.c.h.b16 %v2115
    %v2424 = vunpack.c.l.b16 %v2116
    %v2425 = vunpack.c.h.b16 %v2116
    %v2426 = vunpack.c.l.b16 %v2117
    %v2427 = vunpack.c.h.b16 %v2117
    %v2428 = vunpack.c.l.b16 %v2118
    %v2429 = vunpack.c.h.b16 %v2118
    %v2430 = vunpack.c.l.b16 %v2119
    %v2431 = vunpack.c.h.b16 %v2119
    %v2432 = vunpack.c.l.b16 %v2120
    %v2433 = vunpack.c.h.b16 %v2120
    %v2434 = vunpack.c.l.b16 %v2121
    %v2435 = vunpack.c.h.b16 %v2121
    %v2436 = vunpack.c.l.b16 %v2122
    %v2437 = vunpack.c.h.b16 %v2122
    %v2438 = vunpack.c.l.b16 %v2123
    %v2439 = vunpack.c.h.b16 %v2123
    %v2440 = vunpack.c.l.b16 %v2124
    %v2441 = vunpack.c.h.b16 %v2124
    %v2442 = vunpack.c.l.b16 %v2125
    %v2443 = vunpack.c.h.b16 %v2125
    %v2444 = vunpack.c.l.b16 %v2126
    %v2445 = vunpack.c.h.b16 %v2126
    %v2446 = vunpack.c.l.b16 %v2127
    %v2447 = vunpack.c.h.b16 %v2127
    %v2448 = vunpack.c.l.b16 %v2128
    %v2449 = vunpack.c.h.b16 %v2128
    %v2450 = vunpack.c.l.b16 %v2129
    %v2451 = vunpack.c.h.b16 %v2129
    %v2452 = vunpack.c.l.b16 %v2130
    %v2453 = vunpack.c.h.b16 %v2130
    %v2454 = vunpack.c.l.b16 %v2131
    %v2455 = vunpack.c.h.b16 %v2131
    %v2456 = vunpack.c.l.b16 %v2132
    %v2457 = vunpack.c.h.b16 %v2132
    %v2458 = vunpack.c.l.b16 %v2133
    %v2459 = vunpack.c.h.b16 %v2133
    %v2460 = vunpack.c.l.b16 %v2134
    %v2461 = vunpack.c.h.b16 %v2134
    %v2462 = vunpack.c.l.b16 %v2135
    %v2463 = vunpack.c.h.b16 %v2135
    %v2464 = vunpack.c.l.b16 %v2136
    %v2465 = vunpack.c.h.b16 %v2136
    %v2466 = vunpack.c.l.b16 %v2137
    %v2467 = vunpack.c.h.b16 %v2137
    %v2468 = vunpack.c.l.b16 %v2138
    %v2469 = vunpack.c.h.b16 %v2138
    %v2470 = vunpack.c.l.b16 %v2139
    %v2471 = vunpack.c.h.b16 %v2139
    %v2472 = vunpack.c.l.b16 %v2140
    %v2473 = vunpack.c.h.b16 %v2140
    %v2474 = vunpack.c.l.b16 %v2141
    %v2475 = vunpack.c.h.b16 %v2141
    %v2476 = vunpack.c.l.b16 %v2142
    %v2477 = vunpack.c.h.b16 %v2142
    %v2478 = vunpack.c.l.b16 %v2143
    %v2479 = vunpack.c.h.b16 %v2143
    %v2480 = vunpack.c.l.b16 %v2144
    %v2481 = vunpack.c.h.b16 %v2144
    %v2482 = vunpack.c.l.b16 %v2145
    %v2483 = vunpack.c.h.b16 %v2145
    %v2484 = vunpack.c.l.b16 %v2146
    %v2485 = vunpack.c.h.b16 %v2146
    %v2486 = vunpack.c.l.b16 %v2147
    %v2487 = vunpack.c.h.b16 %v2147
    %v2488 = vunpack.c.l.b16 %v2148
    %v2489 = vunpack.c.h.b16 %v2148
    %v2490 = vunpack.c.l.b16 %v2149
    %v2491 = vunpack.c.h.b16 %v2149
    %v2492 = vunpack.c.l.b16 %v2150
    %v2493 = vunpack.c.h.b16 %v2150
    %v2494 = vunpack.c.l.b16 %v2151
    %v2495 = vunpack.c.h.b16 %v2151
    %v2496 = vunpack.c.l.b16 %v2152
    %v2497 = vunpack.c.h.b16 %v2152
    %v2498 = vunpack.c.l.b16 %v2153
    %v2499 = vunpack.c.h.b16 %v2153
    %v2500 = vunpack.c.l.b16 %v2154
    %v2501 = vunpack.c.h.b16 %v2154
    %v2502 = vunpack.c.l.b16 %v2155
    %v2503 = vunpack.c.h.b16 %v2155
    %v2504 = vunpack.c.l.b16 %v2156
    %v2505 = vunpack.c.h.b16 %v2156
    %v2506 = vunpack.c.l.b16 %v2157
    %v2507 = vunpack.c.h.b16 %v2157
    %v2508 = vunpack.c.l.b16 %v2158
    %v2509 = vunpack.c.h.b16 %v2158
    %v2510 = vunpack.c.l.b16 %v2159
    %v2511 = vunpack.c.h.b16 %v2159
    %v2512 = vunpack.c.l.b16 %v2160
    %v2513 = vunpack.c.h.b16 %v2160
    %v2514 = vunpack.c.l.b16 %v2161
    %v2515 = vunpack.c.h.b16 %v2161
    %v2516 = vunpack.c.l.b16 %v2162
    %v2517 = vunpack.c.h.b16 %v2162
    %v2518 = vunpack.c.l.b16 %v2163
    %v2519 = vunpack.c.h.b16 %v2163
    %v2520 = vunpack.c.l.b16 %v2164
    %v2521 = vunpack.c.h.b16 %v2164
    %v2522 = vunpack.c.l.b16 %v2165
    %v2523 = vunpack.c.h.b16 %v2165
    %v2524 = vunpack.c.l.b16 %v2166
    %v2525 = vunpack.c.h.b16 %v2166
    %v2526 = vunpack.c.l.b16 %v2167
    %v2527 = vunpack.c.h.b16 %v2167
    %v2528 = vunpack.c.l.b16 %v2168
    %v2529 = vunpack.c.h.b16 %v2168
    %v2530 = vunpack.c.l.b16 %v2169
    %v2531 = vunpack.c.h.b16 %v2169
    %v2532 = vunpack.c.l.b16 %v2170
    %v2533 = vunpack.c.h.b16 %v2170
    %v2534 = vunpack.c.l.b16 %v2171
    %v2535 = vunpack.c.h.b16 %v2171
    %v2536 = vunpack.c.l.b16 %v2172
    %v2537 = vunpack.c.h.b16 %v2172
    %v2538 = vunpack.c.l.b16 %v2173
    %v2539 = vunpack.c.h.b16 %v2173
    %v2540 = vunpack.c.l.b16 %v2174
    %v2541 = vunpack.c.h.b16 %v2174
    %v2542 = vunpack.c.l.b16 %v2175
    %v2543 = vunpack.c.h.b16 %v2175
    %v2544 = vunpack.c.l.b16 %v2176
    %v2545 = vunpack.c.h.b16 %v2176
    %v2546 = vunpack.c.l.b16 %v2177
    %v2547 = vunpack.c.h.b16 %v2177
    %v2548 = vunpack.c.l.b16 %v2178
    %v2549 = vunpack.c.h.b16 %v2178
    %v2550 = vunpack.c.l.b16 %v2179
    %v2551 = vunpack.c.h.b16 %v2179
    %v2552 = vunpack.c.l.b16 %v2180
    %v2553 = vunpack.c.h.b16 %v2180
    %v2554 = vunpack.c.l.b16 %v2181
    %v2555 = vunpack.c.h.b16 %v2181
    %v2556 = vunpack.c.l.b16 %v2182
    %v2557 = vunpack.c.h.b16 %v2182
    %v2558 = vunpack.c.l.b16 %v2183
    %v2559 = vunpack.c.h.b16 %v2183
    %v2560 = vunpack.c.l.b16 %v2184
    %v2561 = vunpack.c.h.b16 %v2184
    %v2562 = vunpack.c.l.b16 %v2185
    %v2563 = vunpack.c.h.b16 %v2185
    %v2564 = vunpack.c.l.b16 %v2186
    %v2565 = vunpack.c.h.b16 %v2186
    %v2566 = vunpack.c.l.b16 %v2187
    %v2567 = vunpack.c.h.b16 %v2187
    %v2568 = vunpack.c.l.b16 %v2188
    %v2569 = vunpack.c.h.b16 %v2188
    %v2570 = vunpack.c.l.b16 %v2189
    %v2571 = vunpack.c.h.b16 %v2189
    %v2572 = vunpack.c.l.b16 %v2190
    %v2573 = vunpack.c.h.b16 %v2190
    %v2574 = vunpack.c.l.b16 %v2191
    %v2575 = vunpack.c.h.b16 %v2191
    %v2576 = vpack.c.b16 %v2328, %v2320
    %v2577 = vpack.c.b16 %v2329, %v2321
    %v2578 = vpack.c.b16 %v2330, %v2322
    %v2579 = vpack.c.b16 %v2331, %v2323
    %v2580 = vpack.c.b16 %v2332, %v2324
    %v2581 = vpack.c.b16 %v2333, %v2325
    %v2582 = vpack.c.b16 %v2334, %v2326
    %v2583 = vpack.c.b16 %v2335, %v2327
    %v2584 = vpack.c.b16 %v2344, %v2336
    %v2585 = vpack.c.b16 %v2345, %v2337
    %v2586 = vpack.c.b16 %v2346, %v2338
    %v2587 = vpack.c.b16 %v2347, %v2339
    %v2588 = vpack.c.b16 %v2348, %v2340
    %v2589 = vpack.c.b16 %v2349, %v2341
    %v2590 = vpack.c.b16 %v2350, %v2342
    %v2591 = vpack.c.b16 %v2351, %v2343
    %v2592 = vpack.c.b16 %v2360, %v2352
    %v2593 = vpack.c.b16 %v2361, %v2353
    %v2594 = vpack.c.b16 %v2362, %v2354
    %v2595 = vpack.c.b16 %v2363, %v2355
    %v2596 = vpack.c.b16 %v2364, %v2356
    %v2597 = vpack.c.b16 %v2365, %v2357
    %v2598 = vpack.c.b16 %v2366, %v2358
    %v2599 = vpack.c.b16 %v2367, %v2359
    %v2600 = vpack.c.b16 %v2376, %v2368
    %v2601 = vpack.c.b16 %v2377, %v2369
    %v2602 = vpack.c.b16 %v2378, %v2370
    %v2603 = vpack.c.b16 %v2379, %v2371
    %v2604 = vpack.c.b16 %v2380, %v2372
    %v2605 = vpack.c.b16 %v2381, %v2373
    %v2606 = vpack.c.b16 %v2382, %v2374
    %v2607 = vpack.c.b16 %v2383, %v2375
    %v2608 = vpack.c.b16 %v2392, %v2384
    %v2609 = vpack.c.b16 %v2393, %v2385
    %v2610 = vpack.c.b16 %v2394, %v2386
    %v2611 = vpack.c.b16 %v2395, %v2387
    %v2612 = vpack.c.b16 %v2396, %v2388
    %v2613 = vpack.c.b16 %v2397, %v2389
    %v2614 = vpack.c.b16 %v2398, %v2390
    %v2615 = vpack.c.b16 %v2399, %v2391
    %v2616 = vpack.c.b16 %v2408, %v2400
    %v2617 = vpack.c.b16 %v2409, %v2401
    %v2618 = vpack.c.b16 %v2410, %v2402
    %v2619 = vpack.c.b16 %v2411, %v2403
    %v2620 = vpack.c.b16 %v2412, %v2404
    %v2621 = vpack.c.b16 %v2413, %v2405
    %v2622 = vpack.c.b16 %v2414, %v2406
    %v2623 = vpack.c.b16 %v2415, %v2407
    %v2624 = vpack.c.b16 %v2424, %v2416
    %v2625 = vpack.c.b16 %v2425, %v2417
    %v2626 = vpack.c.b16 %v2426, %v2418
    %v2627 = vpack.c.b16 %v2427, %v2419
    %v2628 = vpack.c.b16 %v2428, %v2420
    %v2629 = vpack.c.b16 %v2429, %v2421
    %v2630 = vpack.c.b16 %v2430, %v2422
    %v2631 = vpack.c.b16 %v2431, %v2423
    %v2632 = vpack.c.b16 %v2440, %v2432
    %v2633 = vpack.c.b16 %v2441, %v2433
    %v2634 = vpack.c.b16 %v2442, %v2434
    %v2635 = vpack.c.b16 %v2443, %v2435
    %v2636 = vpack.c.b16 %v2444, %v2436
    %v2637 = vpack.c.b16 %v2445, %v2437
    %v2638 = vpack.c.b16 %v2446, %v2438
    %v2639 = vpack.c.b16 %v2447, %v2439
    %v2640 = vpack.c.b16 %v2456, %v2448
    %v2641 = vpack.c.b16 %v2457, %v2449
    %v2642 = vpack.c.b16 %v2458, %v2450
    %v2643 = vpack.c.b16 %v2459, %v2451
    %v2644 = vpack.c.b16 %v2460, %v2452
    %v2645 = vpack.c.b16 %v2461, %v2453
    %v2646 = vpack.c.b16 %v2462, %v2454
    %v2647 = vpack.c.b16 %v2463, %v2455
    %v2648 = vpack.c.b16 %v2472, %v2464
    %v2649 = vpack.c.b16 %v2473, %v2465
    %v2650 = vpack.c.b16 %v2474, %v2466
    %v2651 = vpack.c.b16 %v2475, %v2467
    %v2652 = vpack.c.b16 %v2476, %v2468
    %v2653 = vpack.c.b16 %v2477, %v2469
    %v2654 = vpack.c.b16 %v2478, %v2470
    %v2655 = vpack.c.b16 %v2479, %v2471
    %v2656 = vpack.c.b16 %v2488, %v2480
    %v2657 = vpack.c.b16 %v2489, %v2481
    %v2658 = vpack.c.b16 %v2490, %v2482
    %v2659 = vpack.c.b16 %v2491, %v2483
    %v2660 = vpack.c.b16 %v2492, %v2484
    %v2661 = vpack.c.b16 %v2493, %v2485
    %v2662 = vpack.c.b16 %v2494, %v2486
    %v2663 = vpack.c.b16 %v2495, %v2487
    %v2664 = vpack.c.b16 %v2504, %v2496
    %v2665 = vpack.c.b16 %v2505, %v2497
    %v2666 = vpack.c.b16 %v2506, %v2498
    %v2667 = vpack.c.b16 %v2507, %v2499
    %v2668 = vpack.c.b16 %v2508, %v2500
    %v2669 = vpack.c.b16 %v2509, %v2501
    %v2670 = vpack.c.b16 %v2510, %v2502
    %v2671 = vpack.c.b16 %v2511, %v2503
    %v2672 = vpack.c.b16 %v2520, %v2512
    %v2673 = vpack.c.b16 %v2521, %v2513
    %v2674 = vpack.c.b16 %v2522, %v2514
    %v2675 = vpack.c.b16 %v2523, %v2515
    %v2676 = vpack.c.b16 %v2524, %v2516
    %v2677 = vpack.c.b16 %v2525, %v2517
    %v2678 = vpack.c.b16 %v2526, %v2518
    %v2679 = vpack.c.b16 %v2527, %v2519
    %v2680 = vpack.c.b16 %v2536, %v2528
    %v2681 = vpack.c.b16 %v2537, %v2529
    %v2682 = vpack.c.b16 %v2538, %v2530
    %v2683 = vpack.c.b16 %v2539, %v2531
    %v2684 = vpack.c.b16 %v2540, %v2532
    %v2685 = vpack.c.b16 %v2541, %v2533
    %v2686 = vpack.c.b16 %v2542, %v2534
    %v2687 = vpack.c.b16 %v2543, %v2535
    %v2688 = vpack.c.b16 %v2552, %v2544
    %v2689 = vpack.c.b16 %v2553, %v2545
    %v2690 = vpack.c.b16 %v2554, %v2546
    %v2691 = vpack.c.b16 %v2555, %v2547
    %v2692 = vpack.c.b16 %v2556, %v2548
    %v2693 = vpack.c.b16 %v2557, %v2549
    %v2694 = vpack.c.b16 %v2558, %v2550
    %v2695 = vpack.c.b16 %v2559, %v2551
    %v2696 = vpack.c.b16 %v2568, %v2560
    %v2697 = vpack.c.b16 %v2569, %v2561
    %v2698 = vpack.c.b16 %v2570, %v2562
    %v2699 = vpack.c.b16 %v2571, %v2563
    %v2700 = vpack.c.b16 %v2572, %v2564
    %v2701 = vpack.c.b16 %v2573, %v2565
    %v2702 = vpack.c.b16 %v2574, %v2566
    %v2703 = vpack.c.b16 %v2575, %v2567
    %2832 = vmatprep.subr.bf16.mxu0 %v2633
    %2833 = vmatpush1.bf16.msra.mxu0 %v2632
    %2834 = vmatprep.subr.bf16.mxu0 %v2625
    %2835 = vmatpush1.bf16.msra.mxu0 %v2624
    %2836 = vmatprep.subr.bf16.mxu0 %v2617
    %2837 = vmatpush1.bf16.msra.mxu0 %v2616
    %2838 = vmatprep.subr.bf16.mxu0 %v2609
    %2839 = vmatpush1.bf16.msra.mxu0 %v2608
    %2840 = vmatprep.subr.bf16.mxu0 %v2601
    %2841 = vmatpush1.bf16.msra.mxu0 %v2600
    %2842 = vmatprep.subr.bf16.mxu0 %v2593
    %2843 = vmatpush1.bf16.msra.mxu0 %v2592
    %2844 = vmatprep.subr.bf16.mxu0 %v2585
    %2845 = vmatpush1.bf16.msra.mxu0 %v2584
    %2846 = vmatprep.subr.bf16.mxu0 %v2577
    %2847 = vmatpush1.bf16.msra.mxu0 %v2576
    %2848 = vmatprep.subr.bf16.mxu0 %v2697
    %2849 = vmatpush2.bf16.msra.mxu0 %v2696
    %2850 = vmatprep.subr.bf16.mxu0 %v2689
    %2851 = vmatpush2.bf16.msra.mxu0 %v2688
    %2852 = vmatprep.subr.bf16.mxu0 %v2681
    %2853 = vmatpush2.bf16.msra.mxu0 %v2680
    %2854 = vmatprep.subr.bf16.mxu0 %v2673
    %2855 = vmatpush2.bf16.msra.mxu0 %v2672
    %2856 = vmatprep.subr.bf16.mxu0 %v2665
    %2857 = vmatpush2.bf16.msra.mxu0 %v2664
    %2858 = vmatprep.subr.bf16.mxu0 %v2657
    %2859 = vmatpush2.bf16.msra.mxu0 %v2656
    %2860 = vmatprep.subr.bf16.mxu0 %v2649
    %2861 = vmatpush2.bf16.msra.mxu0 %v2648
    %2862 = vmatprep.subr.bf16.mxu0 %v2641
    %2863 = vmatpush2.bf16.msra.mxu0 %v2640
    %2864 = vmatprep.mubr.bf16.mxu0 %v317
    %2865 = vmatmul.mubr.bf16.gmra.mxu0 %v310
    %v2866 = vpop.f32.mrf.mxu0
    %v2867 = vadd.f32 0.0, %v2866
    %v2868 = vpop.f32.mrf.mxu0
    %v2869 = vadd.f32 0.0, %v2868
    %v2870 = vpop.f32.mrf.mxu0
    %v2871 = vpop.f32.mrf.mxu0
    %2872 = vdwg.mxu0
    %2873 = vmatprep.subr.bf16.mxu0 %v2635
    %2874 = vmatpush1.bf16.msra.mxu0 %v2634
    %2875 = vmatprep.subr.bf16.mxu0 %v2627
    %2876 = vmatpush1.bf16.msra.mxu0 %v2626
    %2877 = vmatprep.subr.bf16.mxu0 %v2619
    %2878 = vmatpush1.bf16.msra.mxu0 %v2618
    %2879 = vmatprep.subr.bf16.mxu0 %v2611
    %2880 = vmatpush1.bf16.msra.mxu0 %v2610
    %2881 = vmatprep.subr.bf16.mxu0 %v2603
    %2882 = vmatpush1.bf16.msra.mxu0 %v2602
    %2883 = vmatprep.subr.bf16.mxu0 %v2595
    %2884 = vmatpush1.bf16.msra.mxu0 %v2594
    %2885 = vmatprep.subr.bf16.mxu0 %v2587
    %2886 = vmatpush1.bf16.msra.mxu0 %v2586
    %2887 = vmatprep.subr.bf16.mxu0 %v2579
    %2888 = vmatpush1.bf16.msra.mxu0 %v2578
    %2889 = vmatprep.subr.bf16.mxu0 %v2699
    %2890 = vmatpush2.bf16.msra.mxu0 %v2698
    %2891 = vmatprep.subr.bf16.mxu0 %v2691
    %2892 = vmatpush2.bf16.msra.mxu0 %v2690
    %2893 = vmatprep.subr.bf16.mxu0 %v2683
    %2894 = vmatpush2.bf16.msra.mxu0 %v2682
    %2895 = vmatprep.subr.bf16.mxu0 %v2675
    %2896 = vmatpush2.bf16.msra.mxu0 %v2674
    %2897 = vmatprep.subr.bf16.mxu0 %v2667
    %2898 = vmatpush2.bf16.msra.mxu0 %v2666
    %2899 = vmatprep.subr.bf16.mxu0 %v2659
    %2900 = vmatpush2.bf16.msra.mxu0 %v2658
    %2901 = vmatprep.subr.bf16.mxu0 %v2651
    %2902 = vmatpush2.bf16.msra.mxu0 %v2650
    %2903 = vmatprep.subr.bf16.mxu0 %v2643
    %2904 = vmatpush2.bf16.msra.mxu0 %v2642
    %2905 = vmatprep.mubr.bf16.mxu0 %v317
    %2906 = vmatmul.mubr.bf16.gmra.mxu0 %v310
    %v2907 = vpop.f32.mrf.mxu0
    %v2908 = vadd.f32 0.0, %v2907
    %v2909 = vpop.f32.mrf.mxu0
    %v2910 = vadd.f32 0.0, %v2909
    %v2911 = vpop.f32.mrf.mxu0
    %v2912 = vpop.f32.mrf.mxu0
    %2913 = vdwg.mxu0
    %2914 = vmatprep.subr.bf16.mxu0 %v2637
    %2915 = vmatpush1.bf16.msra.mxu0 %v2636
    %2916 = vmatprep.subr.bf16.mxu0 %v2629
    %2917 = vmatpush1.bf16.msra.mxu0 %v2628
    %2918 = vmatprep.subr.bf16.mxu0 %v2621
    %2919 = vmatpush1.bf16.msra.mxu0 %v2620
    %2920 = vmatprep.subr.bf16.mxu0 %v2613
    %2921 = vmatpush1.bf16.msra.mxu0 %v2612
    %2922 = vmatprep.subr.bf16.mxu0 %v2605
    %2923 = vmatpush1.bf16.msra.mxu0 %v2604
    %2924 = vmatprep.subr.bf16.mxu0 %v2597
    %2925 = vmatpush1.bf16.msra.mxu0 %v2596
    %2926 = vmatprep.subr.bf16.mxu0 %v2589
    %2927 = vmatpush1.bf16.msra.mxu0 %v2588
    %2928 = vmatprep.subr.bf16.mxu0 %v2581
    %2929 = vmatpush1.bf16.msra.mxu0 %v2580
    %2930 = vmatprep.subr.bf16.mxu0 %v2701
    %2931 = vmatpush2.bf16.msra.mxu0 %v2700
    %2932 = vmatprep.subr.bf16.mxu0 %v2693
    %2933 = vmatpush2.bf16.msra.mxu0 %v2692
    %2934 = vmatprep.subr.bf16.mxu0 %v2685
    %2935 = vmatpush2.bf16.msra.mxu0 %v2684
    %2936 = vmatprep.subr.bf16.mxu0 %v2677
    %2937 = vmatpush2.bf16.msra.mxu0 %v2676
    %2938 = vmatprep.subr.bf16.mxu0 %v2669
    %2939 = vmatpush2.bf16.msra.mxu0 %v2668
    %2940 = vmatprep.subr.bf16.mxu0 %v2661
    %2941 = vmatpush2.bf16.msra.mxu0 %v2660
    %2942 = vmatprep.subr.bf16.mxu0 %v2653
    %2943 = vmatpush2.bf16.msra.mxu0 %v2652
    %2944 = vmatprep.subr.bf16.mxu0 %v2645
    %2945 = vmatpush2.bf16.msra.mxu0 %v2644
    %2946 = vmatprep.mubr.bf16.mxu0 %v317
    %2947 = vmatmul.mubr.bf16.gmra.mxu0 %v310
    %v2948 = vpop.f32.mrf.mxu0
    %v2949 = vadd.f32 0.0, %v2948
    %v2950 = vpop.f32.mrf.mxu0
    %v2951 = vadd.f32 0.0, %v2950
    %v2952 = vpop.f32.mrf.mxu0
    %v2953 = vpop.f32.mrf.mxu0
    %2954 = vdwg.mxu0
    %2955 = vmatprep.subr.bf16.mxu0 %v2639
    %2956 = vmatpush1.bf16.msra.mxu0 %v2638
    %2957 = vmatprep.subr.bf16.mxu0 %v2631
    %2958 = vmatpush1.bf16.msra.mxu0 %v2630
    %2959 = vmatprep.subr.bf16.mxu0 %v2623
    %2960 = vmatpush1.bf16.msra.mxu0 %v2622
    %2961 = vmatprep.subr.bf16.mxu0 %v2615
    %2962 = vmatpush1.bf16.msra.mxu0 %v2614
    %2963 = vmatprep.subr.bf16.mxu0 %v2607
    %2964 = vmatpush1.bf16.msra.mxu0 %v2606
    %2965 = vmatprep.subr.bf16.mxu0 %v2599
    %2966 = vmatpush1.bf16.msra.mxu0 %v2598
    %2967 = vmatprep.subr.bf16.mxu0 %v2591
    %2968 = vmatpush1.bf16.msra.mxu0 %v2590
    %2969 = vmatprep.subr.bf16.mxu0 %v2583
    %2970 = vmatpush1.bf16.msra.mxu0 %v2582
    %2971 = vmatprep.subr.bf16.mxu0 %v2703
    %2972 = vmatpush2.bf16.msra.mxu0 %v2702
    %2973 = vmatprep.subr.bf16.mxu0 %v2695
    %2974 = vmatpush2.bf16.msra.mxu0 %v2694
    %2975 = vmatprep.subr.bf16.mxu0 %v2687
    %2976 = vmatpush2.bf16.msra.mxu0 %v2686
    %2977 = vmatprep.subr.bf16.mxu0 %v2679
    %2978 = vmatpush2.bf16.msra.mxu0 %v2678
    %2979 = vmatprep.subr.bf16.mxu0 %v2671
    %2980 = vmatpush2.bf16.msra.mxu0 %v2670
    %2981 = vmatprep.subr.bf16.mxu0 %v2663
    %2982 = vmatpush2.bf16.msra.mxu0 %v2662
    %2983 = vmatprep.subr.bf16.mxu0 %v2655
    %2984 = vmatpush2.bf16.msra.mxu0 %v2654
    %2985 = vmatprep.subr.bf16.mxu0 %v2647
    %2986 = vmatpush2.bf16.msra.mxu0 %v2646
    %2987 = vmatprep.mubr.bf16.mxu0 %v317
    %2988 = vmatmul.mubr.bf16.gmra.mxu0 %v310
    %v2989 = vpop.f32.mrf.mxu0
    %v2990 = vadd.f32 0.0, %v2989
    %v2991 = vpop.f32.mrf.mxu0
    %v2992 = vadd.f32 0.0, %v2991
    %v2993 = vpop.f32.mrf.mxu0
    %v2994 = vpop.f32.mrf.mxu0
    %2995 = vdwg.mxu0
    %v2996 = vmax.f32 %v2056, %v2867
    %v2997 = vmax.f32 %v2057, %v2869
    %v2998 = vmax.f32 %v2058, %v2908
    %v2999 = vmax.f32 %v2059, %v2910
    %v3000 = vmax.f32 %v2060, %v2949
    %v3001 = vmax.f32 %v2061, %v2951
    %v3002 = vmax.f32 %v2062, %v2990
    %v3003 = vmax.f32 %v2063, %v2992
    %v3004 = vld [vmem:[#allocation2 + $0x60] sm:$0xff]
    %v3005 = vld [vmem:[#allocation2 + $0x68] sm:$0xff]
    %v3006 = vld [vmem:[#allocation2 + $0x70] sm:$0xff]
    %v3007 = vld [vmem:[#allocation2 + $0x78] sm:$0xff]
    %v3008 = vld [vmem:[#allocation2 + $0xe0] sm:$0xff]
    %v3009 = vld [vmem:[#allocation2 + $0xe8] sm:$0xff]
    %v3010 = vld [vmem:[#allocation2 + $0xf0] sm:$0xff]
    %v3011 = vld [vmem:[#allocation2 + $0xf8] sm:$0xff]
    %v3012 = vld [vmem:[#allocation2 + $0x160] sm:$0xff]
    %v3013 = vld [vmem:[#allocation2 + $0x168] sm:$0xff]
    %v3014 = vld [vmem:[#allocation2 + $0x170] sm:$0xff]
    %v3015 = vld [vmem:[#allocation2 + $0x178] sm:$0xff]
    %v3016 = vld [vmem:[#allocation2 + $0x1e0] sm:$0xff]
    %v3017 = vld [vmem:[#allocation2 + $0x1e8] sm:$0xff]
    %v3018 = vld [vmem:[#allocation2 + $0x1f0] sm:$0xff]
    %v3019 = vld [vmem:[#allocation2 + $0x1f8] sm:$0xff]
    %v3020 = vld [vmem:[#allocation2 + $0x260] sm:$0xff]
    %v3021 = vld [vmem:[#allocation2 + $0x268] sm:$0xff]
    %v3022 = vld [vmem:[#allocation2 + $0x270] sm:$0xff]
    %v3023 = vld [vmem:[#allocation2 + $0x278] sm:$0xff]
    %v3024 = vld [vmem:[#allocation2 + $0x2e0] sm:$0xff]
    %v3025 = vld [vmem:[#allocation2 + $0x2e8] sm:$0xff]
    %v3026 = vld [vmem:[#allocation2 + $0x2f0] sm:$0xff]
    %v3027 = vld [vmem:[#allocation2 + $0x2f8] sm:$0xff]
    %v3028 = vld [vmem:[#allocation2 + $0x360] sm:$0xff]
    %v3029 = vld [vmem:[#allocation2 + $0x368] sm:$0xff]
    %v3030 = vld [vmem:[#allocation2 + $0x370] sm:$0xff]
    %v3031 = vld [vmem:[#allocation2 + $0x378] sm:$0xff]
    %v3032 = vld [vmem:[#allocation2 + $0x3e0] sm:$0xff]
    %v3033 = vld [vmem:[#allocation2 + $0x3e8] sm:$0xff]
    %v3034 = vld [vmem:[#allocation2 + $0x3f0] sm:$0xff]
    %v3035 = vld [vmem:[#allocation2 + $0x3f8] sm:$0xff]
    %v3036 = vld [vmem:[#allocation2 + $0x460] sm:$0xff]
    %v3037 = vld [vmem:[#allocation2 + $0x468] sm:$0xff]
    %v3038 = vld [vmem:[#allocation2 + $0x470] sm:$0xff]
    %v3039 = vld [vmem:[#allocation2 + $0x478] sm:$0xff]
    %v3040 = vld [vmem:[#allocation2 + $0x4e0] sm:$0xff]
    %v3041 = vld [vmem:[#allocation2 + $0x4e8] sm:$0xff]
    %v3042 = vld [vmem:[#allocation2 + $0x4f0] sm:$0xff]
    %v3043 = vld [vmem:[#allocation2 + $0x4f8] sm:$0xff]
    %v3044 = vld [vmem:[#allocation2 + $0x560] sm:$0xff]
    %v3045 = vld [vmem:[#allocation2 + $0x568] sm:$0xff]
    %v3046 = vld [vmem:[#allocation2 + $0x570] sm:$0xff]
    %v3047 = vld [vmem:[#allocation2 + $0x578] sm:$0xff]
    %v3048 = vld [vmem:[#allocation2 + $0x5e0] sm:$0xff]
    %v3049 = vld [vmem:[#allocation2 + $0x5e8] sm:$0xff]
    %v3050 = vld [vmem:[#allocation2 + $0x5f0] sm:$0xff]
    %v3051 = vld [vmem:[#allocation2 + $0x5f8] sm:$0xff]
    %v3052 = vld [vmem:[#allocation2 + $0x660] sm:$0xff]
    %v3053 = vld [vmem:[#allocation2 + $0x668] sm:$0xff]
    %v3054 = vld [vmem:[#allocation2 + $0x670] sm:$0xff]
    %v3055 = vld [vmem:[#allocation2 + $0x678] sm:$0xff]
    %v3056 = vld [vmem:[#allocation2 + $0x6e0] sm:$0xff]
    %v3057 = vld [vmem:[#allocation2 + $0x6e8] sm:$0xff]
    %v3058 = vld [vmem:[#allocation2 + $0x6f0] sm:$0xff]
    %v3059 = vld [vmem:[#allocation2 + $0x6f8] sm:$0xff]
    %v3060 = vld [vmem:[#allocation2 + $0x760] sm:$0xff]
    %v3061 = vld [vmem:[#allocation2 + $0x768] sm:$0xff]
    %v3062 = vld [vmem:[#allocation2 + $0x770] sm:$0xff]
    %v3063 = vld [vmem:[#allocation2 + $0x778] sm:$0xff]
    %v3064 = vld [vmem:[#allocation2 + $0x7e0] sm:$0xff]
    %v3065 = vld [vmem:[#allocation2 + $0x7e8] sm:$0xff]
    %v3066 = vld [vmem:[#allocation2 + $0x7f0] sm:$0xff]
    %v3067 = vld [vmem:[#allocation2 + $0x7f8] sm:$0xff]
    %v3068 = vld [vmem:[#allocation2 + $0x860] sm:$0xff]
    %v3069 = vld [vmem:[#allocation2 + $0x868] sm:$0xff]
    %v3070 = vld [vmem:[#allocation2 + $0x870] sm:$0xff]
    %v3071 = vld [vmem:[#allocation2 + $0x878] sm:$0xff]
    %v3072 = vld [vmem:[#allocation2 + $0x8e0] sm:$0xff]
    %v3073 = vld [vmem:[#allocation2 + $0x8e8] sm:$0xff]
    %v3074 = vld [vmem:[#allocation2 + $0x8f0] sm:$0xff]
    %v3075 = vld [vmem:[#allocation2 + $0x8f8] sm:$0xff]
    %v3076 = vld [vmem:[#allocation2 + $0x960] sm:$0xff]
    %v3077 = vld [vmem:[#allocation2 + $0x968] sm:$0xff]
    %v3078 = vld [vmem:[#allocation2 + $0x970] sm:$0xff]
    %v3079 = vld [vmem:[#allocation2 + $0x978] sm:$0xff]
    %v3080 = vld [vmem:[#allocation2 + $0x9e0] sm:$0xff]
    %v3081 = vld [vmem:[#allocation2 + $0x9e8] sm:$0xff]
    %v3082 = vld [vmem:[#allocation2 + $0x9f0] sm:$0xff]
    %v3083 = vld [vmem:[#allocation2 + $0x9f8] sm:$0xff]
    %v3084 = vld [vmem:[#allocation2 + $0xa60] sm:$0xff]
    %v3085 = vld [vmem:[#allocation2 + $0xa68] sm:$0xff]
    %v3086 = vld [vmem:[#allocation2 + $0xa70] sm:$0xff]
    %v3087 = vld [vmem:[#allocation2 + $0xa78] sm:$0xff]
    %v3088 = vld [vmem:[#allocation2 + $0xae0] sm:$0xff]
    %v3089 = vld [vmem:[#allocation2 + $0xae8] sm:$0xff]
    %v3090 = vld [vmem:[#allocation2 + $0xaf0] sm:$0xff]
    %v3091 = vld [vmem:[#allocation2 + $0xaf8] sm:$0xff]
    %v3092 = vld [vmem:[#allocation2 + $0xb60] sm:$0xff]
    %v3093 = vld [vmem:[#allocation2 + $0xb68] sm:$0xff]
    %v3094 = vld [vmem:[#allocation2 + $0xb70] sm:$0xff]
    %v3095 = vld [vmem:[#allocation2 + $0xb78] sm:$0xff]
    %v3096 = vld [vmem:[#allocation2 + $0xbe0] sm:$0xff]
    %v3097 = vld [vmem:[#allocation2 + $0xbe8] sm:$0xff]
    %v3098 = vld [vmem:[#allocation2 + $0xbf0] sm:$0xff]
    %v3099 = vld [vmem:[#allocation2 + $0xbf8] sm:$0xff]
    %v3100 = vld [vmem:[#allocation2 + $0xc60] sm:$0xff]
    %v3101 = vld [vmem:[#allocation2 + $0xc68] sm:$0xff]
    %v3102 = vld [vmem:[#allocation2 + $0xc70] sm:$0xff]
    %v3103 = vld [vmem:[#allocation2 + $0xc78] sm:$0xff]
    %v3104 = vld [vmem:[#allocation2 + $0xce0] sm:$0xff]
    %v3105 = vld [vmem:[#allocation2 + $0xce8] sm:$0xff]
    %v3106 = vld [vmem:[#allocation2 + $0xcf0] sm:$0xff]
    %v3107 = vld [vmem:[#allocation2 + $0xcf8] sm:$0xff]
    %v3108 = vld [vmem:[#allocation2 + $0xd60] sm:$0xff]
    %v3109 = vld [vmem:[#allocation2 + $0xd68] sm:$0xff]
    %v3110 = vld [vmem:[#allocation2 + $0xd70] sm:$0xff]
    %v3111 = vld [vmem:[#allocation2 + $0xd78] sm:$0xff]
    %v3112 = vld [vmem:[#allocation2 + $0xde0] sm:$0xff]
    %v3113 = vld [vmem:[#allocation2 + $0xde8] sm:$0xff]
    %v3114 = vld [vmem:[#allocation2 + $0xdf0] sm:$0xff]
    %v3115 = vld [vmem:[#allocation2 + $0xdf8] sm:$0xff]
    %v3116 = vld [vmem:[#allocation2 + $0xe60] sm:$0xff]
    %v3117 = vld [vmem:[#allocation2 + $0xe68] sm:$0xff]
    %v3118 = vld [vmem:[#allocation2 + $0xe70] sm:$0xff]
    %v3119 = vld [vmem:[#allocation2 + $0xe78] sm:$0xff]
    %v3120 = vld [vmem:[#allocation2 + $0xee0] sm:$0xff]
    %v3121 = vld [vmem:[#allocation2 + $0xee8] sm:$0xff]
    %v3122 = vld [vmem:[#allocation2 + $0xef0] sm:$0xff]
    %v3123 = vld [vmem:[#allocation2 + $0xef8] sm:$0xff]
    %v3124 = vld [vmem:[#allocation2 + $0xf60] sm:$0xff]
    %v3125 = vld [vmem:[#allocation2 + $0xf68] sm:$0xff]
    %v3126 = vld [vmem:[#allocation2 + $0xf70] sm:$0xff]
    %v3127 = vld [vmem:[#allocation2 + $0xf78] sm:$0xff]
    %v3128 = vld [vmem:[#allocation2 + $0xfe0] sm:$0xff]
    %v3129 = vld [vmem:[#allocation2 + $0xfe8] sm:$0xff]
    %v3130 = vld [vmem:[#allocation2 + $0xff0] sm:$0xff]
    %v3131 = vld [vmem:[#allocation2 + $0xff8] sm:$0xff]
    %v3260 = vunpack.c.l.b16 %v3004
    %v3261 = vunpack.c.h.b16 %v3004
    %v3262 = vunpack.c.l.b16 %v3005
    %v3263 = vunpack.c.h.b16 %v3005
    %v3264 = vunpack.c.l.b16 %v3006
    %v3265 = vunpack.c.h.b16 %v3006
    %v3266 = vunpack.c.l.b16 %v3007
    %v3267 = vunpack.c.h.b16 %v3007
    %v3268 = vunpack.c.l.b16 %v3008
    %v3269 = vunpack.c.h.b16 %v3008
    %v3270 = vunpack.c.l.b16 %v3009
    %v3271 = vunpack.c.h.b16 %v3009
    %v3272 = vunpack.c.l.b16 %v3010
    %v3273 = vunpack.c.h.b16 %v3010
    %v3274 = vunpack.c.l.b16 %v3011
    %v3275 = vunpack.c.h.b16 %v3011
    %v3276 = vunpack.c.l.b16 %v3012
    %v3277 = vunpack.c.h.b16 %v3012
    %v3278 = vunpack.c.l.b16 %v3013
    %v3279 = vunpack.c.h.b16 %v3013
    %v3280 = vunpack.c.l.b16 %v3014
    %v3281 = vunpack.c.h.b16 %v3014
    %v3282 = vunpack.c.l.b16 %v3015
    %v3283 = vunpack.c.h.b16 %v3015
    %v3284 = vunpack.c.l.b16 %v3016
    %v3285 = vunpack.c.h.b16 %v3016
    %v3286 = vunpack.c.l.b16 %v3017
    %v3287 = vunpack.c.h.b16 %v3017
    %v3288 = vunpack.c.l.b16 %v3018
    %v3289 = vunpack.c.h.b16 %v3018
    %v3290 = vunpack.c.l.b16 %v3019
    %v3291 = vunpack.c.h.b16 %v3019
    %v3292 = vunpack.c.l.b16 %v3020
    %v3293 = vunpack.c.h.b16 %v3020
    %v3294 = vunpack.c.l.b16 %v3021
    %v3295 = vunpack.c.h.b16 %v3021
    %v3296 = vunpack.c.l.b16 %v3022
    %v3297 = vunpack.c.h.b16 %v3022
    %v3298 = vunpack.c.l.b16 %v3023
    %v3299 = vunpack.c.h.b16 %v3023
    %v3300 = vunpack.c.l.b16 %v3024
    %v3301 = vunpack.c.h.b16 %v3024
    %v3302 = vunpack.c.l.b16 %v3025
    %v3303 = vunpack.c.h.b16 %v3025
    %v3304 = vunpack.c.l.b16 %v3026
    %v3305 = vunpack.c.h.b16 %v3026
    %v3306 = vunpack.c.l.b16 %v3027
    %v3307 = vunpack.c.h.b16 %v3027
    %v3308 = vunpack.c.l.b16 %v3028
    %v3309 = vunpack.c.h.b16 %v3028
    %v3310 = vunpack.c.l.b16 %v3029
    %v3311 = vunpack.c.h.b16 %v3029
    %v3312 = vunpack.c.l.b16 %v3030
    %v3313 = vunpack.c.h.b16 %v3030
    %v3314 = vunpack.c.l.b16 %v3031
    %v3315 = vunpack.c.h.b16 %v3031
    %v3316 = vunpack.c.l.b16 %v3032
    %v3317 = vunpack.c.h.b16 %v3032
    %v3318 = vunpack.c.l.b16 %v3033
    %v3319 = vunpack.c.h.b16 %v3033
    %v3320 = vunpack.c.l.b16 %v3034
    %v3321 = vunpack.c.h.b16 %v3034
    %v3322 = vunpack.c.l.b16 %v3035
    %v3323 = vunpack.c.h.b16 %v3035
    %v3324 = vunpack.c.l.b16 %v3036
    %v3325 = vunpack.c.h.b16 %v3036
    %v3326 = vunpack.c.l.b16 %v3037
    %v3327 = vunpack.c.h.b16 %v3037
    %v3328 = vunpack.c.l.b16 %v3038
    %v3329 = vunpack.c.h.b16 %v3038
    %v3330 = vunpack.c.l.b16 %v3039
    %v3331 = vunpack.c.h.b16 %v3039
    %v3332 = vunpack.c.l.b16 %v3040
    %v3333 = vunpack.c.h.b16 %v3040
    %v3334 = vunpack.c.l.b16 %v3041
    %v3335 = vunpack.c.h.b16 %v3041
    %v3336 = vunpack.c.l.b16 %v3042
    %v3337 = vunpack.c.h.b16 %v3042
    %v3338 = vunpack.c.l.b16 %v3043
    %v3339 = vunpack.c.h.b16 %v3043
    %v3340 = vunpack.c.l.b16 %v3044
    %v3341 = vunpack.c.h.b16 %v3044
    %v3342 = vunpack.c.l.b16 %v3045
    %v3343 = vunpack.c.h.b16 %v3045
    %v3344 = vunpack.c.l.b16 %v3046
    %v3345 = vunpack.c.h.b16 %v3046
    %v3346 = vunpack.c.l.b16 %v3047
    %v3347 = vunpack.c.h.b16 %v3047
    %v3348 = vunpack.c.l.b16 %v3048
    %v3349 = vunpack.c.h.b16 %v3048
    %v3350 = vunpack.c.l.b16 %v3049
    %v3351 = vunpack.c.h.b16 %v3049
    %v3352 = vunpack.c.l.b16 %v3050
    %v3353 = vunpack.c.h.b16 %v3050
    %v3354 = vunpack.c.l.b16 %v3051
    %v3355 = vunpack.c.h.b16 %v3051
    %v3356 = vunpack.c.l.b16 %v3052
    %v3357 = vunpack.c.h.b16 %v3052
    %v3358 = vunpack.c.l.b16 %v3053
    %v3359 = vunpack.c.h.b16 %v3053
    %v3360 = vunpack.c.l.b16 %v3054
    %v3361 = vunpack.c.h.b16 %v3054
    %v3362 = vunpack.c.l.b16 %v3055
    %v3363 = vunpack.c.h.b16 %v3055
    %v3364 = vunpack.c.l.b16 %v3056
    %v3365 = vunpack.c.h.b16 %v3056
    %v3366 = vunpack.c.l.b16 %v3057
    %v3367 = vunpack.c.h.b16 %v3057
    %v3368 = vunpack.c.l.b16 %v3058
    %v3369 = vunpack.c.h.b16 %v3058
    %v3370 = vunpack.c.l.b16 %v3059
    %v3371 = vunpack.c.h.b16 %v3059
    %v3372 = vunpack.c.l.b16 %v3060
    %v3373 = vunpack.c.h.b16 %v3060
    %v3374 = vunpack.c.l.b16 %v3061
    %v3375 = vunpack.c.h.b16 %v3061
    %v3376 = vunpack.c.l.b16 %v3062
    %v3377 = vunpack.c.h.b16 %v3062
    %v3378 = vunpack.c.l.b16 %v3063
    %v3379 = vunpack.c.h.b16 %v3063
    %v3380 = vunpack.c.l.b16 %v3064
    %v3381 = vunpack.c.h.b16 %v3064
    %v3382 = vunpack.c.l.b16 %v3065
    %v3383 = vunpack.c.h.b16 %v3065
    %v3384 = vunpack.c.l.b16 %v3066
    %v3385 = vunpack.c.h.b16 %v3066
    %v3386 = vunpack.c.l.b16 %v3067
    %v3387 = vunpack.c.h.b16 %v3067
    %v3388 = vunpack.c.l.b16 %v3068
    %v3389 = vunpack.c.h.b16 %v3068
    %v3390 = vunpack.c.l.b16 %v3069
    %v3391 = vunpack.c.h.b16 %v3069
    %v3392 = vunpack.c.l.b16 %v3070
    %v3393 = vunpack.c.h.b16 %v3070
    %v3394 = vunpack.c.l.b16 %v3071
    %v3395 = vunpack.c.h.b16 %v3071
    %v3396 = vunpack.c.l.b16 %v3072
    %v3397 = vunpack.c.h.b16 %v3072
    %v3398 = vunpack.c.l.b16 %v3073
    %v3399 = vunpack.c.h.b16 %v3073
    %v3400 = vunpack.c.l.b16 %v3074
    %v3401 = vunpack.c.h.b16 %v3074
    %v3402 = vunpack.c.l.b16 %v3075
    %v3403 = vunpack.c.h.b16 %v3075
    %v3404 = vunpack.c.l.b16 %v3076
    %v3405 = vunpack.c.h.b16 %v3076
    %v3406 = vunpack.c.l.b16 %v3077
    %v3407 = vunpack.c.h.b16 %v3077
    %v3408 = vunpack.c.l.b16 %v3078
    %v3409 = vunpack.c.h.b16 %v3078
    %v3410 = vunpack.c.l.b16 %v3079
    %v3411 = vunpack.c.h.b16 %v3079
    %v3412 = vunpack.c.l.b16 %v3080
    %v3413 = vunpack.c.h.b16 %v3080
    %v3414 = vunpack.c.l.b16 %v3081
    %v3415 = vunpack.c.h.b16 %v3081
    %v3416 = vunpack.c.l.b16 %v3082
    %v3417 = vunpack.c.h.b16 %v3082
    %v3418 = vunpack.c.l.b16 %v3083
    %v3419 = vunpack.c.h.b16 %v3083
    %v3420 = vunpack.c.l.b16 %v3084
    %v3421 = vunpack.c.h.b16 %v3084
    %v3422 = vunpack.c.l.b16 %v3085
    %v3423 = vunpack.c.h.b16 %v3085
    %v3424 = vunpack.c.l.b16 %v3086
    %v3425 = vunpack.c.h.b16 %v3086
    %v3426 = vunpack.c.l.b16 %v3087
    %v3427 = vunpack.c.h.b16 %v3087
    %v3428 = vunpack.c.l.b16 %v3088
    %v3429 = vunpack.c.h.b16 %v3088
    %v3430 = vunpack.c.l.b16 %v3089
    %v3431 = vunpack.c.h.b16 %v3089
    %v3432 = vunpack.c.l.b16 %v3090
    %v3433 = vunpack.c.h.b16 %v3090
    %v3434 = vunpack.c.l.b16 %v3091
    %v3435 = vunpack.c.h.b16 %v3091
    %v3436 = vunpack.c.l.b16 %v3092
    %v3437 = vunpack.c.h.b16 %v3092
    %v3438 = vunpack.c.l.b16 %v3093
    %v3439 = vunpack.c.h.b16 %v3093
    %v3440 = vunpack.c.l.b16 %v3094
    %v3441 = vunpack.c.h.b16 %v3094
    %v3442 = vunpack.c.l.b16 %v3095
    %v3443 = vunpack.c.h.b16 %v3095
    %v3444 = vunpack.c.l.b16 %v3096
    %v3445 = vunpack.c.h.b16 %v3096
    %v3446 = vunpack.c.l.b16 %v3097
    %v3447 = vunpack.c.h.b16 %v3097
    %v3448 = vunpack.c.l.b16 %v3098
    %v3449 = vunpack.c.h.b16 %v3098
    %v3450 = vunpack.c.l.b16 %v3099
    %v3451 = vunpack.c.h.b16 %v3099
    %v3452 = vunpack.c.l.b16 %v3100
    %v3453 = vunpack.c.h.b16 %v3100
    %v3454 = vunpack.c.l.b16 %v3101
    %v3455 = vunpack.c.h.b16 %v3101
    %v3456 = vunpack.c.l.b16 %v3102
    %v3457 = vunpack.c.h.b16 %v3102
    %v3458 = vunpack.c.l.b16 %v3103
    %v3459 = vunpack.c.h.b16 %v3103
    %v3460 = vunpack.c.l.b16 %v3104
    %v3461 = vunpack.c.h.b16 %v3104
    %v3462 = vunpack.c.l.b16 %v3105
    %v3463 = vunpack.c.h.b16 %v3105
    %v3464 = vunpack.c.l.b16 %v3106
    %v3465 = vunpack.c.h.b16 %v3106
    %v3466 = vunpack.c.l.b16 %v3107
    %v3467 = vunpack.c.h.b16 %v3107
    %v3468 = vunpack.c.l.b16 %v3108
    %v3469 = vunpack.c.h.b16 %v3108
    %v3470 = vunpack.c.l.b16 %v3109
    %v3471 = vunpack.c.h.b16 %v3109
    %v3472 = vunpack.c.l.b16 %v3110
    %v3473 = vunpack.c.h.b16 %v3110
    %v3474 = vunpack.c.l.b16 %v3111
    %v3475 = vunpack.c.h.b16 %v3111
    %v3476 = vunpack.c.l.b16 %v3112
    %v3477 = vunpack.c.h.b16 %v3112
    %v3478 = vunpack.c.l.b16 %v3113
    %v3479 = vunpack.c.h.b16 %v3113
    %v3480 = vunpack.c.l.b16 %v3114
    %v3481 = vunpack.c.h.b16 %v3114
    %v3482 = vunpack.c.l.b16 %v3115
    %v3483 = vunpack.c.h.b16 %v3115
    %v3484 = vunpack.c.l.b16 %v3116
    %v3485 = vunpack.c.h.b16 %v3116
    %v3486 = vunpack.c.l.b16 %v3117
    %v3487 = vunpack.c.h.b16 %v3117
    %v3488 = vunpack.c.l.b16 %v3118
    %v3489 = vunpack.c.h.b16 %v3118
    %v3490 = vunpack.c.l.b16 %v3119
    %v3491 = vunpack.c.h.b16 %v3119
    %v3492 = vunpack.c.l.b16 %v3120
    %v3493 = vunpack.c.h.b16 %v3120
    %v3494 = vunpack.c.l.b16 %v3121
    %v3495 = vunpack.c.h.b16 %v3121
    %v3496 = vunpack.c.l.b16 %v3122
    %v3497 = vunpack.c.h.b16 %v3122
    %v3498 = vunpack.c.l.b16 %v3123
    %v3499 = vunpack.c.h.b16 %v3123
    %v3500 = vunpack.c.l.b16 %v3124
    %v3501 = vunpack.c.h.b16 %v3124
    %v3502 = vunpack.c.l.b16 %v3125
    %v3503 = vunpack.c.h.b16 %v3125
    %v3504 = vunpack.c.l.b16 %v3126
    %v3505 = vunpack.c.h.b16 %v3126
    %v3506 = vunpack.c.l.b16 %v3127
    %v3507 = vunpack.c.h.b16 %v3127
    %v3508 = vunpack.c.l.b16 %v3128
    %v3509 = vunpack.c.h.b16 %v3128
    %v3510 = vunpack.c.l.b16 %v3129
    %v3511 = vunpack.c.h.b16 %v3129
    %v3512 = vunpack.c.l.b16 %v3130
    %v3513 = vunpack.c.h.b16 %v3130
    %v3514 = vunpack.c.l.b16 %v3131
    %v3515 = vunpack.c.h.b16 %v3131
    %v3516 = vpack.c.b16 %v3268, %v3260
    %v3517 = vpack.c.b16 %v3269, %v3261
    %v3518 = vpack.c.b16 %v3270, %v3262
    %v3519 = vpack.c.b16 %v3271, %v3263
    %v3520 = vpack.c.b16 %v3272, %v3264
    %v3521 = vpack.c.b16 %v3273, %v3265
    %v3522 = vpack.c.b16 %v3274, %v3266
    %v3523 = vpack.c.b16 %v3275, %v3267
    %v3524 = vpack.c.b16 %v3284, %v3276
    %v3525 = vpack.c.b16 %v3285, %v3277
    %v3526 = vpack.c.b16 %v3286, %v3278
    %v3527 = vpack.c.b16 %v3287, %v3279
    %v3528 = vpack.c.b16 %v3288, %v3280
    %v3529 = vpack.c.b16 %v3289, %v3281
    %v3530 = vpack.c.b16 %v3290, %v3282
    %v3531 = vpack.c.b16 %v3291, %v3283
    %v3532 = vpack.c.b16 %v3300, %v3292
    %v3533 = vpack.c.b16 %v3301, %v3293
    %v3534 = vpack.c.b16 %v3302, %v3294
    %v3535 = vpack.c.b16 %v3303, %v3295
    %v3536 = vpack.c.b16 %v3304, %v3296
    %v3537 = vpack.c.b16 %v3305, %v3297
    %v3538 = vpack.c.b16 %v3306, %v3298
    %v3539 = vpack.c.b16 %v3307, %v3299
    %v3540 = vpack.c.b16 %v3316, %v3308
    %v3541 = vpack.c.b16 %v3317, %v3309
    %v3542 = vpack.c.b16 %v3318, %v3310
    %v3543 = vpack.c.b16 %v3319, %v3311
    %v3544 = vpack.c.b16 %v3320, %v3312
    %v3545 = vpack.c.b16 %v3321, %v3313
    %v3546 = vpack.c.b16 %v3322, %v3314
    %v3547 = vpack.c.b16 %v3323, %v3315
    %v3548 = vpack.c.b16 %v3332, %v3324
    %v3549 = vpack.c.b16 %v3333, %v3325
    %v3550 = vpack.c.b16 %v3334, %v3326
    %v3551 = vpack.c.b16 %v3335, %v3327
    %v3552 = vpack.c.b16 %v3336, %v3328
    %v3553 = vpack.c.b16 %v3337, %v3329
    %v3554 = vpack.c.b16 %v3338, %v3330
    %v3555 = vpack.c.b16 %v3339, %v3331
    %v3556 = vpack.c.b16 %v3348, %v3340
    %v3557 = vpack.c.b16 %v3349, %v3341
    %v3558 = vpack.c.b16 %v3350, %v3342
    %v3559 = vpack.c.b16 %v3351, %v3343
    %v3560 = vpack.c.b16 %v3352, %v3344
    %v3561 = vpack.c.b16 %v3353, %v3345
    %v3562 = vpack.c.b16 %v3354, %v3346
    %v3563 = vpack.c.b16 %v3355, %v3347
    %v3564 = vpack.c.b16 %v3364, %v3356
    %v3565 = vpack.c.b16 %v3365, %v3357
    %v3566 = vpack.c.b16 %v3366, %v3358
    %v3567 = vpack.c.b16 %v3367, %v3359
    %v3568 = vpack.c.b16 %v3368, %v3360
    %v3569 = vpack.c.b16 %v3369, %v3361
    %v3570 = vpack.c.b16 %v3370, %v3362
    %v3571 = vpack.c.b16 %v3371, %v3363
    %v3572 = vpack.c.b16 %v3380, %v3372
    %v3573 = vpack.c.b16 %v3381, %v3373
    %v3574 = vpack.c.b16 %v3382, %v3374
    %v3575 = vpack.c.b16 %v3383, %v3375
    %v3576 = vpack.c.b16 %v3384, %v3376
    %v3577 = vpack.c.b16 %v3385, %v3377
    %v3578 = vpack.c.b16 %v3386, %v3378
    %v3579 = vpack.c.b16 %v3387, %v3379
    %v3580 = vpack.c.b16 %v3396, %v3388
    %v3581 = vpack.c.b16 %v3397, %v3389
    %v3582 = vpack.c.b16 %v3398, %v3390
    %v3583 = vpack.c.b16 %v3399, %v3391
    %v3584 = vpack.c.b16 %v3400, %v3392
    %v3585 = vpack.c.b16 %v3401, %v3393
    %v3586 = vpack.c.b16 %v3402, %v3394
    %v3587 = vpack.c.b16 %v3403, %v3395
    %v3588 = vpack.c.b16 %v3412, %v3404
    %v3589 = vpack.c.b16 %v3413, %v3405
    %v3590 = vpack.c.b16 %v3414, %v3406
    %v3591 = vpack.c.b16 %v3415, %v3407
    %v3592 = vpack.c.b16 %v3416, %v3408
    %v3593 = vpack.c.b16 %v3417, %v3409
    %v3594 = vpack.c.b16 %v3418, %v3410
    %v3595 = vpack.c.b16 %v3419, %v3411
    %v3596 = vpack.c.b16 %v3428, %v3420
    %v3597 = vpack.c.b16 %v3429, %v3421
    %v3598 = vpack.c.b16 %v3430, %v3422
    %v3599 = vpack.c.b16 %v3431, %v3423
    %v3600 = vpack.c.b16 %v3432, %v3424
    %v3601 = vpack.c.b16 %v3433, %v3425
    %v3602 = vpack.c.b16 %v3434, %v3426
    %v3603 = vpack.c.b16 %v3435, %v3427
    %v3604 = vpack.c.b16 %v3444, %v3436
    %v3605 = vpack.c.b16 %v3445, %v3437
    %v3606 = vpack.c.b16 %v3446, %v3438
    %v3607 = vpack.c.b16 %v3447, %v3439
    %v3608 = vpack.c.b16 %v3448, %v3440
    %v3609 = vpack.c.b16 %v3449, %v3441
    %v3610 = vpack.c.b16 %v3450, %v3442
    %v3611 = vpack.c.b16 %v3451, %v3443
    %v3612 = vpack.c.b16 %v3460, %v3452
    %v3613 = vpack.c.b16 %v3461, %v3453
    %v3614 = vpack.c.b16 %v3462, %v3454
    %v3615 = vpack.c.b16 %v3463, %v3455
    %v3616 = vpack.c.b16 %v3464, %v3456
    %v3617 = vpack.c.b16 %v3465, %v3457
    %v3618 = vpack.c.b16 %v3466, %v3458
    %v3619 = vpack.c.b16 %v3467, %v3459
    %v3620 = vpack.c.b16 %v3476, %v3468
    %v3621 = vpack.c.b16 %v3477, %v3469
    %v3622 = vpack.c.b16 %v3478, %v3470
    %v3623 = vpack.c.b16 %v3479, %v3471
    %v3624 = vpack.c.b16 %v3480, %v3472
    %v3625 = vpack.c.b16 %v3481, %v3473
    %v3626 = vpack.c.b16 %v3482, %v3474
    %v3627 = vpack.c.b16 %v3483, %v3475
    %v3628 = vpack.c.b16 %v3492, %v3484
    %v3629 = vpack.c.b16 %v3493, %v3485
    %v3630 = vpack.c.b16 %v3494, %v3486
    %v3631 = vpack.c.b16 %v3495, %v3487
    %v3632 = vpack.c.b16 %v3496, %v3488
    %v3633 = vpack.c.b16 %v3497, %v3489
    %v3634 = vpack.c.b16 %v3498, %v3490
    %v3635 = vpack.c.b16 %v3499, %v3491
    %v3636 = vpack.c.b16 %v3508, %v3500
    %v3637 = vpack.c.b16 %v3509, %v3501
    %v3638 = vpack.c.b16 %v3510, %v3502
    %v3639 = vpack.c.b16 %v3511, %v3503
    %v3640 = vpack.c.b16 %v3512, %v3504
    %v3641 = vpack.c.b16 %v3513, %v3505
    %v3642 = vpack.c.b16 %v3514, %v3506
    %v3643 = vpack.c.b16 %v3515, %v3507
    %3772 = vmatprep.subr.bf16.mxu0 %v3573
    %3773 = vmatpush1.bf16.msra.mxu0 %v3572
    %3774 = vmatprep.subr.bf16.mxu0 %v3565
    %3775 = vmatpush1.bf16.msra.mxu0 %v3564
    %3776 = vmatprep.subr.bf16.mxu0 %v3557
    %3777 = vmatpush1.bf16.msra.mxu0 %v3556
    %3778 = vmatprep.subr.bf16.mxu0 %v3549
    %3779 = vmatpush1.bf16.msra.mxu0 %v3548
    %3780 = vmatprep.subr.bf16.mxu0 %v3541
    %3781 = vmatpush1.bf16.msra.mxu0 %v3540
    %3782 = vmatprep.subr.bf16.mxu0 %v3533
    %3783 = vmatpush1.bf16.msra.mxu0 %v3532
    %3784 = vmatprep.subr.bf16.mxu0 %v3525
    %3785 = vmatpush1.bf16.msra.mxu0 %v3524
    %3786 = vmatprep.subr.bf16.mxu0 %v3517
    %3787 = vmatpush1.bf16.msra.mxu0 %v3516
    %3788 = vmatprep.subr.bf16.mxu0 %v3637
    %3789 = vmatpush2.bf16.msra.mxu0 %v3636
    %3790 = vmatprep.subr.bf16.mxu0 %v3629
    %3791 = vmatpush2.bf16.msra.mxu0 %v3628
    %3792 = vmatprep.subr.bf16.mxu0 %v3621
    %3793 = vmatpush2.bf16.msra.mxu0 %v3620
    %3794 = vmatprep.subr.bf16.mxu0 %v3613
    %3795 = vmatpush2.bf16.msra.mxu0 %v3612
    %3796 = vmatprep.subr.bf16.mxu0 %v3605
    %3797 = vmatpush2.bf16.msra.mxu0 %v3604
    %3798 = vmatprep.subr.bf16.mxu0 %v3597
    %3799 = vmatpush2.bf16.msra.mxu0 %v3596
    %3800 = vmatprep.subr.bf16.mxu0 %v3589
    %3801 = vmatpush2.bf16.msra.mxu0 %v3588
    %3802 = vmatprep.subr.bf16.mxu0 %v3581
    %3803 = vmatpush2.bf16.msra.mxu0 %v3580
    %3804 = vmatprep.mubr.bf16.mxu0 %v317
    %3805 = vmatmul.mubr.bf16.gmra.mxu0 %v310
    %v3806 = vpop.f32.mrf.mxu0
    %v3807 = vadd.f32 0.0, %v3806
    %v3808 = vpop.f32.mrf.mxu0
    %v3809 = vadd.f32 0.0, %v3808
    %v3810 = vpop.f32.mrf.mxu0
    %v3811 = vpop.f32.mrf.mxu0
    %3812 = vdwg.mxu0
    %3813 = vmatprep.subr.bf16.mxu0 %v3575
    %3814 = vmatpush1.bf16.msra.mxu0 %v3574
    %3815 = vmatprep.subr.bf16.mxu0 %v3567
    %3816 = vmatpush1.bf16.msra.mxu0 %v3566
    %3817 = vmatprep.subr.bf16.mxu0 %v3559
    %3818 = vmatpush1.bf16.msra.mxu0 %v3558
    %3819 = vmatprep.subr.bf16.mxu0 %v3551
    %3820 = vmatpush1.bf16.msra.mxu0 %v3550
    %3821 = vmatprep.subr.bf16.mxu0 %v3543
    %3822 = vmatpush1.bf16.msra.mxu0 %v3542
    %3823 = vmatprep.subr.bf16.mxu0 %v3535
    %3824 = vmatpush1.bf16.msra.mxu0 %v3534
    %3825 = vmatprep.subr.bf16.mxu0 %v3527
    %3826 = vmatpush1.bf16.msra.mxu0 %v3526
    %3827 = vmatprep.subr.bf16.mxu0 %v3519
    %3828 = vmatpush1.bf16.msra.mxu0 %v3518
    %3829 = vmatprep.subr.bf16.mxu0 %v3639
    %3830 = vmatpush2.bf16.msra.mxu0 %v3638
    %3831 = vmatprep.subr.bf16.mxu0 %v3631
    %3832 = vmatpush2.bf16.msra.mxu0 %v3630
    %3833 = vmatprep.subr.bf16.mxu0 %v3623
    %3834 = vmatpush2.bf16.msra.mxu0 %v3622
    %3835 = vmatprep.subr.bf16.mxu0 %v3615
    %3836 = vmatpush2.bf16.msra.mxu0 %v3614
    %3837 = vmatprep.subr.bf16.mxu0 %v3607
    %3838 = vmatpush2.bf16.msra.mxu0 %v3606
    %3839 = vmatprep.subr.bf16.mxu0 %v3599
    %3840 = vmatpush2.bf16.msra.mxu0 %v3598
    %3841 = vmatprep.subr.bf16.mxu0 %v3591
    %3842 = vmatpush2.bf16.msra.mxu0 %v3590
    %3843 = vmatprep.subr.bf16.mxu0 %v3583
    %3844 = vmatpush2.bf16.msra.mxu0 %v3582
    %3845 = vmatprep.mubr.bf16.mxu0 %v317
    %3846 = vmatmul.mubr.bf16.gmra.mxu0 %v310
    %v3847 = vpop.f32.mrf.mxu0
    %v3848 = vadd.f32 0.0, %v3847
    %v3849 = vpop.f32.mrf.mxu0
    %v3850 = vadd.f32 0.0, %v3849
    %v3851 = vpop.f32.mrf.mxu0
    %v3852 = vpop.f32.mrf.mxu0
    %3853 = vdwg.mxu0
    %3854 = vmatprep.subr.bf16.mxu0 %v3577
    %3855 = vmatpush1.bf16.msra.mxu0 %v3576
    %3856 = vmatprep.subr.bf16.mxu0 %v3569
    %3857 = vmatpush1.bf16.msra.mxu0 %v3568
    %3858 = vmatprep.subr.bf16.mxu0 %v3561
    %3859 = vmatpush1.bf16.msra.mxu0 %v3560
    %3860 = vmatprep.subr.bf16.mxu0 %v3553
    %3861 = vmatpush1.bf16.msra.mxu0 %v3552
    %3862 = vmatprep.subr.bf16.mxu0 %v3545
    %3863 = vmatpush1.bf16.msra.mxu0 %v3544
    %3864 = vmatprep.subr.bf16.mxu0 %v3537
    %3865 = vmatpush1.bf16.msra.mxu0 %v3536
    %3866 = vmatprep.subr.bf16.mxu0 %v3529
    %3867 = vmatpush1.bf16.msra.mxu0 %v3528
    %3868 = vmatprep.subr.bf16.mxu0 %v3521
    %3869 = vmatpush1.bf16.msra.mxu0 %v3520
    %3870 = vmatprep.subr.bf16.mxu0 %v3641
    %3871 = vmatpush2.bf16.msra.mxu0 %v3640
    %3872 = vmatprep.subr.bf16.mxu0 %v3633
    %3873 = vmatpush2.bf16.msra.mxu0 %v3632
    %3874 = vmatprep.subr.bf16.mxu0 %v3625
    %3875 = vmatpush2.bf16.msra.mxu0 %v3624
    %3876 = vmatprep.subr.bf16.mxu0 %v3617
    %3877 = vmatpush2.bf16.msra.mxu0 %v3616
    %3878 = vmatprep.subr.bf16.mxu0 %v3609
    %3879 = vmatpush2.bf16.msra.mxu0 %v3608
    %3880 = vmatprep.subr.bf16.mxu0 %v3601
    %3881 = vmatpush2.bf16.msra.mxu0 %v3600
    %3882 = vmatprep.subr.bf16.mxu0 %v3593
    %3883 = vmatpush2.bf16.msra.mxu0 %v3592
    %3884 = vmatprep.subr.bf16.mxu0 %v3585
    %3885 = vmatpush2.bf16.msra.mxu0 %v3584
    %3886 = vmatprep.mubr.bf16.mxu0 %v317
    %3887 = vmatmul.mubr.bf16.gmra.mxu0 %v310
    %v3888 = vpop.f32.mrf.mxu0
    %v3889 = vadd.f32 0.0, %v3888
    %v3890 = vpop.f32.mrf.mxu0
    %v3891 = vadd.f32 0.0, %v3890
    %v3892 = vpop.f32.mrf.mxu0
    %v3893 = vpop.f32.mrf.mxu0
    %3894 = vdwg.mxu0
    %3895 = vmatprep.subr.bf16.mxu0 %v3579
    %3896 = vmatpush1.bf16.msra.mxu0 %v3578
    %3897 = vmatprep.subr.bf16.mxu0 %v3571
    %3898 = vmatpush1.bf16.msra.mxu0 %v3570
    %3899 = vmatprep.subr.bf16.mxu0 %v3563
    %3900 = vmatpush1.bf16.msra.mxu0 %v3562
    %3901 = vmatprep.subr.bf16.mxu0 %v3555
    %3902 = vmatpush1.bf16.msra.mxu0 %v3554
    %3903 = vmatprep.subr.bf16.mxu0 %v3547
    %3904 = vmatpush1.bf16.msra.mxu0 %v3546
    %3905 = vmatprep.subr.bf16.mxu0 %v3539
    %3906 = vmatpush1.bf16.msra.mxu0 %v3538
    %3907 = vmatprep.subr.bf16.mxu0 %v3531
    %3908 = vmatpush1.bf16.msra.mxu0 %v3530
    %3909 = vmatprep.subr.bf16.mxu0 %v3523
    %3910 = vmatpush1.bf16.msra.mxu0 %v3522
    %3911 = vmatprep.subr.bf16.mxu0 %v3643
    %3912 = vmatpush2.bf16.msra.mxu0 %v3642
    %3913 = vmatprep.subr.bf16.mxu0 %v3635
    %3914 = vmatpush2.bf16.msra.mxu0 %v3634
    %3915 = vmatprep.subr.bf16.mxu0 %v3627
    %3916 = vmatpush2.bf16.msra.mxu0 %v3626
    %3917 = vmatprep.subr.bf16.mxu0 %v3619
    %3918 = vmatpush2.bf16.msra.mxu0 %v3618
    %3919 = vmatprep.subr.bf16.mxu0 %v3611
    %3920 = vmatpush2.bf16.msra.mxu0 %v3610
    %3921 = vmatprep.subr.bf16.mxu0 %v3603
    %3922 = vmatpush2.bf16.msra.mxu0 %v3602
    %3923 = vmatprep.subr.bf16.mxu0 %v3595
    %3924 = vmatpush2.bf16.msra.mxu0 %v3594
    %3925 = vmatprep.subr.bf16.mxu0 %v3587
    %3926 = vmatpush2.bf16.msra.mxu0 %v3586
    %3927 = vmatprep.mubr.bf16.mxu0 %v317
    %3928 = vmatmul.mubr.bf16.gmra.mxu0 %v310
    %v3929 = vpop.f32.mrf.mxu0
    %v3930 = vadd.f32 0.0, %v3929
    %v3931 = vpop.f32.mrf.mxu0
    %v3932 = vadd.f32 0.0, %v3931
    %v3933 = vpop.f32.mrf.mxu0
    %v3934 = vpop.f32.mrf.mxu0
    %3935 = vdwg.mxu0
    %v3936 = vmax.f32 %v2996, %v3807
    %v3937 = vmax.f32 %v2997, %v3809
    %v3938 = vmax.f32 %v2998, %v3848
    %v3939 = vmax.f32 %v2999, %v3850
    %v3940 = vmax.f32 %v3000, %v3889
    %v3941 = vmax.f32 %v3001, %v3891
    %v3942 = vmax.f32 %v3002, %v3930
    %v3943 = vmax.f32 %v3003, %v3932
    %v3944 = vld [vmem:[#allocation5] sm:$0xff]
    %v3946 = vlaneseq
    %v3947 = vshrl.u32 %v3946, 7
    %v3948 = vsub.s32 0, %v3947
    %v3949 = vrot.slane %v3944, %v3948
    %v3950 = vlaneseq
    %v3951 = vshrl.u32 %v3950, 7
    %v3952 = vsub.s32 1, %v3951
    %v3953 = vrot.slane %v3944, %v3952
    %v3954 = vlaneseq
    %v3955 = vshrl.u32 %v3954, 7
    %v3956 = vsub.s32 2, %v3955
    %v3957 = vrot.slane %v3944, %v3956
    %v3958 = vlaneseq
    %v3959 = vshrl.u32 %v3958, 7
    %v3960 = vsub.s32 3, %v3959
    %v3961 = vrot.slane %v3944, %v3960
    %v3962 = vlaneseq
    %v3963 = vshrl.u32 %v3962, 7
    %v3964 = vsub.s32 4, %v3963
    %v3965 = vrot.slane %v3944, %v3964
    %v3966 = vlaneseq
    %v3967 = vshrl.u32 %v3966, 7
    %v3968 = vsub.s32 5, %v3967
    %v3969 = vrot.slane %v3944, %v3968
    %v3970 = vlaneseq
    %v3971 = vshrl.u32 %v3970, 7
    %v3972 = vsub.s32 6, %v3971
    %v3973 = vrot.slane %v3944, %v3972
    %v3974 = vlaneseq
    %v3975 = vshrl.u32 %v3974, 7
    %v3976 = vsub.s32 7, %v3975
    %v3977 = vrot.slane %v3944, %v3976
    %v3986 = vadd.f32 %v3936, %v3949
    %v3987 = vadd.f32 %v3937, %v3953
    %v3988 = vadd.f32 %v3938, %v3957
    %v3989 = vadd.f32 %v3939, %v3961
    %v3990 = vadd.f32 %v3940, %v3965
    %v3991 = vadd.f32 %v3941, %v3969
    %v3992 = vadd.f32 %v3942, %v3973
    %v3993 = vadd.f32 %v3943, %v3977
    %v3994 = vmax.f32 %v3986, 0.0
    %v3995 = vmax.f32 %v3987, 0.0
    %v3996 = vmax.f32 %v3988, 0.0
    %v3997 = vmax.f32 %v3989, 0.0
    %v3998 = vmax.f32 %v3990, 0.0
    %v3999 = vmax.f32 %v3991, 0.0
    %v4000 = vmax.f32 %v3992, 0.0
    %v4001 = vmax.f32 %v3993, 0.0
    %v4002 = vpack.c.bf16 %v3994, %v3994
    %v4003 = vpack.c.bf16 %v3995, %v3995
    %v4004 = vpack.c.bf16 %v3996, %v3996
    %v4005 = vpack.c.bf16 %v3997, %v3997
    %v4006 = vpack.c.bf16 %v3998, %v3998
    %v4007 = vpack.c.bf16 %v3999, %v3999
    %v4008 = vpack.c.bf16 %v4000, %v4000
    %v4009 = vpack.c.bf16 %v4001, %v4001
    %v4010 = vld [vmem:[#allocation7] sm:$0xff]
    %v4011 = vld [vmem:[#allocation7 + $0x8] sm:$0xff]
    %v4012 = vld [vmem:[#allocation7 + $0x10] sm:$0xff]
    %v4013 = vld [vmem:[#allocation7 + $0x18] sm:$0xff]
    %v4014 = vld [vmem:[#allocation7 + $0x20] sm:$0xff]
    %v4015 = vld [vmem:[#allocation7 + $0x28] sm:$0xff]
    %v4016 = vld [vmem:[#allocation7 + $0x30] sm:$0xff]
    %v4017 = vld [vmem:[#allocation7 + $0x38] sm:$0xff]
    %v4018 = vld [vmem:[#allocation7 + $0x40] sm:$0xff]
    %v4019 = vld [vmem:[#allocation7 + $0x48] sm:$0xff]
    %v4020 = vld [vmem:[#allocation7 + $0x50] sm:$0xff]
    %v4021 = vld [vmem:[#allocation7 + $0x58] sm:$0xff]
    %v4022 = vld [vmem:[#allocation7 + $0x60] sm:$0xff]
    %v4023 = vld [vmem:[#allocation7 + $0x68] sm:$0xff]
    %v4024 = vld [vmem:[#allocation7 + $0x70] sm:$0xff]
    %v4025 = vld [vmem:[#allocation7 + $0x78] sm:$0xff]
    %v4026 = vld [vmem:[#allocation7 + $0x80] sm:$0xff]
    %v4027 = vld [vmem:[#allocation7 + $0x88] sm:$0xff]
    %v4028 = vld [vmem:[#allocation7 + $0x90] sm:$0xff]
    %v4029 = vld [vmem:[#allocation7 + $0x98] sm:$0xff]
    %v4030 = vld [vmem:[#allocation7 + $0xa0] sm:$0xff]
    %v4031 = vld [vmem:[#allocation7 + $0xa8] sm:$0xff]
    %v4032 = vld [vmem:[#allocation7 + $0xb0] sm:$0xff]
    %v4033 = vld [vmem:[#allocation7 + $0xb8] sm:$0xff]
    %v4034 = vld [vmem:[#allocation7 + $0xc0] sm:$0xff]
    %v4035 = vld [vmem:[#allocation7 + $0xc8] sm:$0xff]
    %v4036 = vld [vmem:[#allocation7 + $0xd0] sm:$0xff]
    %v4037 = vld [vmem:[#allocation7 + $0xd8] sm:$0xff]
    %v4038 = vld [vmem:[#allocation7 + $0xe0] sm:$0xff]
    %v4039 = vld [vmem:[#allocation7 + $0xe8] sm:$0xff]
    %v4040 = vld [vmem:[#allocation7 + $0xf0] sm:$0xff]
    %v4041 = vld [vmem:[#allocation7 + $0xf8] sm:$0xff]
    %v4042 = vld [vmem:[#allocation7 + $0x100] sm:$0xff]
    %v4043 = vld [vmem:[#allocation7 + $0x108] sm:$0xff]
    %v4044 = vld [vmem:[#allocation7 + $0x110] sm:$0xff]
    %v4045 = vld [vmem:[#allocation7 + $0x118] sm:$0xff]
    %v4046 = vld [vmem:[#allocation7 + $0x120] sm:$0xff]
    %v4047 = vld [vmem:[#allocation7 + $0x128] sm:$0xff]
    %v4048 = vld [vmem:[#allocation7 + $0x130] sm:$0xff]
    %v4049 = vld [vmem:[#allocation7 + $0x138] sm:$0xff]
    %v4050 = vld [vmem:[#allocation7 + $0x140] sm:$0xff]
    %v4051 = vld [vmem:[#allocation7 + $0x148] sm:$0xff]
    %v4052 = vld [vmem:[#allocation7 + $0x150] sm:$0xff]
    %v4053 = vld [vmem:[#allocation7 + $0x158] sm:$0xff]
    %v4054 = vld [vmem:[#allocation7 + $0x160] sm:$0xff]
    %v4055 = vld [vmem:[#allocation7 + $0x168] sm:$0xff]
    %v4056 = vld [vmem:[#allocation7 + $0x170] sm:$0xff]
    %v4057 = vld [vmem:[#allocation7 + $0x178] sm:$0xff]
    %v4058 = vld [vmem:[#allocation7 + $0x180] sm:$0xff]
    %v4059 = vld [vmem:[#allocation7 + $0x188] sm:$0xff]
    %v4060 = vld [vmem:[#allocation7 + $0x190] sm:$0xff]
    %v4061 = vld [vmem:[#allocation7 + $0x198] sm:$0xff]
    %v4062 = vld [vmem:[#allocation7 + $0x1a0] sm:$0xff]
    %v4063 = vld [vmem:[#allocation7 + $0x1a8] sm:$0xff]
    %v4064 = vld [vmem:[#allocation7 + $0x1b0] sm:$0xff]
    %v4065 = vld [vmem:[#allocation7 + $0x1b8] sm:$0xff]
    %v4066 = vld [vmem:[#allocation7 + $0x1c0] sm:$0xff]
    %v4067 = vld [vmem:[#allocation7 + $0x1c8] sm:$0xff]
    %v4068 = vld [vmem:[#allocation7 + $0x1d0] sm:$0xff]
    %v4069 = vld [vmem:[#allocation7 + $0x1d8] sm:$0xff]
    %v4070 = vld [vmem:[#allocation7 + $0x1e0] sm:$0xff]
    %v4071 = vld [vmem:[#allocation7 + $0x1e8] sm:$0xff]
    %v4072 = vld [vmem:[#allocation7 + $0x1f0] sm:$0xff]
    %v4073 = vld [vmem:[#allocation7 + $0x1f8] sm:$0xff]
    %v4074 = vld [vmem:[#allocation7 + $0x200] sm:$0xff]
    %v4075 = vld [vmem:[#allocation7 + $0x208] sm:$0xff]
    %v4076 = vld [vmem:[#allocation7 + $0x210] sm:$0xff]
    %v4077 = vld [vmem:[#allocation7 + $0x218] sm:$0xff]
    %v4078 = vld [vmem:[#allocation7 + $0x220] sm:$0xff]
    %v4079 = vld [vmem:[#allocation7 + $0x228] sm:$0xff]
    %v4080 = vld [vmem:[#allocation7 + $0x230] sm:$0xff]
    %v4081 = vld [vmem:[#allocation7 + $0x238] sm:$0xff]
    %v4082 = vld [vmem:[#allocation7 + $0x240] sm:$0xff]
    %v4083 = vld [vmem:[#allocation7 + $0x248] sm:$0xff]
    %v4084 = vld [vmem:[#allocation7 + $0x250] sm:$0xff]
    %v4085 = vld [vmem:[#allocation7 + $0x258] sm:$0xff]
    %v4086 = vld [vmem:[#allocation7 + $0x260] sm:$0xff]
    %v4087 = vld [vmem:[#allocation7 + $0x268] sm:$0xff]
    %v4088 = vld [vmem:[#allocation7 + $0x270] sm:$0xff]
    %v4089 = vld [vmem:[#allocation7 + $0x278] sm:$0xff]
    %v4090 = vld [vmem:[#allocation7 + $0x280] sm:$0xff]
    %v4091 = vld [vmem:[#allocation7 + $0x288] sm:$0xff]
    %v4092 = vld [vmem:[#allocation7 + $0x290] sm:$0xff]
    %v4093 = vld [vmem:[#allocation7 + $0x298] sm:$0xff]
    %v4094 = vld [vmem:[#allocation7 + $0x2a0] sm:$0xff]
    %v4095 = vld [vmem:[#allocation7 + $0x2a8] sm:$0xff]
    %v4096 = vld [vmem:[#allocation7 + $0x2b0] sm:$0xff]
    %v4097 = vld [vmem:[#allocation7 + $0x2b8] sm:$0xff]
    %v4098 = vld [vmem:[#allocation7 + $0x2c0] sm:$0xff]
    %v4099 = vld [vmem:[#allocation7 + $0x2c8] sm:$0xff]
    %v4100 = vld [vmem:[#allocation7 + $0x2d0] sm:$0xff]
    %v4101 = vld [vmem:[#allocation7 + $0x2d8] sm:$0xff]
    %v4102 = vld [vmem:[#allocation7 + $0x2e0] sm:$0xff]
    %v4103 = vld [vmem:[#allocation7 + $0x2e8] sm:$0xff]
    %v4104 = vld [vmem:[#allocation7 + $0x2f0] sm:$0xff]
    %v4105 = vld [vmem:[#allocation7 + $0x2f8] sm:$0xff]
    %v4106 = vld [vmem:[#allocation7 + $0x300] sm:$0xff]
    %v4107 = vld [vmem:[#allocation7 + $0x308] sm:$0xff]
    %v4108 = vld [vmem:[#allocation7 + $0x310] sm:$0xff]
    %v4109 = vld [vmem:[#allocation7 + $0x318] sm:$0xff]
    %v4110 = vld [vmem:[#allocation7 + $0x320] sm:$0xff]
    %v4111 = vld [vmem:[#allocation7 + $0x328] sm:$0xff]
    %v4112 = vld [vmem:[#allocation7 + $0x330] sm:$0xff]
    %v4113 = vld [vmem:[#allocation7 + $0x338] sm:$0xff]
    %v4114 = vld [vmem:[#allocation7 + $0x340] sm:$0xff]
    %v4115 = vld [vmem:[#allocation7 + $0x348] sm:$0xff]
    %v4116 = vld [vmem:[#allocation7 + $0x350] sm:$0xff]
    %v4117 = vld [vmem:[#allocation7 + $0x358] sm:$0xff]
    %v4118 = vld [vmem:[#allocation7 + $0x360] sm:$0xff]
    %v4119 = vld [vmem:[#allocation7 + $0x368] sm:$0xff]
    %v4120 = vld [vmem:[#allocation7 + $0x370] sm:$0xff]
    %v4121 = vld [vmem:[#allocation7 + $0x378] sm:$0xff]
    %v4122 = vld [vmem:[#allocation7 + $0x380] sm:$0xff]
    %v4123 = vld [vmem:[#allocation7 + $0x388] sm:$0xff]
    %v4124 = vld [vmem:[#allocation7 + $0x390] sm:$0xff]
    %v4125 = vld [vmem:[#allocation7 + $0x398] sm:$0xff]
    %v4126 = vld [vmem:[#allocation7 + $0x3a0] sm:$0xff]
    %v4127 = vld [vmem:[#allocation7 + $0x3a8] sm:$0xff]
    %v4128 = vld [vmem:[#allocation7 + $0x3b0] sm:$0xff]
    %v4129 = vld [vmem:[#allocation7 + $0x3b8] sm:$0xff]
    %v4130 = vld [vmem:[#allocation7 + $0x3c0] sm:$0xff]
    %v4131 = vld [vmem:[#allocation7 + $0x3c8] sm:$0xff]
    %v4132 = vld [vmem:[#allocation7 + $0x3d0] sm:$0xff]
    %v4133 = vld [vmem:[#allocation7 + $0x3d8] sm:$0xff]
    %v4134 = vld [vmem:[#allocation7 + $0x3e0] sm:$0xff]
    %v4135 = vld [vmem:[#allocation7 + $0x3e8] sm:$0xff]
    %v4136 = vld [vmem:[#allocation7 + $0x3f0] sm:$0xff]
    %v4137 = vld [vmem:[#allocation7 + $0x3f8] sm:$0xff]
    %v4138 = vld [vmem:[#allocation7 + $0x400] sm:$0xff]
    %v4139 = vld [vmem:[#allocation7 + $0x408] sm:$0xff]
    %v4140 = vld [vmem:[#allocation7 + $0x410] sm:$0xff]
    %v4141 = vld [vmem:[#allocation7 + $0x418] sm:$0xff]
    %v4142 = vld [vmem:[#allocation7 + $0x420] sm:$0xff]
    %v4143 = vld [vmem:[#allocation7 + $0x428] sm:$0xff]
    %v4144 = vld [vmem:[#allocation7 + $0x430] sm:$0xff]
    %v4145 = vld [vmem:[#allocation7 + $0x438] sm:$0xff]
    %v4146 = vld [vmem:[#allocation7 + $0x440] sm:$0xff]
    %v4147 = vld [vmem:[#allocation7 + $0x448] sm:$0xff]
    %v4148 = vld [vmem:[#allocation7 + $0x450] sm:$0xff]
    %v4149 = vld [vmem:[#allocation7 + $0x458] sm:$0xff]
    %v4150 = vld [vmem:[#allocation7 + $0x460] sm:$0xff]
    %v4151 = vld [vmem:[#allocation7 + $0x468] sm:$0xff]
    %v4152 = vld [vmem:[#allocation7 + $0x470] sm:$0xff]
    %v4153 = vld [vmem:[#allocation7 + $0x478] sm:$0xff]
    %v4154 = vld [vmem:[#allocation7 + $0x480] sm:$0xff]
    %v4155 = vld [vmem:[#allocation7 + $0x488] sm:$0xff]
    %v4156 = vld [vmem:[#allocation7 + $0x490] sm:$0xff]
    %v4157 = vld [vmem:[#allocation7 + $0x498] sm:$0xff]
    %v4158 = vld [vmem:[#allocation7 + $0x4a0] sm:$0xff]
    %v4159 = vld [vmem:[#allocation7 + $0x4a8] sm:$0xff]
    %v4160 = vld [vmem:[#allocation7 + $0x4b0] sm:$0xff]
    %v4161 = vld [vmem:[#allocation7 + $0x4b8] sm:$0xff]
    %v4162 = vld [vmem:[#allocation7 + $0x4c0] sm:$0xff]
    %v4163 = vld [vmem:[#allocation7 + $0x4c8] sm:$0xff]
    %v4164 = vld [vmem:[#allocation7 + $0x4d0] sm:$0xff]
    %v4165 = vld [vmem:[#allocation7 + $0x4d8] sm:$0xff]
    %v4166 = vld [vmem:[#allocation7 + $0x4e0] sm:$0xff]
    %v4167 = vld [vmem:[#allocation7 + $0x4e8] sm:$0xff]
    %v4168 = vld [vmem:[#allocation7 + $0x4f0] sm:$0xff]
    %v4169 = vld [vmem:[#allocation7 + $0x4f8] sm:$0xff]
    %v4170 = vld [vmem:[#allocation7 + $0x500] sm:$0xff]
    %v4171 = vld [vmem:[#allocation7 + $0x508] sm:$0xff]
    %v4172 = vld [vmem:[#allocation7 + $0x510] sm:$0xff]
    %v4173 = vld [vmem:[#allocation7 + $0x518] sm:$0xff]
    %v4174 = vld [vmem:[#allocation7 + $0x520] sm:$0xff]
    %v4175 = vld [vmem:[#allocation7 + $0x528] sm:$0xff]
    %v4176 = vld [vmem:[#allocation7 + $0x530] sm:$0xff]
    %v4177 = vld [vmem:[#allocation7 + $0x538] sm:$0xff]
    %v4178 = vld [vmem:[#allocation7 + $0x540] sm:$0xff]
    %v4179 = vld [vmem:[#allocation7 + $0x548] sm:$0xff]
    %v4180 = vld [vmem:[#allocation7 + $0x550] sm:$0xff]
    %v4181 = vld [vmem:[#allocation7 + $0x558] sm:$0xff]
    %v4182 = vld [vmem:[#allocation7 + $0x560] sm:$0xff]
    %v4183 = vld [vmem:[#allocation7 + $0x568] sm:$0xff]
    %v4184 = vld [vmem:[#allocation7 + $0x570] sm:$0xff]
    %v4185 = vld [vmem:[#allocation7 + $0x578] sm:$0xff]
    %v4186 = vld [vmem:[#allocation7 + $0x580] sm:$0xff]
    %v4187 = vld [vmem:[#allocation7 + $0x588] sm:$0xff]
    %v4188 = vld [vmem:[#allocation7 + $0x590] sm:$0xff]
    %v4189 = vld [vmem:[#allocation7 + $0x598] sm:$0xff]
    %v4190 = vld [vmem:[#allocation7 + $0x5a0] sm:$0xff]
    %v4191 = vld [vmem:[#allocation7 + $0x5a8] sm:$0xff]
    %v4192 = vld [vmem:[#allocation7 + $0x5b0] sm:$0xff]
    %v4193 = vld [vmem:[#allocation7 + $0x5b8] sm:$0xff]
    %v4194 = vld [vmem:[#allocation7 + $0x5c0] sm:$0xff]
    %v4195 = vld [vmem:[#allocation7 + $0x5c8] sm:$0xff]
    %v4196 = vld [vmem:[#allocation7 + $0x5d0] sm:$0xff]
    %v4197 = vld [vmem:[#allocation7 + $0x5d8] sm:$0xff]
    %v4198 = vld [vmem:[#allocation7 + $0x5e0] sm:$0xff]
    %v4199 = vld [vmem:[#allocation7 + $0x5e8] sm:$0xff]
    %v4200 = vld [vmem:[#allocation7 + $0x5f0] sm:$0xff]
    %v4201 = vld [vmem:[#allocation7 + $0x5f8] sm:$0xff]
    %v4202 = vld [vmem:[#allocation7 + $0x600] sm:$0xff]
    %v4203 = vld [vmem:[#allocation7 + $0x608] sm:$0xff]
    %v4204 = vld [vmem:[#allocation7 + $0x610] sm:$0xff]
    %v4205 = vld [vmem:[#allocation7 + $0x618] sm:$0xff]
    %v4206 = vld [vmem:[#allocation7 + $0x620] sm:$0xff]
    %v4207 = vld [vmem:[#allocation7 + $0x628] sm:$0xff]
    %v4208 = vld [vmem:[#allocation7 + $0x630] sm:$0xff]
    %v4209 = vld [vmem:[#allocation7 + $0x638] sm:$0xff]
    %v4210 = vld [vmem:[#allocation7 + $0x640] sm:$0xff]
    %v4211 = vld [vmem:[#allocation7 + $0x648] sm:$0xff]
    %v4212 = vld [vmem:[#allocation7 + $0x650] sm:$0xff]
    %v4213 = vld [vmem:[#allocation7 + $0x658] sm:$0xff]
    %v4214 = vld [vmem:[#allocation7 + $0x660] sm:$0xff]
    %v4215 = vld [vmem:[#allocation7 + $0x668] sm:$0xff]
    %v4216 = vld [vmem:[#allocation7 + $0x670] sm:$0xff]
    %v4217 = vld [vmem:[#allocation7 + $0x678] sm:$0xff]
    %v4218 = vld [vmem:[#allocation7 + $0x680] sm:$0xff]
    %v4219 = vld [vmem:[#allocation7 + $0x688] sm:$0xff]
    %v4220 = vld [vmem:[#allocation7 + $0x690] sm:$0xff]
    %v4221 = vld [vmem:[#allocation7 + $0x698] sm:$0xff]
    %v4222 = vld [vmem:[#allocation7 + $0x6a0] sm:$0xff]
    %v4223 = vld [vmem:[#allocation7 + $0x6a8] sm:$0xff]
    %v4224 = vld [vmem:[#allocation7 + $0x6b0] sm:$0xff]
    %v4225 = vld [vmem:[#allocation7 + $0x6b8] sm:$0xff]
    %v4226 = vld [vmem:[#allocation7 + $0x6c0] sm:$0xff]
    %v4227 = vld [vmem:[#allocation7 + $0x6c8] sm:$0xff]
    %v4228 = vld [vmem:[#allocation7 + $0x6d0] sm:$0xff]
    %v4229 = vld [vmem:[#allocation7 + $0x6d8] sm:$0xff]
    %v4230 = vld [vmem:[#allocation7 + $0x6e0] sm:$0xff]
    %v4231 = vld [vmem:[#allocation7 + $0x6e8] sm:$0xff]
    %v4232 = vld [vmem:[#allocation7 + $0x6f0] sm:$0xff]
    %v4233 = vld [vmem:[#allocation7 + $0x6f8] sm:$0xff]
    %v4234 = vld [vmem:[#allocation7 + $0x700] sm:$0xff]
    %v4235 = vld [vmem:[#allocation7 + $0x708] sm:$0xff]
    %v4236 = vld [vmem:[#allocation7 + $0x710] sm:$0xff]
    %v4237 = vld [vmem:[#allocation7 + $0x718] sm:$0xff]
    %v4238 = vld [vmem:[#allocation7 + $0x720] sm:$0xff]
    %v4239 = vld [vmem:[#allocation7 + $0x728] sm:$0xff]
    %v4240 = vld [vmem:[#allocation7 + $0x730] sm:$0xff]
    %v4241 = vld [vmem:[#allocation7 + $0x738] sm:$0xff]
    %v4242 = vld [vmem:[#allocation7 + $0x740] sm:$0xff]
    %v4243 = vld [vmem:[#allocation7 + $0x748] sm:$0xff]
    %v4244 = vld [vmem:[#allocation7 + $0x750] sm:$0xff]
    %v4245 = vld [vmem:[#allocation7 + $0x758] sm:$0xff]
    %v4246 = vld [vmem:[#allocation7 + $0x760] sm:$0xff]
    %v4247 = vld [vmem:[#allocation7 + $0x768] sm:$0xff]
    %v4248 = vld [vmem:[#allocation7 + $0x770] sm:$0xff]
    %v4249 = vld [vmem:[#allocation7 + $0x778] sm:$0xff]
    %v4250 = vld [vmem:[#allocation7 + $0x780] sm:$0xff]
    %v4251 = vld [vmem:[#allocation7 + $0x788] sm:$0xff]
    %v4252 = vld [vmem:[#allocation7 + $0x790] sm:$0xff]
    %v4253 = vld [vmem:[#allocation7 + $0x798] sm:$0xff]
    %v4254 = vld [vmem:[#allocation7 + $0x7a0] sm:$0xff]
    %v4255 = vld [vmem:[#allocation7 + $0x7a8] sm:$0xff]
    %v4256 = vld [vmem:[#allocation7 + $0x7b0] sm:$0xff]
    %v4257 = vld [vmem:[#allocation7 + $0x7b8] sm:$0xff]
    %v4258 = vld [vmem:[#allocation7 + $0x7c0] sm:$0xff]
    %v4259 = vld [vmem:[#allocation7 + $0x7c8] sm:$0xff]
    %v4260 = vld [vmem:[#allocation7 + $0x7d0] sm:$0xff]
    %v4261 = vld [vmem:[#allocation7 + $0x7d8] sm:$0xff]
    %v4262 = vld [vmem:[#allocation7 + $0x7e0] sm:$0xff]
    %v4263 = vld [vmem:[#allocation7 + $0x7e8] sm:$0xff]
    %v4264 = vld [vmem:[#allocation7 + $0x7f0] sm:$0xff]
    %v4265 = vld [vmem:[#allocation7 + $0x7f8] sm:$0xff]
    %v4522 = vunpack.c.l.b16 %v4010
    %v4523 = vunpack.c.h.b16 %v4010
    %v4524 = vunpack.c.l.b16 %v4011
    %v4525 = vunpack.c.h.b16 %v4011
    %v4526 = vunpack.c.l.b16 %v4012
    %v4527 = vunpack.c.h.b16 %v4012
    %v4528 = vunpack.c.l.b16 %v4013
    %v4529 = vunpack.c.h.b16 %v4013
    %v4530 = vunpack.c.l.b16 %v4014
    %v4531 = vunpack.c.h.b16 %v4014
    %v4532 = vunpack.c.l.b16 %v4015
    %v4533 = vunpack.c.h.b16 %v4015
    %v4534 = vunpack.c.l.b16 %v4016
    %v4535 = vunpack.c.h.b16 %v4016
    %v4536 = vunpack.c.l.b16 %v4017
    %v4537 = vunpack.c.h.b16 %v4017
    %v4538 = vunpack.c.l.b16 %v4018
    %v4539 = vunpack.c.h.b16 %v4018
    %v4540 = vunpack.c.l.b16 %v4019
    %v4541 = vunpack.c.h.b16 %v4019
    %v4542 = vunpack.c.l.b16 %v4020
    %v4543 = vunpack.c.h.b16 %v4020
    %v4544 = vunpack.c.l.b16 %v4021
    %v4545 = vunpack.c.h.b16 %v4021
    %v4546 = vunpack.c.l.b16 %v4022
    %v4547 = vunpack.c.h.b16 %v4022
    %v4548 = vunpack.c.l.b16 %v4023
    %v4549 = vunpack.c.h.b16 %v4023
    %v4550 = vunpack.c.l.b16 %v4024
    %v4551 = vunpack.c.h.b16 %v4024
    %v4552 = vunpack.c.l.b16 %v4025
    %v4553 = vunpack.c.h.b16 %v4025
    %v4554 = vunpack.c.l.b16 %v4026
    %v4555 = vunpack.c.h.b16 %v4026
    %v4556 = vunpack.c.l.b16 %v4027
    %v4557 = vunpack.c.h.b16 %v4027
    %v4558 = vunpack.c.l.b16 %v4028
    %v4559 = vunpack.c.h.b16 %v4028
    %v4560 = vunpack.c.l.b16 %v4029
    %v4561 = vunpack.c.h.b16 %v4029
    %v4562 = vunpack.c.l.b16 %v4030
    %v4563 = vunpack.c.h.b16 %v4030
    %v4564 = vunpack.c.l.b16 %v4031
    %v4565 = vunpack.c.h.b16 %v4031
    %v4566 = vunpack.c.l.b16 %v4032
    %v4567 = vunpack.c.h.b16 %v4032
    %v4568 = vunpack.c.l.b16 %v4033
    %v4569 = vunpack.c.h.b16 %v4033
    %v4570 = vunpack.c.l.b16 %v4034
    %v4571 = vunpack.c.h.b16 %v4034
    %v4572 = vunpack.c.l.b16 %v4035
    %v4573 = vunpack.c.h.b16 %v4035
    %v4574 = vunpack.c.l.b16 %v4036
    %v4575 = vunpack.c.h.b16 %v4036
    %v4576 = vunpack.c.l.b16 %v4037
    %v4577 = vunpack.c.h.b16 %v4037
    %v4578 = vunpack.c.l.b16 %v4038
    %v4579 = vunpack.c.h.b16 %v4038
    %v4580 = vunpack.c.l.b16 %v4039
    %v4581 = vunpack.c.h.b16 %v4039
    %v4582 = vunpack.c.l.b16 %v4040
    %v4583 = vunpack.c.h.b16 %v4040
    %v4584 = vunpack.c.l.b16 %v4041
    %v4585 = vunpack.c.h.b16 %v4041
    %v4586 = vunpack.c.l.b16 %v4042
    %v4587 = vunpack.c.h.b16 %v4042
    %v4588 = vunpack.c.l.b16 %v4043
    %v4589 = vunpack.c.h.b16 %v4043
    %v4590 = vunpack.c.l.b16 %v4044
    %v4591 = vunpack.c.h.b16 %v4044
    %v4592 = vunpack.c.l.b16 %v4045
    %v4593 = vunpack.c.h.b16 %v4045
    %v4594 = vunpack.c.l.b16 %v4046
    %v4595 = vunpack.c.h.b16 %v4046
    %v4596 = vunpack.c.l.b16 %v4047
    %v4597 = vunpack.c.h.b16 %v4047
    %v4598 = vunpack.c.l.b16 %v4048
    %v4599 = vunpack.c.h.b16 %v4048
    %v4600 = vunpack.c.l.b16 %v4049
    %v4601 = vunpack.c.h.b16 %v4049
    %v4602 = vunpack.c.l.b16 %v4050
    %v4603 = vunpack.c.h.b16 %v4050
    %v4604 = vunpack.c.l.b16 %v4051
    %v4605 = vunpack.c.h.b16 %v4051
    %v4606 = vunpack.c.l.b16 %v4052
    %v4607 = vunpack.c.h.b16 %v4052
    %v4608 = vunpack.c.l.b16 %v4053
    %v4609 = vunpack.c.h.b16 %v4053
    %v4610 = vunpack.c.l.b16 %v4054
    %v4611 = vunpack.c.h.b16 %v4054
    %v4612 = vunpack.c.l.b16 %v4055
    %v4613 = vunpack.c.h.b16 %v4055
    %v4614 = vunpack.c.l.b16 %v4056
    %v4615 = vunpack.c.h.b16 %v4056
    %v4616 = vunpack.c.l.b16 %v4057
    %v4617 = vunpack.c.h.b16 %v4057
    %v4618 = vunpack.c.l.b16 %v4058
    %v4619 = vunpack.c.h.b16 %v4058
    %v4620 = vunpack.c.l.b16 %v4059
    %v4621 = vunpack.c.h.b16 %v4059
    %v4622 = vunpack.c.l.b16 %v4060
    %v4623 = vunpack.c.h.b16 %v4060
    %v4624 = vunpack.c.l.b16 %v4061
    %v4625 = vunpack.c.h.b16 %v4061
    %v4626 = vunpack.c.l.b16 %v4062
    %v4627 = vunpack.c.h.b16 %v4062
    %v4628 = vunpack.c.l.b16 %v4063
    %v4629 = vunpack.c.h.b16 %v4063
    %v4630 = vunpack.c.l.b16 %v4064
    %v4631 = vunpack.c.h.b16 %v4064
    %v4632 = vunpack.c.l.b16 %v4065
    %v4633 = vunpack.c.h.b16 %v4065
    %v4634 = vunpack.c.l.b16 %v4066
    %v4635 = vunpack.c.h.b16 %v4066
    %v4636 = vunpack.c.l.b16 %v4067
    %v4637 = vunpack.c.h.b16 %v4067
    %v4638 = vunpack.c.l.b16 %v4068
    %v4639 = vunpack.c.h.b16 %v4068
    %v4640 = vunpack.c.l.b16 %v4069
    %v4641 = vunpack.c.h.b16 %v4069
    %v4642 = vunpack.c.l.b16 %v4070
    %v4643 = vunpack.c.h.b16 %v4070
    %v4644 = vunpack.c.l.b16 %v4071
    %v4645 = vunpack.c.h.b16 %v4071
    %v4646 = vunpack.c.l.b16 %v4072
    %v4647 = vunpack.c.h.b16 %v4072
    %v4648 = vunpack.c.l.b16 %v4073
    %v4649 = vunpack.c.h.b16 %v4073
    %v4650 = vunpack.c.l.b16 %v4074
    %v4651 = vunpack.c.h.b16 %v4074
    %v4652 = vunpack.c.l.b16 %v4075
    %v4653 = vunpack.c.h.b16 %v4075
    %v4654 = vunpack.c.l.b16 %v4076
    %v4655 = vunpack.c.h.b16 %v4076
    %v4656 = vunpack.c.l.b16 %v4077
    %v4657 = vunpack.c.h.b16 %v4077
    %v4658 = vunpack.c.l.b16 %v4078
    %v4659 = vunpack.c.h.b16 %v4078
    %v4660 = vunpack.c.l.b16 %v4079
    %v4661 = vunpack.c.h.b16 %v4079
    %v4662 = vunpack.c.l.b16 %v4080
    %v4663 = vunpack.c.h.b16 %v4080
    %v4664 = vunpack.c.l.b16 %v4081
    %v4665 = vunpack.c.h.b16 %v4081
    %v4666 = vunpack.c.l.b16 %v4082
    %v4667 = vunpack.c.h.b16 %v4082
    %v4668 = vunpack.c.l.b16 %v4083
    %v4669 = vunpack.c.h.b16 %v4083
    %v4670 = vunpack.c.l.b16 %v4084
    %v4671 = vunpack.c.h.b16 %v4084
    %v4672 = vunpack.c.l.b16 %v4085
    %v4673 = vunpack.c.h.b16 %v4085
    %v4674 = vunpack.c.l.b16 %v4086
    %v4675 = vunpack.c.h.b16 %v4086
    %v4676 = vunpack.c.l.b16 %v4087
    %v4677 = vunpack.c.h.b16 %v4087
    %v4678 = vunpack.c.l.b16 %v4088
    %v4679 = vunpack.c.h.b16 %v4088
    %v4680 = vunpack.c.l.b16 %v4089
    %v4681 = vunpack.c.h.b16 %v4089
    %v4682 = vunpack.c.l.b16 %v4090
    %v4683 = vunpack.c.h.b16 %v4090
    %v4684 = vunpack.c.l.b16 %v4091
    %v4685 = vunpack.c.h.b16 %v4091
    %v4686 = vunpack.c.l.b16 %v4092
    %v4687 = vunpack.c.h.b16 %v4092
    %v4688 = vunpack.c.l.b16 %v4093
    %v4689 = vunpack.c.h.b16 %v4093
    %v4690 = vunpack.c.l.b16 %v4094
    %v4691 = vunpack.c.h.b16 %v4094
    %v4692 = vunpack.c.l.b16 %v4095
    %v4693 = vunpack.c.h.b16 %v4095
    %v4694 = vunpack.c.l.b16 %v4096
    %v4695 = vunpack.c.h.b16 %v4096
    %v4696 = vunpack.c.l.b16 %v4097
    %v4697 = vunpack.c.h.b16 %v4097
    %v4698 = vunpack.c.l.b16 %v4098
    %v4699 = vunpack.c.h.b16 %v4098
    %v4700 = vunpack.c.l.b16 %v4099
    %v4701 = vunpack.c.h.b16 %v4099
    %v4702 = vunpack.c.l.b16 %v4100
    %v4703 = vunpack.c.h.b16 %v4100
    %v4704 = vunpack.c.l.b16 %v4101
    %v4705 = vunpack.c.h.b16 %v4101
    %v4706 = vunpack.c.l.b16 %v4102
    %v4707 = vunpack.c.h.b16 %v4102
    %v4708 = vunpack.c.l.b16 %v4103
    %v4709 = vunpack.c.h.b16 %v4103
    %v4710 = vunpack.c.l.b16 %v4104
    %v4711 = vunpack.c.h.b16 %v4104
    %v4712 = vunpack.c.l.b16 %v4105
    %v4713 = vunpack.c.h.b16 %v4105
    %v4714 = vunpack.c.l.b16 %v4106
    %v4715 = vunpack.c.h.b16 %v4106
    %v4716 = vunpack.c.l.b16 %v4107
    %v4717 = vunpack.c.h.b16 %v4107
    %v4718 = vunpack.c.l.b16 %v4108
    %v4719 = vunpack.c.h.b16 %v4108
    %v4720 = vunpack.c.l.b16 %v4109
    %v4721 = vunpack.c.h.b16 %v4109
    %v4722 = vunpack.c.l.b16 %v4110
    %v4723 = vunpack.c.h.b16 %v4110
    %v4724 = vunpack.c.l.b16 %v4111
    %v4725 = vunpack.c.h.b16 %v4111
    %v4726 = vunpack.c.l.b16 %v4112
    %v4727 = vunpack.c.h.b16 %v4112
    %v4728 = vunpack.c.l.b16 %v4113
    %v4729 = vunpack.c.h.b16 %v4113
    %v4730 = vunpack.c.l.b16 %v4114
    %v4731 = vunpack.c.h.b16 %v4114
    %v4732 = vunpack.c.l.b16 %v4115
    %v4733 = vunpack.c.h.b16 %v4115
    %v4734 = vunpack.c.l.b16 %v4116
    %v4735 = vunpack.c.h.b16 %v4116
    %v4736 = vunpack.c.l.b16 %v4117
    %v4737 = vunpack.c.h.b16 %v4117
    %v4738 = vunpack.c.l.b16 %v4118
    %v4739 = vunpack.c.h.b16 %v4118
    %v4740 = vunpack.c.l.b16 %v4119
    %v4741 = vunpack.c.h.b16 %v4119
    %v4742 = vunpack.c.l.b16 %v4120
    %v4743 = vunpack.c.h.b16 %v4120
    %v4744 = vunpack.c.l.b16 %v4121
    %v4745 = vunpack.c.h.b16 %v4121
    %v4746 = vunpack.c.l.b16 %v4122
    %v4747 = vunpack.c.h.b16 %v4122
    %v4748 = vunpack.c.l.b16 %v4123
    %v4749 = vunpack.c.h.b16 %v4123
    %v4750 = vunpack.c.l.b16 %v4124
    %v4751 = vunpack.c.h.b16 %v4124
    %v4752 = vunpack.c.l.b16 %v4125
    %v4753 = vunpack.c.h.b16 %v4125
    %v4754 = vunpack.c.l.b16 %v4126
    %v4755 = vunpack.c.h.b16 %v4126
    %v4756 = vunpack.c.l.b16 %v4127
    %v4757 = vunpack.c.h.b16 %v4127
    %v4758 = vunpack.c.l.b16 %v4128
    %v4759 = vunpack.c.h.b16 %v4128
    %v4760 = vunpack.c.l.b16 %v4129
    %v4761 = vunpack.c.h.b16 %v4129
    %v4762 = vunpack.c.l.b16 %v4130
    %v4763 = vunpack.c.h.b16 %v4130
    %v4764 = vunpack.c.l.b16 %v4131
    %v4765 = vunpack.c.h.b16 %v4131
    %v4766 = vunpack.c.l.b16 %v4132
    %v4767 = vunpack.c.h.b16 %v4132
    %v4768 = vunpack.c.l.b16 %v4133
    %v4769 = vunpack.c.h.b16 %v4133
    %v4770 = vunpack.c.l.b16 %v4134
    %v4771 = vunpack.c.h.b16 %v4134
    %v4772 = vunpack.c.l.b16 %v4135
    %v4773 = vunpack.c.h.b16 %v4135
    %v4774 = vunpack.c.l.b16 %v4136
    %v4775 = vunpack.c.h.b16 %v4136
    %v4776 = vunpack.c.l.b16 %v4137
    %v4777 = vunpack.c.h.b16 %v4137
    %v4778 = vunpack.c.l.b16 %v4138
    %v4779 = vunpack.c.h.b16 %v4138
    %v4780 = vunpack.c.l.b16 %v4139
    %v4781 = vunpack.c.h.b16 %v4139
    %v4782 = vunpack.c.l.b16 %v4140
    %v4783 = vunpack.c.h.b16 %v4140
    %v4784 = vunpack.c.l.b16 %v4141
    %v4785 = vunpack.c.h.b16 %v4141
    %v4786 = vunpack.c.l.b16 %v4142
    %v4787 = vunpack.c.h.b16 %v4142
    %v4788 = vunpack.c.l.b16 %v4143
    %v4789 = vunpack.c.h.b16 %v4143
    %v4790 = vunpack.c.l.b16 %v4144
    %v4791 = vunpack.c.h.b16 %v4144
    %v4792 = vunpack.c.l.b16 %v4145
    %v4793 = vunpack.c.h.b16 %v4145
    %v4794 = vunpack.c.l.b16 %v4146
    %v4795 = vunpack.c.h.b16 %v4146
    %v4796 = vunpack.c.l.b16 %v4147
    %v4797 = vunpack.c.h.b16 %v4147
    %v4798 = vunpack.c.l.b16 %v4148
    %v4799 = vunpack.c.h.b16 %v4148
    %v4800 = vunpack.c.l.b16 %v4149
    %v4801 = vunpack.c.h.b16 %v4149
    %v4802 = vunpack.c.l.b16 %v4150
    %v4803 = vunpack.c.h.b16 %v4150
    %v4804 = vunpack.c.l.b16 %v4151
    %v4805 = vunpack.c.h.b16 %v4151
    %v4806 = vunpack.c.l.b16 %v4152
    %v4807 = vunpack.c.h.b16 %v4152
    %v4808 = vunpack.c.l.b16 %v4153
    %v4809 = vunpack.c.h.b16 %v4153
    %v4810 = vunpack.c.l.b16 %v4154
    %v4811 = vunpack.c.h.b16 %v4154
    %v4812 = vunpack.c.l.b16 %v4155
    %v4813 = vunpack.c.h.b16 %v4155
    %v4814 = vunpack.c.l.b16 %v4156
    %v4815 = vunpack.c.h.b16 %v4156
    %v4816 = vunpack.c.l.b16 %v4157
    %v4817 = vunpack.c.h.b16 %v4157
    %v4818 = vunpack.c.l.b16 %v4158
    %v4819 = vunpack.c.h.b16 %v4158
    %v4820 = vunpack.c.l.b16 %v4159
    %v4821 = vunpack.c.h.b16 %v4159
    %v4822 = vunpack.c.l.b16 %v4160
    %v4823 = vunpack.c.h.b16 %v4160
    %v4824 = vunpack.c.l.b16 %v4161
    %v4825 = vunpack.c.h.b16 %v4161
    %v4826 = vunpack.c.l.b16 %v4162
    %v4827 = vunpack.c.h.b16 %v4162
    %v4828 = vunpack.c.l.b16 %v4163
    %v4829 = vunpack.c.h.b16 %v4163
    %v4830 = vunpack.c.l.b16 %v4164
    %v4831 = vunpack.c.h.b16 %v4164
    %v4832 = vunpack.c.l.b16 %v4165
    %v4833 = vunpack.c.h.b16 %v4165
    %v4834 = vunpack.c.l.b16 %v4166
    %v4835 = vunpack.c.h.b16 %v4166
    %v4836 = vunpack.c.l.b16 %v4167
    %v4837 = vunpack.c.h.b16 %v4167
    %v4838 = vunpack.c.l.b16 %v4168
    %v4839 = vunpack.c.h.b16 %v4168
    %v4840 = vunpack.c.l.b16 %v4169
    %v4841 = vunpack.c.h.b16 %v4169
    %v4842 = vunpack.c.l.b16 %v4170
    %v4843 = vunpack.c.h.b16 %v4170
    %v4844 = vunpack.c.l.b16 %v4171
    %v4845 = vunpack.c.h.b16 %v4171
    %v4846 = vunpack.c.l.b16 %v4172
    %v4847 = vunpack.c.h.b16 %v4172
    %v4848 = vunpack.c.l.b16 %v4173
    %v4849 = vunpack.c.h.b16 %v4173
    %v4850 = vunpack.c.l.b16 %v4174
    %v4851 = vunpack.c.h.b16 %v4174
    %v4852 = vunpack.c.l.b16 %v4175
    %v4853 = vunpack.c.h.b16 %v4175
    %v4854 = vunpack.c.l.b16 %v4176
    %v4855 = vunpack.c.h.b16 %v4176
    %v4856 = vunpack.c.l.b16 %v4177
    %v4857 = vunpack.c.h.b16 %v4177
    %v4858 = vunpack.c.l.b16 %v4178
    %v4859 = vunpack.c.h.b16 %v4178
    %v4860 = vunpack.c.l.b16 %v4179
    %v4861 = vunpack.c.h.b16 %v4179
    %v4862 = vunpack.c.l.b16 %v4180
    %v4863 = vunpack.c.h.b16 %v4180
    %v4864 = vunpack.c.l.b16 %v4181
    %v4865 = vunpack.c.h.b16 %v4181
    %v4866 = vunpack.c.l.b16 %v4182
    %v4867 = vunpack.c.h.b16 %v4182
    %v4868 = vunpack.c.l.b16 %v4183
    %v4869 = vunpack.c.h.b16 %v4183
    %v4870 = vunpack.c.l.b16 %v4184
    %v4871 = vunpack.c.h.b16 %v4184
    %v4872 = vunpack.c.l.b16 %v4185
    %v4873 = vunpack.c.h.b16 %v4185
    %v4874 = vunpack.c.l.b16 %v4186
    %v4875 = vunpack.c.h.b16 %v4186
    %v4876 = vunpack.c.l.b16 %v4187
    %v4877 = vunpack.c.h.b16 %v4187
    %v4878 = vunpack.c.l.b16 %v4188
    %v4879 = vunpack.c.h.b16 %v4188
    %v4880 = vunpack.c.l.b16 %v4189
    %v4881 = vunpack.c.h.b16 %v4189
    %v4882 = vunpack.c.l.b16 %v4190
    %v4883 = vunpack.c.h.b16 %v4190
    %v4884 = vunpack.c.l.b16 %v4191
    %v4885 = vunpack.c.h.b16 %v4191
    %v4886 = vunpack.c.l.b16 %v4192
    %v4887 = vunpack.c.h.b16 %v4192
    %v4888 = vunpack.c.l.b16 %v4193
    %v4889 = vunpack.c.h.b16 %v4193
    %v4890 = vunpack.c.l.b16 %v4194
    %v4891 = vunpack.c.h.b16 %v4194
    %v4892 = vunpack.c.l.b16 %v4195
    %v4893 = vunpack.c.h.b16 %v4195
    %v4894 = vunpack.c.l.b16 %v4196
    %v4895 = vunpack.c.h.b16 %v4196
    %v4896 = vunpack.c.l.b16 %v4197
    %v4897 = vunpack.c.h.b16 %v4197
    %v4898 = vunpack.c.l.b16 %v4198
    %v4899 = vunpack.c.h.b16 %v4198
    %v4900 = vunpack.c.l.b16 %v4199
    %v4901 = vunpack.c.h.b16 %v4199
    %v4902 = vunpack.c.l.b16 %v4200
    %v4903 = vunpack.c.h.b16 %v4200
    %v4904 = vunpack.c.l.b16 %v4201
    %v4905 = vunpack.c.h.b16 %v4201
    %v4906 = vunpack.c.l.b16 %v4202
    %v4907 = vunpack.c.h.b16 %v4202
    %v4908 = vunpack.c.l.b16 %v4203
    %v4909 = vunpack.c.h.b16 %v4203
    %v4910 = vunpack.c.l.b16 %v4204
    %v4911 = vunpack.c.h.b16 %v4204
    %v4912 = vunpack.c.l.b16 %v4205
    %v4913 = vunpack.c.h.b16 %v4205
    %v4914 = vunpack.c.l.b16 %v4206
    %v4915 = vunpack.c.h.b16 %v4206
    %v4916 = vunpack.c.l.b16 %v4207
    %v4917 = vunpack.c.h.b16 %v4207
    %v4918 = vunpack.c.l.b16 %v4208
    %v4919 = vunpack.c.h.b16 %v4208
    %v4920 = vunpack.c.l.b16 %v4209
    %v4921 = vunpack.c.h.b16 %v4209
    %v4922 = vunpack.c.l.b16 %v4210
    %v4923 = vunpack.c.h.b16 %v4210
    %v4924 = vunpack.c.l.b16 %v4211
    %v4925 = vunpack.c.h.b16 %v4211
    %v4926 = vunpack.c.l.b16 %v4212
    %v4927 = vunpack.c.h.b16 %v4212
    %v4928 = vunpack.c.l.b16 %v4213
    %v4929 = vunpack.c.h.b16 %v4213
    %v4930 = vunpack.c.l.b16 %v4214
    %v4931 = vunpack.c.h.b16 %v4214
    %v4932 = vunpack.c.l.b16 %v4215
    %v4933 = vunpack.c.h.b16 %v4215
    %v4934 = vunpack.c.l.b16 %v4216
    %v4935 = vunpack.c.h.b16 %v4216
    %v4936 = vunpack.c.l.b16 %v4217
    %v4937 = vunpack.c.h.b16 %v4217
    %v4938 = vunpack.c.l.b16 %v4218
    %v4939 = vunpack.c.h.b16 %v4218
    %v4940 = vunpack.c.l.b16 %v4219
    %v4941 = vunpack.c.h.b16 %v4219
    %v4942 = vunpack.c.l.b16 %v4220
    %v4943 = vunpack.c.h.b16 %v4220
    %v4944 = vunpack.c.l.b16 %v4221
    %v4945 = vunpack.c.h.b16 %v4221
    %v4946 = vunpack.c.l.b16 %v4222
    %v4947 = vunpack.c.h.b16 %v4222
    %v4948 = vunpack.c.l.b16 %v4223
    %v4949 = vunpack.c.h.b16 %v4223
    %v4950 = vunpack.c.l.b16 %v4224
    %v4951 = vunpack.c.h.b16 %v4224
    %v4952 = vunpack.c.l.b16 %v4225
    %v4953 = vunpack.c.h.b16 %v4225
    %v4954 = vunpack.c.l.b16 %v4226
    %v4955 = vunpack.c.h.b16 %v4226
    %v4956 = vunpack.c.l.b16 %v4227
    %v4957 = vunpack.c.h.b16 %v4227
    %v4958 = vunpack.c.l.b16 %v4228
    %v4959 = vunpack.c.h.b16 %v4228
    %v4960 = vunpack.c.l.b16 %v4229
    %v4961 = vunpack.c.h.b16 %v4229
    %v4962 = vunpack.c.l.b16 %v4230
    %v4963 = vunpack.c.h.b16 %v4230
    %v4964 = vunpack.c.l.b16 %v4231
    %v4965 = vunpack.c.h.b16 %v4231
    %v4966 = vunpack.c.l.b16 %v4232
    %v4967 = vunpack.c.h.b16 %v4232
    %v4968 = vunpack.c.l.b16 %v4233
    %v4969 = vunpack.c.h.b16 %v4233
    %v4970 = vunpack.c.l.b16 %v4234
    %v4971 = vunpack.c.h.b16 %v4234
    %v4972 = vunpack.c.l.b16 %v4235
    %v4973 = vunpack.c.h.b16 %v4235
    %v4974 = vunpack.c.l.b16 %v4236
    %v4975 = vunpack.c.h.b16 %v4236
    %v4976 = vunpack.c.l.b16 %v4237
    %v4977 = vunpack.c.h.b16 %v4237
    %v4978 = vunpack.c.l.b16 %v4238
    %v4979 = vunpack.c.h.b16 %v4238
    %v4980 = vunpack.c.l.b16 %v4239
    %v4981 = vunpack.c.h.b16 %v4239
    %v4982 = vunpack.c.l.b16 %v4240
    %v4983 = vunpack.c.h.b16 %v4240
    %v4984 = vunpack.c.l.b16 %v4241
    %v4985 = vunpack.c.h.b16 %v4241
    %v4986 = vunpack.c.l.b16 %v4242
    %v4987 = vunpack.c.h.b16 %v4242
    %v4988 = vunpack.c.l.b16 %v4243
    %v4989 = vunpack.c.h.b16 %v4243
    %v4990 = vunpack.c.l.b16 %v4244
    %v4991 = vunpack.c.h.b16 %v4244
    %v4992 = vunpack.c.l.b16 %v4245
    %v4993 = vunpack.c.h.b16 %v4245
    %v4994 = vunpack.c.l.b16 %v4246
    %v4995 = vunpack.c.h.b16 %v4246
    %v4996 = vunpack.c.l.b16 %v4247
    %v4997 = vunpack.c.h.b16 %v4247
    %v4998 = vunpack.c.l.b16 %v4248
    %v4999 = vunpack.c.h.b16 %v4248
    %v5000 = vunpack.c.l.b16 %v4249
    %v5001 = vunpack.c.h.b16 %v4249
    %v5002 = vunpack.c.l.b16 %v4250
    %v5003 = vunpack.c.h.b16 %v4250
    %v5004 = vunpack.c.l.b16 %v4251
    %v5005 = vunpack.c.h.b16 %v4251
    %v5006 = vunpack.c.l.b16 %v4252
    %v5007 = vunpack.c.h.b16 %v4252
    %v5008 = vunpack.c.l.b16 %v4253
    %v5009 = vunpack.c.h.b16 %v4253
    %v5010 = vunpack.c.l.b16 %v4254
    %v5011 = vunpack.c.h.b16 %v4254
    %v5012 = vunpack.c.l.b16 %v4255
    %v5013 = vunpack.c.h.b16 %v4255
    %v5014 = vunpack.c.l.b16 %v4256
    %v5015 = vunpack.c.h.b16 %v4256
    %v5016 = vunpack.c.l.b16 %v4257
    %v5017 = vunpack.c.h.b16 %v4257
    %v5018 = vunpack.c.l.b16 %v4258
    %v5019 = vunpack.c.h.b16 %v4258
    %v5020 = vunpack.c.l.b16 %v4259
    %v5021 = vunpack.c.h.b16 %v4259
    %v5022 = vunpack.c.l.b16 %v4260
    %v5023 = vunpack.c.h.b16 %v4260
    %v5024 = vunpack.c.l.b16 %v4261
    %v5025 = vunpack.c.h.b16 %v4261
    %v5026 = vunpack.c.l.b16 %v4262
    %v5027 = vunpack.c.h.b16 %v4262
    %v5028 = vunpack.c.l.b16 %v4263
    %v5029 = vunpack.c.h.b16 %v4263
    %v5030 = vunpack.c.l.b16 %v4264
    %v5031 = vunpack.c.h.b16 %v4264
    %v5032 = vunpack.c.l.b16 %v4265
    %v5033 = vunpack.c.h.b16 %v4265
    %v5034 = vpack.c.b16 %v4526, %v4522
    %v5035 = vpack.c.b16 %v4527, %v4523
    %v5036 = vpack.c.b16 %v4528, %v4524
    %v5037 = vpack.c.b16 %v4529, %v4525
    %v5038 = vpack.c.b16 %v4534, %v4530
    %v5039 = vpack.c.b16 %v4535, %v4531
    %v5040 = vpack.c.b16 %v4536, %v4532
    %v5041 = vpack.c.b16 %v4537, %v4533
    %v5042 = vpack.c.b16 %v4542, %v4538
    %v5043 = vpack.c.b16 %v4543, %v4539
    %v5044 = vpack.c.b16 %v4544, %v4540
    %v5045 = vpack.c.b16 %v4545, %v4541
    %v5046 = vpack.c.b16 %v4550, %v4546
    %v5047 = vpack.c.b16 %v4551, %v4547
    %v5048 = vpack.c.b16 %v4552, %v4548
    %v5049 = vpack.c.b16 %v4553, %v4549
    %v5050 = vpack.c.b16 %v4558, %v4554
    %v5051 = vpack.c.b16 %v4559, %v4555
    %v5052 = vpack.c.b16 %v4560, %v4556
    %v5053 = vpack.c.b16 %v4561, %v4557
    %v5054 = vpack.c.b16 %v4566, %v4562
    %v5055 = vpack.c.b16 %v4567, %v4563
    %v5056 = vpack.c.b16 %v4568, %v4564
    %v5057 = vpack.c.b16 %v4569, %v4565
    %v5058 = vpack.c.b16 %v4574, %v4570
    %v5059 = vpack.c.b16 %v4575, %v4571
    %v5060 = vpack.c.b16 %v4576, %v4572
    %v5061 = vpack.c.b16 %v4577, %v4573
    %v5062 = vpack.c.b16 %v4582, %v4578
    %v5063 = vpack.c.b16 %v4583, %v4579
    %v5064 = vpack.c.b16 %v4584, %v4580
    %v5065 = vpack.c.b16 %v4585, %v4581
    %v5066 = vpack.c.b16 %v4590, %v4586
    %v5067 = vpack.c.b16 %v4591, %v4587
    %v5068 = vpack.c.b16 %v4592, %v4588
    %v5069 = vpack.c.b16 %v4593, %v4589
    %v5070 = vpack.c.b16 %v4598, %v4594
    %v5071 = vpack.c.b16 %v4599, %v4595
    %v5072 = vpack.c.b16 %v4600, %v4596
    %v5073 = vpack.c.b16 %v4601, %v4597
    %v5074 = vpack.c.b16 %v4606, %v4602
    %v5075 = vpack.c.b16 %v4607, %v4603
    %v5076 = vpack.c.b16 %v4608, %v4604
    %v5077 = vpack.c.b16 %v4609, %v4605
    %v5078 = vpack.c.b16 %v4614, %v4610
    %v5079 = vpack.c.b16 %v4615, %v4611
    %v5080 = vpack.c.b16 %v4616, %v4612
    %v5081 = vpack.c.b16 %v4617, %v4613
    %v5082 = vpack.c.b16 %v4622, %v4618
    %v5083 = vpack.c.b16 %v4623, %v4619
    %v5084 = vpack.c.b16 %v4624, %v4620
    %v5085 = vpack.c.b16 %v4625, %v4621
    %v5086 = vpack.c.b16 %v4630, %v4626
    %v5087 = vpack.c.b16 %v4631, %v4627
    %v5088 = vpack.c.b16 %v4632, %v4628
    %v5089 = vpack.c.b16 %v4633, %v4629
    %v5090 = vpack.c.b16 %v4638, %v4634
    %v5091 = vpack.c.b16 %v4639, %v4635
    %v5092 = vpack.c.b16 %v4640, %v4636
    %v5093 = vpack.c.b16 %v4641, %v4637
    %v5094 = vpack.c.b16 %v4646, %v4642
    %v5095 = vpack.c.b16 %v4647, %v4643
    %v5096 = vpack.c.b16 %v4648, %v4644
    %v5097 = vpack.c.b16 %v4649, %v4645
    %v5098 = vpack.c.b16 %v4654, %v4650
    %v5099 = vpack.c.b16 %v4655, %v4651
    %v5100 = vpack.c.b16 %v4656, %v4652
    %v5101 = vpack.c.b16 %v4657, %v4653
    %v5102 = vpack.c.b16 %v4662, %v4658
    %v5103 = vpack.c.b16 %v4663, %v4659
    %v5104 = vpack.c.b16 %v4664, %v4660
    %v5105 = vpack.c.b16 %v4665, %v4661
    %v5106 = vpack.c.b16 %v4670, %v4666
    %v5107 = vpack.c.b16 %v4671, %v4667
    %v5108 = vpack.c.b16 %v4672, %v4668
    %v5109 = vpack.c.b16 %v4673, %v4669
    %v5110 = vpack.c.b16 %v4678, %v4674
    %v5111 = vpack.c.b16 %v4679, %v4675
    %v5112 = vpack.c.b16 %v4680, %v4676
    %v5113 = vpack.c.b16 %v4681, %v4677
    %v5114 = vpack.c.b16 %v4686, %v4682
    %v5115 = vpack.c.b16 %v4687, %v4683
    %v5116 = vpack.c.b16 %v4688, %v4684
    %v5117 = vpack.c.b16 %v4689, %v4685
    %v5118 = vpack.c.b16 %v4694, %v4690
    %v5119 = vpack.c.b16 %v4695, %v4691
    %v5120 = vpack.c.b16 %v4696, %v4692
    %v5121 = vpack.c.b16 %v4697, %v4693
    %v5122 = vpack.c.b16 %v4702, %v4698
    %v5123 = vpack.c.b16 %v4703, %v4699
    %v5124 = vpack.c.b16 %v4704, %v4700
    %v5125 = vpack.c.b16 %v4705, %v4701
    %v5126 = vpack.c.b16 %v4710, %v4706
    %v5127 = vpack.c.b16 %v4711, %v4707
    %v5128 = vpack.c.b16 %v4712, %v4708
    %v5129 = vpack.c.b16 %v4713, %v4709
    %v5130 = vpack.c.b16 %v4718, %v4714
    %v5131 = vpack.c.b16 %v4719, %v4715
    %v5132 = vpack.c.b16 %v4720, %v4716
    %v5133 = vpack.c.b16 %v4721, %v4717
    %v5134 = vpack.c.b16 %v4726, %v4722
    %v5135 = vpack.c.b16 %v4727, %v4723
    %v5136 = vpack.c.b16 %v4728, %v4724
    %v5137 = vpack.c.b16 %v4729, %v4725
    %v5138 = vpack.c.b16 %v4734, %v4730
    %v5139 = vpack.c.b16 %v4735, %v4731
    %v5140 = vpack.c.b16 %v4736, %v4732
    %v5141 = vpack.c.b16 %v4737, %v4733
    %v5142 = vpack.c.b16 %v4742, %v4738
    %v5143 = vpack.c.b16 %v4743, %v4739
    %v5144 = vpack.c.b16 %v4744, %v4740
    %v5145 = vpack.c.b16 %v4745, %v4741
    %v5146 = vpack.c.b16 %v4750, %v4746
    %v5147 = vpack.c.b16 %v4751, %v4747
    %v5148 = vpack.c.b16 %v4752, %v4748
    %v5149 = vpack.c.b16 %v4753, %v4749
    %v5150 = vpack.c.b16 %v4758, %v4754
    %v5151 = vpack.c.b16 %v4759, %v4755
    %v5152 = vpack.c.b16 %v4760, %v4756
    %v5153 = vpack.c.b16 %v4761, %v4757
    %v5154 = vpack.c.b16 %v4766, %v4762
    %v5155 = vpack.c.b16 %v4767, %v4763
    %v5156 = vpack.c.b16 %v4768, %v4764
    %v5157 = vpack.c.b16 %v4769, %v4765
    %v5158 = vpack.c.b16 %v4774, %v4770
    %v5159 = vpack.c.b16 %v4775, %v4771
    %v5160 = vpack.c.b16 %v4776, %v4772
    %v5161 = vpack.c.b16 %v4777, %v4773
    %v5162 = vpack.c.b16 %v4782, %v4778
    %v5163 = vpack.c.b16 %v4783, %v4779
    %v5164 = vpack.c.b16 %v4784, %v4780
    %v5165 = vpack.c.b16 %v4785, %v4781
    %v5166 = vpack.c.b16 %v4790, %v4786
    %v5167 = vpack.c.b16 %v4791, %v4787
    %v5168 = vpack.c.b16 %v4792, %v4788
    %v5169 = vpack.c.b16 %v4793, %v4789
    %v5170 = vpack.c.b16 %v4798, %v4794
    %v5171 = vpack.c.b16 %v4799, %v4795
    %v5172 = vpack.c.b16 %v4800, %v4796
    %v5173 = vpack.c.b16 %v4801, %v4797
    %v5174 = vpack.c.b16 %v4806, %v4802
    %v5175 = vpack.c.b16 %v4807, %v4803
    %v5176 = vpack.c.b16 %v4808, %v4804
    %v5177 = vpack.c.b16 %v4809, %v4805
    %v5178 = vpack.c.b16 %v4814, %v4810
    %v5179 = vpack.c.b16 %v4815, %v4811
    %v5180 = vpack.c.b16 %v4816, %v4812
    %v5181 = vpack.c.b16 %v4817, %v4813
    %v5182 = vpack.c.b16 %v4822, %v4818
    %v5183 = vpack.c.b16 %v4823, %v4819
    %v5184 = vpack.c.b16 %v4824, %v4820
    %v5185 = vpack.c.b16 %v4825, %v4821
    %v5186 = vpack.c.b16 %v4830, %v4826
    %v5187 = vpack.c.b16 %v4831, %v4827
    %v5188 = vpack.c.b16 %v4832, %v4828
    %v5189 = vpack.c.b16 %v4833, %v4829
    %v5190 = vpack.c.b16 %v4838, %v4834
    %v5191 = vpack.c.b16 %v4839, %v4835
    %v5192 = vpack.c.b16 %v4840, %v4836
    %v5193 = vpack.c.b16 %v4841, %v4837
    %v5194 = vpack.c.b16 %v4846, %v4842
    %v5195 = vpack.c.b16 %v4847, %v4843
    %v5196 = vpack.c.b16 %v4848, %v4844
    %v5197 = vpack.c.b16 %v4849, %v4845
    %v5198 = vpack.c.b16 %v4854, %v4850
    %v5199 = vpack.c.b16 %v4855, %v4851
    %v5200 = vpack.c.b16 %v4856, %v4852
    %v5201 = vpack.c.b16 %v4857, %v4853
    %v5202 = vpack.c.b16 %v4862, %v4858
    %v5203 = vpack.c.b16 %v4863, %v4859
    %v5204 = vpack.c.b16 %v4864, %v4860
    %v5205 = vpack.c.b16 %v4865, %v4861
    %v5206 = vpack.c.b16 %v4870, %v4866
    %v5207 = vpack.c.b16 %v4871, %v4867
    %v5208 = vpack.c.b16 %v4872, %v4868
    %v5209 = vpack.c.b16 %v4873, %v4869
    %v5210 = vpack.c.b16 %v4878, %v4874
    %v5211 = vpack.c.b16 %v4879, %v4875
    %v5212 = vpack.c.b16 %v4880, %v4876
    %v5213 = vpack.c.b16 %v4881, %v4877
    %v5214 = vpack.c.b16 %v4886, %v4882
    %v5215 = vpack.c.b16 %v4887, %v4883
    %v5216 = vpack.c.b16 %v4888, %v4884
    %v5217 = vpack.c.b16 %v4889, %v4885
    %v5218 = vpack.c.b16 %v4894, %v4890
    %v5219 = vpack.c.b16 %v4895, %v4891
    %v5220 = vpack.c.b16 %v4896, %v4892
    %v5221 = vpack.c.b16 %v4897, %v4893
    %v5222 = vpack.c.b16 %v4902, %v4898
    %v5223 = vpack.c.b16 %v4903, %v4899
    %v5224 = vpack.c.b16 %v4904, %v4900
    %v5225 = vpack.c.b16 %v4905, %v4901
    %v5226 = vpack.c.b16 %v4910, %v4906
    %v5227 = vpack.c.b16 %v4911, %v4907
    %v5228 = vpack.c.b16 %v4912, %v4908
    %v5229 = vpack.c.b16 %v4913, %v4909
    %v5230 = vpack.c.b16 %v4918, %v4914
    %v5231 = vpack.c.b16 %v4919, %v4915
    %v5232 = vpack.c.b16 %v4920, %v4916
    %v5233 = vpack.c.b16 %v4921, %v4917
    %v5234 = vpack.c.b16 %v4926, %v4922
    %v5235 = vpack.c.b16 %v4927, %v4923
    %v5236 = vpack.c.b16 %v4928, %v4924
    %v5237 = vpack.c.b16 %v4929, %v4925
    %v5238 = vpack.c.b16 %v4934, %v4930
    %v5239 = vpack.c.b16 %v4935, %v4931
    %v5240 = vpack.c.b16 %v4936, %v4932
    %v5241 = vpack.c.b16 %v4937, %v4933
    %v5242 = vpack.c.b16 %v4942, %v4938
    %v5243 = vpack.c.b16 %v4943, %v4939
    %v5244 = vpack.c.b16 %v4944, %v4940
    %v5245 = vpack.c.b16 %v4945, %v4941
    %v5246 = vpack.c.b16 %v4950, %v4946
    %v5247 = vpack.c.b16 %v4951, %v4947
    %v5248 = vpack.c.b16 %v4952, %v4948
    %v5249 = vpack.c.b16 %v4953, %v4949
    %v5250 = vpack.c.b16 %v4958, %v4954
    %v5251 = vpack.c.b16 %v4959, %v4955
    %v5252 = vpack.c.b16 %v4960, %v4956
    %v5253 = vpack.c.b16 %v4961, %v4957
    %v5254 = vpack.c.b16 %v4966, %v4962
    %v5255 = vpack.c.b16 %v4967, %v4963
    %v5256 = vpack.c.b16 %v4968, %v4964
    %v5257 = vpack.c.b16 %v4969, %v4965
    %v5258 = vpack.c.b16 %v4974, %v4970
    %v5259 = vpack.c.b16 %v4975, %v4971
    %v5260 = vpack.c.b16 %v4976, %v4972
    %v5261 = vpack.c.b16 %v4977, %v4973
    %v5262 = vpack.c.b16 %v4982, %v4978
    %v5263 = vpack.c.b16 %v4983, %v4979
    %v5264 = vpack.c.b16 %v4984, %v4980
    %v5265 = vpack.c.b16 %v4985, %v4981
    %v5266 = vpack.c.b16 %v4990, %v4986
    %v5267 = vpack.c.b16 %v4991, %v4987
    %v5268 = vpack.c.b16 %v4992, %v4988
    %v5269 = vpack.c.b16 %v4993, %v4989
    %v5270 = vpack.c.b16 %v4998, %v4994
    %v5271 = vpack.c.b16 %v4999, %v4995
    %v5272 = vpack.c.b16 %v5000, %v4996
    %v5273 = vpack.c.b16 %v5001, %v4997
    %v5274 = vpack.c.b16 %v5006, %v5002
    %v5275 = vpack.c.b16 %v5007, %v5003
    %v5276 = vpack.c.b16 %v5008, %v5004
    %v5277 = vpack.c.b16 %v5009, %v5005
    %v5278 = vpack.c.b16 %v5014, %v5010
    %v5279 = vpack.c.b16 %v5015, %v5011
    %v5280 = vpack.c.b16 %v5016, %v5012
    %v5281 = vpack.c.b16 %v5017, %v5013
    %v5282 = vpack.c.b16 %v5022, %v5018
    %v5283 = vpack.c.b16 %v5023, %v5019
    %v5284 = vpack.c.b16 %v5024, %v5020
    %v5285 = vpack.c.b16 %v5025, %v5021
    %v5286 = vpack.c.b16 %v5030, %v5026
    %v5287 = vpack.c.b16 %v5031, %v5027
    %v5288 = vpack.c.b16 %v5032, %v5028
    %v5289 = vpack.c.b16 %v5033, %v5029
    %5546 = vmatprep.subr.bf16.mxu0 %v5063
    %5547 = vmatpush1.bf16.msra.mxu0 %v5062
    %5548 = vmatprep.subr.bf16.mxu0 %v5059
    %5549 = vmatpush1.bf16.msra.mxu0 %v5058
    %5550 = vmatprep.subr.bf16.mxu0 %v5055
    %5551 = vmatpush1.bf16.msra.mxu0 %v5054
    %5552 = vmatprep.subr.bf16.mxu0 %v5051
    %5553 = vmatpush1.bf16.msra.mxu0 %v5050
    %5554 = vmatprep.subr.bf16.mxu0 %v5047
    %5555 = vmatpush1.bf16.msra.mxu0 %v5046
    %5556 = vmatprep.subr.bf16.mxu0 %v5043
    %5557 = vmatpush1.bf16.msra.mxu0 %v5042
    %5558 = vmatprep.subr.bf16.mxu0 %v5039
    %5559 = vmatpush1.bf16.msra.mxu0 %v5038
    %5560 = vmatprep.subr.bf16.mxu0 %v5035
    %5561 = vmatpush1.bf16.msra.mxu0 %v5034
    %5562 = vmatprep.subr.bf16.mxu0 %v5095
    %5563 = vmatpush2.bf16.msra.mxu0 %v5094
    %5564 = vmatprep.subr.bf16.mxu0 %v5091
    %5565 = vmatpush2.bf16.msra.mxu0 %v5090
    %5566 = vmatprep.subr.bf16.mxu0 %v5087
    %5567 = vmatpush2.bf16.msra.mxu0 %v5086
    %5568 = vmatprep.subr.bf16.mxu0 %v5083
    %5569 = vmatpush2.bf16.msra.mxu0 %v5082
    %5570 = vmatprep.subr.bf16.mxu0 %v5079
    %5571 = vmatpush2.bf16.msra.mxu0 %v5078
    %5572 = vmatprep.subr.bf16.mxu0 %v5075
    %5573 = vmatpush2.bf16.msra.mxu0 %v5074
    %5574 = vmatprep.subr.bf16.mxu0 %v5071
    %5575 = vmatpush2.bf16.msra.mxu0 %v5070
    %5576 = vmatprep.subr.bf16.mxu0 %v5067
    %5577 = vmatpush2.bf16.msra.mxu0 %v5066
    %5578 = vmatprep.mubr.bf16.mxu0 %v4003
    %5579 = vmatmul.mubr.bf16.gmra.mxu0 %v4002
    %v5580 = vpop.f32.mrf.mxu0
    %v5581 = vadd.f32 0.0, %v5580
    %v5582 = vpop.f32.mrf.mxu0
    %v5583 = vadd.f32 0.0, %v5582
    %v5584 = vpop.f32.mrf.mxu0
    %v5585 = vpop.f32.mrf.mxu0
    %5586 = vdwg.mxu0
    %5587 = vmatprep.subr.bf16.mxu0 %v5127
    %5588 = vmatpush1.bf16.msra.mxu0 %v5126
    %5589 = vmatprep.subr.bf16.mxu0 %v5123
    %5590 = vmatpush1.bf16.msra.mxu0 %v5122
    %5591 = vmatprep.subr.bf16.mxu0 %v5119
    %5592 = vmatpush1.bf16.msra.mxu0 %v5118
    %5593 = vmatprep.subr.bf16.mxu0 %v5115
    %5594 = vmatpush1.bf16.msra.mxu0 %v5114
    %5595 = vmatprep.subr.bf16.mxu0 %v5111
    %5596 = vmatpush1.bf16.msra.mxu0 %v5110
    %5597 = vmatprep.subr.bf16.mxu0 %v5107
    %5598 = vmatpush1.bf16.msra.mxu0 %v5106
    %5599 = vmatprep.subr.bf16.mxu0 %v5103
    %5600 = vmatpush1.bf16.msra.mxu0 %v5102
    %5601 = vmatprep.subr.bf16.mxu0 %v5099
    %5602 = vmatpush1.bf16.msra.mxu0 %v5098
    %5603 = vmatprep.subr.bf16.mxu0 %v5159
    %5604 = vmatpush2.bf16.msra.mxu0 %v5158
    %5605 = vmatprep.subr.bf16.mxu0 %v5155
    %5606 = vmatpush2.bf16.msra.mxu0 %v5154
    %5607 = vmatprep.subr.bf16.mxu0 %v5151
    %5608 = vmatpush2.bf16.msra.mxu0 %v5150
    %5609 = vmatprep.subr.bf16.mxu0 %v5147
    %5610 = vmatpush2.bf16.msra.mxu0 %v5146
    %5611 = vmatprep.subr.bf16.mxu0 %v5143
    %5612 = vmatpush2.bf16.msra.mxu0 %v5142
    %5613 = vmatprep.subr.bf16.mxu0 %v5139
    %5614 = vmatpush2.bf16.msra.mxu0 %v5138
    %5615 = vmatprep.subr.bf16.mxu0 %v5135
    %5616 = vmatpush2.bf16.msra.mxu0 %v5134
    %5617 = vmatprep.subr.bf16.mxu0 %v5131
    %5618 = vmatpush2.bf16.msra.mxu0 %v5130
    %5619 = vmatprep.mubr.bf16.mxu0 %v4005
    %5620 = vmatmul.mubr.bf16.gmra.mxu0 %v4004
    %v5621 = vpop.f32.mrf.mxu0
    %v5622 = vadd.f32 %v5581, %v5621
    %v5623 = vpop.f32.mrf.mxu0
    %v5624 = vadd.f32 %v5583, %v5623
    %v5625 = vpop.f32.mrf.mxu0
    %v5626 = vpop.f32.mrf.mxu0
    %5627 = vdwg.mxu0
    %5628 = vmatprep.subr.bf16.mxu0 %v5191
    %5629 = vmatpush1.bf16.msra.mxu0 %v5190
    %5630 = vmatprep.subr.bf16.mxu0 %v5187
    %5631 = vmatpush1.bf16.msra.mxu0 %v5186
    %5632 = vmatprep.subr.bf16.mxu0 %v5183
    %5633 = vmatpush1.bf16.msra.mxu0 %v5182
    %5634 = vmatprep.subr.bf16.mxu0 %v5179
    %5635 = vmatpush1.bf16.msra.mxu0 %v5178
    %5636 = vmatprep.subr.bf16.mxu0 %v5175
    %5637 = vmatpush1.bf16.msra.mxu0 %v5174
    %5638 = vmatprep.subr.bf16.mxu0 %v5171
    %5639 = vmatpush1.bf16.msra.mxu0 %v5170
    %5640 = vmatprep.subr.bf16.mxu0 %v5167
    %5641 = vmatpush1.bf16.msra.mxu0 %v5166
    %5642 = vmatprep.subr.bf16.mxu0 %v5163
    %5643 = vmatpush1.bf16.msra.mxu0 %v5162
    %5644 = vmatprep.subr.bf16.mxu0 %v5223
    %5645 = vmatpush2.bf16.msra.mxu0 %v5222
    %5646 = vmatprep.subr.bf16.mxu0 %v5219
    %5647 = vmatpush2.bf16.msra.mxu0 %v5218
    %5648 = vmatprep.subr.bf16.mxu0 %v5215
    %5649 = vmatpush2.bf16.msra.mxu0 %v5214
    %5650 = vmatprep.subr.bf16.mxu0 %v5211
    %5651 = vmatpush2.bf16.msra.mxu0 %v5210
    %5652 = vmatprep.subr.bf16.mxu0 %v5207
    %5653 = vmatpush2.bf16.msra.mxu0 %v5206
    %5654 = vmatprep.subr.bf16.mxu0 %v5203
    %5655 = vmatpush2.bf16.msra.mxu0 %v5202
    %5656 = vmatprep.subr.bf16.mxu0 %v5199
    %5657 = vmatpush2.bf16.msra.mxu0 %v5198
    %5658 = vmatprep.subr.bf16.mxu0 %v5195
    %5659 = vmatpush2.bf16.msra.mxu0 %v5194
    %5660 = vmatprep.mubr.bf16.mxu0 %v4007
    %5661 = vmatmul.mubr.bf16.gmra.mxu0 %v4006
    %v5662 = vpop.f32.mrf.mxu0
    %v5663 = vadd.f32 %v5622, %v5662
    %v5664 = vpop.f32.mrf.mxu0
    %v5665 = vadd.f32 %v5624, %v5664
    %v5666 = vpop.f32.mrf.mxu0
    %v5667 = vpop.f32.mrf.mxu0
    %5668 = vdwg.mxu0
    %5669 = vmatprep.subr.bf16.mxu0 %v5255
    %5670 = vmatpush1.bf16.msra.mxu0 %v5254
    %5671 = vmatprep.subr.bf16.mxu0 %v5251
    %5672 = vmatpush1.bf16.msra.mxu0 %v5250
    %5673 = vmatprep.subr.bf16.mxu0 %v5247
    %5674 = vmatpush1.bf16.msra.mxu0 %v5246
    %5675 = vmatprep.subr.bf16.mxu0 %v5243
    %5676 = vmatpush1.bf16.msra.mxu0 %v5242
    %5677 = vmatprep.subr.bf16.mxu0 %v5239
    %5678 = vmatpush1.bf16.msra.mxu0 %v5238
    %5679 = vmatprep.subr.bf16.mxu0 %v5235
    %5680 = vmatpush1.bf16.msra.mxu0 %v5234
    %5681 = vmatprep.subr.bf16.mxu0 %v5231
    %5682 = vmatpush1.bf16.msra.mxu0 %v5230
    %5683 = vmatprep.subr.bf16.mxu0 %v5227
    %5684 = vmatpush1.bf16.msra.mxu0 %v5226
    %5685 = vmatprep.subr.bf16.mxu0 %v5287
    %5686 = vmatpush2.bf16.msra.mxu0 %v5286
    %5687 = vmatprep.subr.bf16.mxu0 %v5283
    %5688 = vmatpush2.bf16.msra.mxu0 %v5282
    %5689 = vmatprep.subr.bf16.mxu0 %v5279
    %5690 = vmatpush2.bf16.msra.mxu0 %v5278
    %5691 = vmatprep.subr.bf16.mxu0 %v5275
    %5692 = vmatpush2.bf16.msra.mxu0 %v5274
    %5693 = vmatprep.subr.bf16.mxu0 %v5271
    %5694 = vmatpush2.bf16.msra.mxu0 %v5270
    %5695 = vmatprep.subr.bf16.mxu0 %v5267
    %5696 = vmatpush2.bf16.msra.mxu0 %v5266
    %5697 = vmatprep.subr.bf16.mxu0 %v5263
    %5698 = vmatpush2.bf16.msra.mxu0 %v5262
    %5699 = vmatprep.subr.bf16.mxu0 %v5259
    %5700 = vmatpush2.bf16.msra.mxu0 %v5258
    %5701 = vmatprep.mubr.bf16.mxu0 %v4009
    %5702 = vmatmul.mubr.bf16.gmra.mxu0 %v4008
    %v5703 = vpop.f32.mrf.mxu0
    %v5704 = vadd.f32 %v5663, %v5703
    %v5705 = vpop.f32.mrf.mxu0
    %v5706 = vadd.f32 %v5665, %v5705
    %v5707 = vpop.f32.mrf.mxu0
    %v5708 = vpop.f32.mrf.mxu0
    %5709 = vdwg.mxu0
    %5710 = vmatprep.subr.bf16.mxu0 %v5065
    %5711 = vmatpush1.bf16.msra.mxu0 %v5064
    %5712 = vmatprep.subr.bf16.mxu0 %v5061
    %5713 = vmatpush1.bf16.msra.mxu0 %v5060
    %5714 = vmatprep.subr.bf16.mxu0 %v5057
    %5715 = vmatpush1.bf16.msra.mxu0 %v5056
    %5716 = vmatprep.subr.bf16.mxu0 %v5053
    %5717 = vmatpush1.bf16.msra.mxu0 %v5052
    %5718 = vmatprep.subr.bf16.mxu0 %v5049
    %5719 = vmatpush1.bf16.msra.mxu0 %v5048
    %5720 = vmatprep.subr.bf16.mxu0 %v5045
    %5721 = vmatpush1.bf16.msra.mxu0 %v5044
    %5722 = vmatprep.subr.bf16.mxu0 %v5041
    %5723 = vmatpush1.bf16.msra.mxu0 %v5040
    %5724 = vmatprep.subr.bf16.mxu0 %v5037
    %5725 = vmatpush1.bf16.msra.mxu0 %v5036
    %5726 = vmatprep.subr.bf16.mxu0 %v5097
    %5727 = vmatpush2.bf16.msra.mxu0 %v5096
    %5728 = vmatprep.subr.bf16.mxu0 %v5093
    %5729 = vmatpush2.bf16.msra.mxu0 %v5092
    %5730 = vmatprep.subr.bf16.mxu0 %v5089
    %5731 = vmatpush2.bf16.msra.mxu0 %v5088
    %5732 = vmatprep.subr.bf16.mxu0 %v5085
    %5733 = vmatpush2.bf16.msra.mxu0 %v5084
    %5734 = vmatprep.subr.bf16.mxu0 %v5081
    %5735 = vmatpush2.bf16.msra.mxu0 %v5080
    %5736 = vmatprep.subr.bf16.mxu0 %v5077
    %5737 = vmatpush2.bf16.msra.mxu0 %v5076
    %5738 = vmatprep.subr.bf16.mxu0 %v5073
    %5739 = vmatpush2.bf16.msra.mxu0 %v5072
    %5740 = vmatprep.subr.bf16.mxu0 %v5069
    %5741 = vmatpush2.bf16.msra.mxu0 %v5068
    %5742 = vmatprep.mubr.bf16.mxu0 %v4003
    %5743 = vmatmul.mubr.bf16.gmra.mxu0 %v4002
    %v5744 = vpop.f32.mrf.mxu0
    %v5745 = vadd.f32 0.0, %v5744
    %v5746 = vpop.f32.mrf.mxu0
    %v5747 = vadd.f32 0.0, %v5746
    %v5748 = vpop.f32.mrf.mxu0
    %v5749 = vpop.f32.mrf.mxu0
    %5750 = vdwg.mxu0
    %5751 = vmatprep.subr.bf16.mxu0 %v5129
    %5752 = vmatpush1.bf16.msra.mxu0 %v5128
    %5753 = vmatprep.subr.bf16.mxu0 %v5125
    %5754 = vmatpush1.bf16.msra.mxu0 %v5124
    %5755 = vmatprep.subr.bf16.mxu0 %v5121
    %5756 = vmatpush1.bf16.msra.mxu0 %v5120
    %5757 = vmatprep.subr.bf16.mxu0 %v5117
    %5758 = vmatpush1.bf16.msra.mxu0 %v5116
    %5759 = vmatprep.subr.bf16.mxu0 %v5113
    %5760 = vmatpush1.bf16.msra.mxu0 %v5112
    %5761 = vmatprep.subr.bf16.mxu0 %v5109
    %5762 = vmatpush1.bf16.msra.mxu0 %v5108
    %5763 = vmatprep.subr.bf16.mxu0 %v5105
    %5764 = vmatpush1.bf16.msra.mxu0 %v5104
    %5765 = vmatprep.subr.bf16.mxu0 %v5101
    %5766 = vmatpush1.bf16.msra.mxu0 %v5100
    %5767 = vmatprep.subr.bf16.mxu0 %v5161
    %5768 = vmatpush2.bf16.msra.mxu0 %v5160
    %5769 = vmatprep.subr.bf16.mxu0 %v5157
    %5770 = vmatpush2.bf16.msra.mxu0 %v5156
    %5771 = vmatprep.subr.bf16.mxu0 %v5153
    %5772 = vmatpush2.bf16.msra.mxu0 %v5152
    %5773 = vmatprep.subr.bf16.mxu0 %v5149
    %5774 = vmatpush2.bf16.msra.mxu0 %v5148
    %5775 = vmatprep.subr.bf16.mxu0 %v5145
    %5776 = vmatpush2.bf16.msra.mxu0 %v5144
    %5777 = vmatprep.subr.bf16.mxu0 %v5141
    %5778 = vmatpush2.bf16.msra.mxu0 %v5140
    %5779 = vmatprep.subr.bf16.mxu0 %v5137
    %5780 = vmatpush2.bf16.msra.mxu0 %v5136
    %5781 = vmatprep.subr.bf16.mxu0 %v5133
    %5782 = vmatpush2.bf16.msra.mxu0 %v5132
    %5783 = vmatprep.mubr.bf16.mxu0 %v4005
    %5784 = vmatmul.mubr.bf16.gmra.mxu0 %v4004
    %v5785 = vpop.f32.mrf.mxu0
    %v5786 = vadd.f32 %v5745, %v5785
    %v5787 = vpop.f32.mrf.mxu0
    %v5788 = vadd.f32 %v5747, %v5787
    %v5789 = vpop.f32.mrf.mxu0
    %v5790 = vpop.f32.mrf.mxu0
    %5791 = vdwg.mxu0
    %5792 = vmatprep.subr.bf16.mxu0 %v5193
    %5793 = vmatpush1.bf16.msra.mxu0 %v5192
    %5794 = vmatprep.subr.bf16.mxu0 %v5189
    %5795 = vmatpush1.bf16.msra.mxu0 %v5188
    %5796 = vmatprep.subr.bf16.mxu0 %v5185
    %5797 = vmatpush1.bf16.msra.mxu0 %v5184
    %5798 = vmatprep.subr.bf16.mxu0 %v5181
    %5799 = vmatpush1.bf16.msra.mxu0 %v5180
    %5800 = vmatprep.subr.bf16.mxu0 %v5177
    %5801 = vmatpush1.bf16.msra.mxu0 %v5176
    %5802 = vmatprep.subr.bf16.mxu0 %v5173
    %5803 = vmatpush1.bf16.msra.mxu0 %v5172
    %5804 = vmatprep.subr.bf16.mxu0 %v5169
    %5805 = vmatpush1.bf16.msra.mxu0 %v5168
    %5806 = vmatprep.subr.bf16.mxu0 %v5165
    %5807 = vmatpush1.bf16.msra.mxu0 %v5164
    %5808 = vmatprep.subr.bf16.mxu0 %v5225
    %5809 = vmatpush2.bf16.msra.mxu0 %v5224
    %5810 = vmatprep.subr.bf16.mxu0 %v5221
    %5811 = vmatpush2.bf16.msra.mxu0 %v5220
    %5812 = vmatprep.subr.bf16.mxu0 %v5217
    %5813 = vmatpush2.bf16.msra.mxu0 %v5216
    %5814 = vmatprep.subr.bf16.mxu0 %v5213
    %5815 = vmatpush2.bf16.msra.mxu0 %v5212
    %5816 = vmatprep.subr.bf16.mxu0 %v5209
    %5817 = vmatpush2.bf16.msra.mxu0 %v5208
    %5818 = vmatprep.subr.bf16.mxu0 %v5205
    %5819 = vmatpush2.bf16.msra.mxu0 %v5204
    %5820 = vmatprep.subr.bf16.mxu0 %v5201
    %5821 = vmatpush2.bf16.msra.mxu0 %v5200
    %5822 = vmatprep.subr.bf16.mxu0 %v5197
    %5823 = vmatpush2.bf16.msra.mxu0 %v5196
    %5824 = vmatprep.mubr.bf16.mxu0 %v4007
    %5825 = vmatmul.mubr.bf16.gmra.mxu0 %v4006
    %v5826 = vpop.f32.mrf.mxu0
    %v5827 = vadd.f32 %v5786, %v5826
    %v5828 = vpop.f32.mrf.mxu0
    %v5829 = vadd.f32 %v5788, %v5828
    %v5830 = vpop.f32.mrf.mxu0
    %v5831 = vpop.f32.mrf.mxu0
    %5832 = vdwg.mxu0
    %5833 = vmatprep.subr.bf16.mxu0 %v5257
    %5834 = vmatpush1.bf16.msra.mxu0 %v5256
    %5835 = vmatprep.subr.bf16.mxu0 %v5253
    %5836 = vmatpush1.bf16.msra.mxu0 %v5252
    %5837 = vmatprep.subr.bf16.mxu0 %v5249
    %5838 = vmatpush1.bf16.msra.mxu0 %v5248
    %5839 = vmatprep.subr.bf16.mxu0 %v5245
    %5840 = vmatpush1.bf16.msra.mxu0 %v5244
    %5841 = vmatprep.subr.bf16.mxu0 %v5241
    %5842 = vmatpush1.bf16.msra.mxu0 %v5240
    %5843 = vmatprep.subr.bf16.mxu0 %v5237
    %5844 = vmatpush1.bf16.msra.mxu0 %v5236
    %5845 = vmatprep.subr.bf16.mxu0 %v5233
    %5846 = vmatpush1.bf16.msra.mxu0 %v5232
    %5847 = vmatprep.subr.bf16.mxu0 %v5229
    %5848 = vmatpush1.bf16.msra.mxu0 %v5228
    %5849 = vmatprep.subr.bf16.mxu0 %v5289
    %5850 = vmatpush2.bf16.msra.mxu0 %v5288
    %5851 = vmatprep.subr.bf16.mxu0 %v5285
    %5852 = vmatpush2.bf16.msra.mxu0 %v5284
    %5853 = vmatprep.subr.bf16.mxu0 %v5281
    %5854 = vmatpush2.bf16.msra.mxu0 %v5280
    %5855 = vmatprep.subr.bf16.mxu0 %v5277
    %5856 = vmatpush2.bf16.msra.mxu0 %v5276
    %5857 = vmatprep.subr.bf16.mxu0 %v5273
    %5858 = vmatpush2.bf16.msra.mxu0 %v5272
    %5859 = vmatprep.subr.bf16.mxu0 %v5269
    %5860 = vmatpush2.bf16.msra.mxu0 %v5268
    %5861 = vmatprep.subr.bf16.mxu0 %v5265
    %5862 = vmatpush2.bf16.msra.mxu0 %v5264
    %5863 = vmatprep.subr.bf16.mxu0 %v5261
    %5864 = vmatpush2.bf16.msra.mxu0 %v5260
    %5865 = vmatprep.mubr.bf16.mxu0 %v4009
    %5866 = vmatmul.mubr.bf16.gmra.mxu0 %v4008
    %v5867 = vpop.f32.mrf.mxu0
    %v5868 = vadd.f32 %v5827, %v5867
    %v5869 = vpop.f32.mrf.mxu0
    %v5870 = vadd.f32 %v5829, %v5869
    %v5871 = vpop.f32.mrf.mxu0
    %v5872 = vpop.f32.mrf.mxu0
    %5873 = vdwg.mxu0
    %v5874 = vmax.f32 %v5704, %v5706
    %v5875 = vmax.f32 %v5868, %v5870
    %v5876 = vmax.f32 %v5874, %v5875
    %v5877 = vld [vmem:[#allocation8] sm:$0x1]
    %v5879 = vlaneseq
    %v5880 = vshrl.u32 %v5879, 7
    %v5881 = vsub.s32 0, %v5880
    %v5882 = vrot.slane %v5877, %v5881
    %v5884 = vadd.f32 %v5876, %v5882
    %v5885 = vmax.f32 %v5884, 0.0
    %v5886 = vpack.c.bf16 %v5885, %v5885
    %v5887 = vld [vmem:[#allocation10] sm:$0xff]
    %v5888 = vld [vmem:[#allocation10 + $0x8] sm:$0xff]
    %v5889 = vld [vmem:[#allocation10 + $0x10] sm:$0xff]
    %v5890 = vld [vmem:[#allocation10 + $0x18] sm:$0xff]
    %v5891 = vld [vmem:[#allocation10 + $0x20] sm:$0xff]
    %v5892 = vld [vmem:[#allocation10 + $0x28] sm:$0xff]
    %v5893 = vld [vmem:[#allocation10 + $0x30] sm:$0xff]
    %v5894 = vld [vmem:[#allocation10 + $0x38] sm:$0xff]
    %v5895 = vld [vmem:[#allocation10 + $0x40] sm:$0xff]
    %v5896 = vld [vmem:[#allocation10 + $0x48] sm:$0xff]
    %v5897 = vld [vmem:[#allocation10 + $0x50] sm:$0xff]
    %v5898 = vld [vmem:[#allocation10 + $0x58] sm:$0xff]
    %v5899 = vld [vmem:[#allocation10 + $0x60] sm:$0xff]
    %v5900 = vld [vmem:[#allocation10 + $0x68] sm:$0xff]
    %v5901 = vld [vmem:[#allocation10 + $0x70] sm:$0xff]
    %v5902 = vld [vmem:[#allocation10 + $0x78] sm:$0xff]
    %v5919 = vunpack.c.l.b16 %v5887
    %v5920 = vunpack.c.h.b16 %v5887
    %v5921 = vunpack.c.l.b16 %v5888
    %v5922 = vunpack.c.h.b16 %v5888
    %v5923 = vunpack.c.l.b16 %v5889
    %v5924 = vunpack.c.h.b16 %v5889
    %v5925 = vunpack.c.l.b16 %v5890
    %v5926 = vunpack.c.h.b16 %v5890
    %v5927 = vunpack.c.l.b16 %v5891
    %v5928 = vunpack.c.h.b16 %v5891
    %v5929 = vunpack.c.l.b16 %v5892
    %v5930 = vunpack.c.h.b16 %v5892
    %v5931 = vunpack.c.l.b16 %v5893
    %v5932 = vunpack.c.h.b16 %v5893
    %v5933 = vunpack.c.l.b16 %v5894
    %v5934 = vunpack.c.h.b16 %v5894
    %v5935 = vunpack.c.l.b16 %v5895
    %v5936 = vunpack.c.h.b16 %v5895
    %v5937 = vunpack.c.l.b16 %v5896
    %v5938 = vunpack.c.h.b16 %v5896
    %v5939 = vunpack.c.l.b16 %v5897
    %v5940 = vunpack.c.h.b16 %v5897
    %v5941 = vunpack.c.l.b16 %v5898
    %v5942 = vunpack.c.h.b16 %v5898
    %v5943 = vunpack.c.l.b16 %v5899
    %v5944 = vunpack.c.h.b16 %v5899
    %v5945 = vunpack.c.l.b16 %v5900
    %v5946 = vunpack.c.h.b16 %v5900
    %v5947 = vunpack.c.l.b16 %v5901
    %v5948 = vunpack.c.h.b16 %v5901
    %v5949 = vunpack.c.l.b16 %v5902
    %v5950 = vunpack.c.h.b16 %v5902
    %v5951 = vpack.c.b16 %v5921, %v5919
    %v5952 = vpack.c.b16 %v5922, %v5920
    %v5953 = vpack.c.b16 %v5925, %v5923
    %v5954 = vpack.c.b16 %v5926, %v5924
    %v5955 = vpack.c.b16 %v5929, %v5927
    %v5956 = vpack.c.b16 %v5930, %v5928
    %v5957 = vpack.c.b16 %v5933, %v5931
    %v5958 = vpack.c.b16 %v5934, %v5932
    %v5959 = vpack.c.b16 %v5937, %v5935
    %v5960 = vpack.c.b16 %v5938, %v5936
    %v5961 = vpack.c.b16 %v5941, %v5939
    %v5962 = vpack.c.b16 %v5942, %v5940
    %v5963 = vpack.c.b16 %v5945, %v5943
    %v5964 = vpack.c.b16 %v5946, %v5944
    %v5965 = vpack.c.b16 %v5949, %v5947
    %v5966 = vpack.c.b16 %v5950, %v5948
    %5983 = vmatprep.subr.bf16.mxu0 %v5966
    %5984 = vmatpush1.bf16.msra.mxu0 %v5965
    %5985 = vmatprep.subr.bf16.mxu0 %v5964
    %5986 = vmatpush1.bf16.msra.mxu0 %v5963
    %5987 = vmatprep.subr.bf16.mxu0 %v5962
    %5988 = vmatpush1.bf16.msra.mxu0 %v5961
    %5989 = vmatprep.subr.bf16.mxu0 %v5960
    %5990 = vmatpush1.bf16.msra.mxu0 %v5959
    %5991 = vmatprep.subr.bf16.mxu0 %v5958
    %5992 = vmatpush1.bf16.msra.mxu0 %v5957
    %5993 = vmatprep.subr.bf16.mxu0 %v5956
    %5994 = vmatpush1.bf16.msra.mxu0 %v5955
    %5995 = vmatprep.subr.bf16.mxu0 %v5954
    %5996 = vmatpush1.bf16.msra.mxu0 %v5953
    %5997 = vmatprep.subr.bf16.mxu0 %v5952
    %5998 = vmatpush1.bf16.msra.mxu0 %v5951
    %5999 = vmatprep.subr.bf16.mxu0 0
    %6000 = vmatpush2.bf16.msra.mxu0 0
    %6001 = vmatprep.subr.bf16.mxu0 0
    %6002 = vmatpush2.bf16.msra.mxu0 0
    %6003 = vmatprep.subr.bf16.mxu0 0
    %6004 = vmatpush2.bf16.msra.mxu0 0
    %6005 = vmatprep.subr.bf16.mxu0 0
    %6006 = vmatpush2.bf16.msra.mxu0 0
    %6007 = vmatprep.subr.bf16.mxu0 0
    %6008 = vmatpush2.bf16.msra.mxu0 0
    %6009 = vmatprep.subr.bf16.mxu0 0
    %6010 = vmatpush2.bf16.msra.mxu0 0
    %6011 = vmatprep.subr.bf16.mxu0 0
    %6012 = vmatpush2.bf16.msra.mxu0 0
    %6013 = vmatprep.subr.bf16.mxu0 0
    %6014 = vmatpush2.bf16.msra.mxu0 0
    %6015 = vmatprep.mubr.bf16.mxu0 0
    %6016 = vmatmul.mubr.bf16.gmra.mxu0 %v5886
    %v6017 = vpop.f32.mrf.mxu0
    %v6018 = vadd.f32 0.0, %v6017
    %v6019 = vpop.f32.mrf.mxu0
    %v6020 = vadd.f32 0.0, %v6019
    %v6021 = vpop.f32.mrf.mxu0
    %v6022 = vpop.f32.mrf.mxu0
    %6023 = vdwg.mxu0
    %6025 = vrot.lane.b32.xlu0 %v6018, 64
    %v6026 = vpop.permute.xlu0 %6025
    %v6028 = vmax.f32 %v6018, %v6026
    %6030 = vrot.lane.b32.xlu0 %v6020, 64
    %v6031 = vpop.permute.xlu0 %6030
    %v6033 = vmax.f32 %v6020, %v6031
    %v6034 = vmax.f32 %v6028, %v6033
    %v6035 = vld [vmem:[#allocation11] sm:$0x1]
    %v6037 = vlaneseq
    %v6038 = vshrl.u32 %v6037, 7
    %v6039 = vsub.s32 0, %v6038
    %v6040 = vrot.slane %v6035, %v6039
    %v6042 = vadd.f32 %v6034, %v6040
    %v6043 = vmax.f32 %v6042, 0.0
    %v6044 = vpack.c.bf16 %v6043, %v6043
    %v6045 = vld [vmem:[#allocation13] sm:$0xf]
    %v6046 = vld [vmem:[#allocation13 + $0x4] sm:$0xf]
    %v6047 = vld [vmem:[#allocation13 + $0x8] sm:$0xf]
    %v6048 = vld [vmem:[#allocation13 + $0xc] sm:$0xf]
    %v6049 = vld [vmem:[#allocation13 + $0x10] sm:$0xf]
    %v6050 = vld [vmem:[#allocation13 + $0x14] sm:$0xf]
    %v6051 = vld [vmem:[#allocation13 + $0x18] sm:$0xf]
    %v6052 = vld [vmem:[#allocation13 + $0x1c] sm:$0xf]
    %v6061 = vunpack.c.l.b16 %v6045
    %v6062 = vunpack.c.l.b16 %v6046
    %v6063 = vunpack.c.l.b16 %v6047
    %v6064 = vunpack.c.l.b16 %v6048
    %v6065 = vunpack.c.l.b16 %v6049
    %v6066 = vunpack.c.l.b16 %v6050
    %v6067 = vunpack.c.l.b16 %v6051
    %v6068 = vunpack.c.l.b16 %v6052
    %v6069 = vpack.c.b16 %v6062, %v6061
    %v6070 = vpack.c.b16 %v6064, %v6063
    %v6071 = vpack.c.b16 %v6066, %v6065
    %v6072 = vpack.c.b16 %v6068, %v6067
    %vm6077 = vcmask 523264
    %v6079 = vsel %vm6077, %v6044, 0
    %6081 = vmatprep.subr.bf16.mxu0 0
    %6082 = vmatpush1.bf16.msra.mxu0 0
    %6083 = vmatprep.subr.bf16.mxu0 0
    %6084 = vmatpush1.bf16.msra.mxu0 0
    %6085 = vmatprep.subr.bf16.mxu0 0
    %6086 = vmatpush1.bf16.msra.mxu0 0
    %6087 = vmatprep.subr.bf16.mxu0 0
    %6088 = vmatpush1.bf16.msra.mxu0 0
    %6089 = vmatprep.subr.bf16.mxu0 0
    %6090 = vmatpush1.bf16.msra.mxu0 %v6072
    %6091 = vmatprep.subr.bf16.mxu0 0
    %6092 = vmatpush1.bf16.msra.mxu0 %v6071
    %6093 = vmatprep.subr.bf16.mxu0 0
    %6094 = vmatpush1.bf16.msra.mxu0 %v6070
    %6095 = vmatprep.subr.bf16.mxu0 0
    %6096 = vmatpush1.bf16.msra.mxu0 %v6069
    %6097 = vmatprep.subr.bf16.mxu0 0
    %6098 = vmatpush2.bf16.msra.mxu0 0
    %6099 = vmatprep.subr.bf16.mxu0 0
    %6100 = vmatpush2.bf16.msra.mxu0 0
    %6101 = vmatprep.subr.bf16.mxu0 0
    %6102 = vmatpush2.bf16.msra.mxu0 0
    %6103 = vmatprep.subr.bf16.mxu0 0
    %6104 = vmatpush2.bf16.msra.mxu0 0
    %6105 = vmatprep.subr.bf16.mxu0 0
    %6106 = vmatpush2.bf16.msra.mxu0 0
    %6107 = vmatprep.subr.bf16.mxu0 0
    %6108 = vmatpush2.bf16.msra.mxu0 0
    %6109 = vmatprep.subr.bf16.mxu0 0
    %6110 = vmatpush2.bf16.msra.mxu0 0
    %6111 = vmatprep.subr.bf16.mxu0 0
    %6112 = vmatpush2.bf16.msra.mxu0 0
    %6113 = vmatprep.mubr.bf16.mxu0 0
    %6114 = vmatmul.mubr.bf16.gmra.mxu0 %v6079
    %v6115 = vpop.f32.mrf.mxu0
    %v6116 = vadd.f32 0.0, %v6115
    %v6117 = vpop.f32.mrf.mxu0
    %v6118 = vpop.f32.mrf.mxu0
    %v6119 = vpop.f32.mrf.mxu0
    %6120 = vdwg.mxu0
    %6122 = vrot.lane.b32.xlu0 %v6116, 112
    %v6123 = vpop.permute.xlu0 %6122
    %v6125 = vmax.f32 %v6116, %v6123
    %6127 = vrot.lane.b32.xlu0 %v6125, 96
    %v6128 = vpop.permute.xlu0 %6127
    %v6130 = vmax.f32 %v6125, %v6128
    %v6131 = vld [vmem:[#allocation14] sm:$0x1]
    %v6133 = vlaneseq
    %v6134 = vshrl.u32 %v6133, 7
    %v6135 = vsub.s32 0, %v6134
    %v6136 = vrot.slane %v6131, %v6135
    %v6138 = vadd.f32 %v6130, %v6136
    %v6139 = vmax.f32 %v6138, 0.0
    %v6140 = vpack.c.bf16 %v6139, %v6139
    %v6141 = vld [vmem:[#allocation16] sm:$0xf]
    %v6142 = vld [vmem:[#allocation16 + $0x4] sm:$0xf]
    %v6143 = vld [vmem:[#allocation17] sm:$0x1]
    %v6145 = vlaneseq
    %v6146 = vshrl.u32 %v6145, 7
    %v6147 = vsub.s32 0, %v6146
    %v6148 = vrot.slane %v6143, %v6147
    %v6152 = vunpack.c.l.b16 %v6141
    %v6153 = vunpack.c.l.b16 %v6142
    %v6154 = vpack.c.b16 %v6153, %v6152
    %vm6156 = vcmask 130048
    %v6158 = vsel %vm6156, %v6140, 0
    %6160 = vmatprep.subr.bf16.mxu0 0
    %6161 = vmatpush1.bf16.msra.mxu0 0
    %6162 = vmatprep.subr.bf16.mxu0 0
    %6163 = vmatpush1.bf16.msra.mxu0 0
    %6164 = vmatprep.subr.bf16.mxu0 0
    %6165 = vmatpush1.bf16.msra.mxu0 0
    %6166 = vmatprep.subr.bf16.mxu0 0
    %6167 = vmatpush1.bf16.msra.mxu0 0
    %6168 = vmatprep.subr.bf16.mxu0 0
    %6169 = vmatpush1.bf16.msra.mxu0 0
    %6170 = vmatprep.subr.bf16.mxu0 0
    %6171 = vmatpush1.bf16.msra.mxu0 0
    %6172 = vmatprep.subr.bf16.mxu0 0
    %6173 = vmatpush1.bf16.msra.mxu0 0
    %6174 = vmatprep.subr.bf16.mxu0 0
    %6175 = vmatpush1.bf16.msra.mxu0 %v6154
    %6176 = vmatprep.subr.bf16.mxu0 0
    %6177 = vmatpush2.bf16.msra.mxu0 0
    %6178 = vmatprep.subr.bf16.mxu0 0
    %6179 = vmatpush2.bf16.msra.mxu0 0
    %6180 = vmatprep.subr.bf16.mxu0 0
    %6181 = vmatpush2.bf16.msra.mxu0 0
    %6182 = vmatprep.subr.bf16.mxu0 0
    %6183 = vmatpush2.bf16.msra.mxu0 0
    %6184 = vmatprep.subr.bf16.mxu0 0
    %6185 = vmatpush2.bf16.msra.mxu0 0
    %6186 = vmatprep.subr.bf16.mxu0 0
    %6187 = vmatpush2.bf16.msra.mxu0 0
    %6188 = vmatprep.subr.bf16.mxu0 0
    %6189 = vmatpush2.bf16.msra.mxu0 0
    %6190 = vmatprep.subr.bf16.mxu0 0
    %6191 = vmatpush2.bf16.msra.mxu0 0
    %6192 = vmatprep.mubr.bf16.mxu0 0
    %6193 = vmatmul.mubr.bf16.gmra.mxu0 %v6158
    %v6194 = vpop.f32.mrf.mxu0
    %v6195 = vadd.f32 %v6148, %v6194
    %v6196 = vpop.f32.mrf.mxu0
    %v6197 = vpop.f32.mrf.mxu0
    %v6198 = vpop.f32.mrf.mxu0
    %6199 = vdwg.mxu0
    %6200 = vst [vmem:[#allocation19] sm:$0x3] %v6195
    // Predicated region
    $region86: #{cnn4_forward.1} parent=1 // pred_check
      _
    $region87: #{cnn4_forward.1} parent=1 // pred_check_branch
      %6202 = sbr.rel (0) target = $region89
    $region88: #{cnn4_forward.1} parent=1 // pred_region
      %s6204 = ssub.s32 32, 32
      %6205 = vsyncadd [#allocation4], %s6204
      %s6207 = sshll.u32 [#allocation19], 4
      %s6208 = int_to_ptr.vmem [resolvable:$true] %s6207
      %6210 = dma.vmem_to_hbm [thread:$0]  %s6208, 32, %s11, [#allocation4]
    $region89: #{cnn4_forward.1} parent=1 // pred_fallthru
      _
    // Predicated region
    $region90: #{cnn4_forward.1} parent=1 // pred_check
      _
    $region91: #{cnn4_forward.1} parent=1 // pred_check_branch
      %6212 = sbr.rel (0) target = $region93
    $region92: #{cnn4_forward.1} parent=1 // pred_region
      %6213 = dma.done [#allocation4], 32
    $region93: #{cnn4_forward.1} parent=1 // pred_fallthru
      _
    %6214 = vsyncpa [#allocation3], 1
    %6215 = vsyncpa [#allocation6], 1
    %6216 = vsyncpa [#allocation9], 1
    %6217 = vsyncpa [#allocation12], 1
    %6218 = vsyncpa [#allocation15], 1
    %6219 = vsyncpa [#allocation18], 1
    %6220 = vsyncpa [#allocation4], 1

</llo_original>
